<compile_context>
chip_gen: v7x
topology: tpu7x:2x2x1
jax: 0.10.0
libtpu: 0.0.40
codegen_flags: <defaults>
</compile_context>

<pallas_src>
import math
import functools

import jax
import jax.numpy as jnp
from jax.experimental import pallas as pl
from jax.experimental.pallas import tpu as pltpu

# ----------------------------- config ---------------------------------------
VOCAB = 33          # len(alphabet.all_toks) for the ESM alphabet
HIDDEN = 32         # esm_model.embed_dim
N_HEADS = 4
HEAD_DIM = HIDDEN // N_HEADS
FFN = 64
N_LAYERS = 2        # esm_model.num_layers
MAX_SEQ = 64
PAD_IDX = 1         # ESM alphabet padding token
LN_EPS = 1e-5

# lane-padded feature widths: everything feature-like is zero-padded to a full
# 128-lane vreg so matmuls and HBM stores are lane-dense.
HP = 128            # padded hidden width
VP = 128            # padded vocab width
FP = 128            # padded FFN width
QKV_W = 3 * HP      # fused q|k|v projection output width
BIAS_LANE = 127     # spare lane used to carry the key-padding bias (>= HIDDEN)

NEG = -1e9          # additive "minus infinity" for masking
NEG_BIG = -1e30     # vocab-lane mask inside cross entropy
TARGET_ROWS = 256   # default (b,s)-rows per grid step (MXU row utilization)


# --------------------------- fused Pallas kernel -----------------------------
def _fused_esm_kernel(ids_ref, labels_ref, pos_ref,
                      tok_ref, lnf_g_ref, lnf_b_ref, lm_w_ref,
                      ln1_g_ref, ln1_b_ref, wqkv_ref, bqkv_ref,
                      wo_ref, bo_ref,
                      ln2_g_ref, ln2_b_ref, w1_ref, b1_ref, w2_ref, b2_ref,
                      logits_ref, loss_ref, *, seqs_per_block, seq):
    mb = seqs_per_block * seq                      # rows in this block
    f32 = jnp.float32
    C = jnp.bfloat16                               # MXU operand dtype

    lane = jax.lax.broadcasted_iota(jnp.int32, (1, HP), 1)          # [1,128]
    feat_mask = (lane < HIDDEN).astype(f32)        # real hidden lanes
    bias_lane = (lane == BIAS_LANE).astype(f32)    # key-pad bias carrier lane

    # per-head lane projectors, hoisted out of the layer/head loops
    q_masks, v_masks = [], []
    for hd in range(N_HEADS):
        in_head = (lane >= hd * HEAD_DIM) & (lane < (hd + 1) * HEAD_DIM)
        q_masks.append((in_head | (lane == BIAS_LANE)).astype(f32))
        v_masks.append(in_head.astype(f32))

    def layer_norm(x, g, b):
        # x has exact zeros in padded lanes; statistics over the real HIDDEN.
        mean = jnp.sum(x, axis=-1, keepdims=True) * (1.0 / HIDDEN)
        xc = (x - mean) * feat_mask
        var = jnp.sum(xc * xc, axis=-1, keepdims=True) * (1.0 / HIDDEN)
        return xc * jax.lax.rsqrt(var + LN_EPS) * g + b

    # ---- embedding: one-hot gather on the MXU + learned positional ----------
    ids = ids_ref[...]                                              # [mb,1] i32
    col = jax.lax.broadcasted_iota(jnp.int32, (mb, VP), 1)          # [mb,128]
    onehot_tok = (col == ids).astype(C)
    x = jnp.dot(onehot_tok, tok_ref[...], preferred_element_type=f32)
    # TODO(synk): ESM-2 uses rotary positions / ESM-1 offsets past PAD; a
    # plain learned absolute positional embedding is used here.
    x = x + pos_ref[...]                                            # [mb,HP]

    # key-padding bias folded into the score matmul via lane BIAS_LANE
    is_pad = (ids == PAD_IDX).astype(f32)                           # [mb,1]
    pad_bias_col = is_pad * NEG                                     # [mb,1]

    # block-diagonal sequence mask (only when a block holds >1 sequence)
    if seqs_per_block > 1:
        r = jax.lax.broadcasted_iota(jnp.int32, (mb, mb), 0)
        c = jax.lax.broadcasted_iota(jnp.int32, (mb, mb), 1)
        seq_bias = jnp.where((r // seq) == (c // seq), 0.0, NEG).astype(f32)
    else:
        seq_bias = None

    scale = 1.0 / math.sqrt(HEAD_DIM)
    for l in range(N_LAYERS):
        # ---------------- self attention (pre-LN) ----------------------------
        h = layer_norm(x, ln1_g_ref[l], ln1_b_ref[l])
        qkv = (jnp.dot(h.astype(C), wqkv_ref[l], preferred_element_type=f32)
               + bqkv_ref[l])                                       # [mb,3*HP]
        q = qkv[:, 0:HP]                                            # q[:,127]==1
        v = qkv[:, 2 * HP:3 * HP]
        kb = (qkv[:, HP:2 * HP] + pad_bias_col * bias_lane).astype(C)
        ctx = jnp.zeros((mb, HP), f32)
        for hd in range(N_HEADS):
            qh = (q * q_masks[hd]).astype(C)
            s = jax.lax.dot_general(qh, kb, (((1,), (1,)), ((), ())),
                                    preferred_element_type=f32) * scale
            if seq_bias is not None:
                s = s + seq_bias
            mx = jnp.max(s, axis=-1, keepdims=True)
            p = jnp.exp(s - mx)
            p = p * pl.reciprocal(jnp.sum(p, axis=-1, keepdims=True),
                                  approx=True)
            ctx = ctx + jnp.dot(p.astype(C), (v * v_masks[hd]).astype(C),
                                preferred_element_type=f32)
        x = (x + jnp.dot(ctx.astype(C), wo_ref[l], preferred_element_type=f32)
             + bo_ref[l])

        # ---------------- feed forward (pre-LN) -------------------------------
        h2 = layer_norm(x, ln2_g_ref[l], ln2_b_ref[l])
        f = (jnp.dot(h2.astype(C), w1_ref[l], preferred_element_type=f32)
             + b1_ref[l])
        # TODO(synk): ESM uses exact erf GELU; tanh approximation used here.
        f = jax.nn.gelu(f, approximate=True)
        x = (x + jnp.dot(f.astype(C), w2_ref[l], preferred_element_type=f32)
             + b2_ref[l])

    # ---- final LayerNorm + bias-free lm_head ---------------------------------
    hid = layer_norm(x, lnf_g_ref[...], lnf_b_ref[...])
    logits = jnp.dot(hid.astype(C), lm_w_ref[...], preferred_element_type=f32)
    logits_ref[...] = logits                                        # [mb,VP]

    # ---- masked cross entropy partial sums (ignore_index=-100) --------------
    labels = labels_ref[...]                                        # [mb,1] i32
    vmask = col < VOCAB
    masked = jnp.where(vmask, logits, NEG_BIG)
    mxl = jnp.max(masked, axis=-1, keepdims=True)
    lse = mxl + jnp.log(jnp.sum(jnp.exp(masked - mxl), axis=-1, keepdims=True))
    onehot_lab = (col == labels).astype(f32)                        # -100 -> all 0
    tgt = jnp.sum(logits * onehot_lab, axis=-1, keepdims=True)
    valid = (labels != -100).astype(f32)
    sum_nll = jnp.sum((lse - tgt) * valid)
    count = jnp.sum(valid)
    lane_v = jax.lax.broadcasted_iota(jnp.int32, (1, VP), 1)
    part = (sum_nll * (lane_v == 0).astype(f32)
            + count * (lane_v == 1).astype(f32))                    # [1,VP]
    loss_ref[...] = jnp.zeros((8, VP), f32) + part                  # lane-dense


# ---------------------------- parameters -------------------------------------
def init_params(key):
    keys = iter(jax.random.split(key, 8 + 8 * N_LAYERS))

    def nrm(shape):
        return (0.02 * jax.random.normal(next(keys), shape)).astype(jnp.float32)

    params = {
        "tok_emb": nrm((VOCAB, HIDDEN)),
        "pos_emb": nrm((MAX_SEQ, HIDDEN)),
        "lnf_g": jnp.ones((HIDDEN,), jnp.float32),
        "lnf_b": jnp.zeros((HIDDEN,), jnp.float32),
        # lm_head: torch.nn.Linear(hidden_size, vocab_size, bias=False)
        "lm_head_w": nrm((HIDDEN, VOCAB)),
        "layers": [],
    }
    for _ in range(N_LAYERS):
        params["layers"].append(dict(
            ln1_g=jnp.ones((HIDDEN,), jnp.float32),
            ln1_b=jnp.zeros((HIDDEN,), jnp.float32),
            wq=nrm((HIDDEN, HIDDEN)), bq=jnp.zeros((HIDDEN,), jnp.float32),
            wk=nrm((HIDDEN, HIDDEN)), bk=jnp.zeros((HIDDEN,), jnp.float32),
            wv=nrm((HIDDEN, HIDDEN)), bv=jnp.zeros((HIDDEN,), jnp.float32),
            wo=nrm((HIDDEN, HIDDEN)), bo=jnp.zeros((HIDDEN,), jnp.float32),
            ln2_g=jnp.ones((HIDDEN,), jnp.float32),
            ln2_b=jnp.zeros((HIDDEN,), jnp.float32),
            w1=nrm((HIDDEN, FFN)), b1=jnp.zeros((FFN,), jnp.float32),
            w2=nrm((FFN, HIDDEN)), b2=jnp.zeros((HIDDEN,), jnp.float32),
        ))
    return params


def _pad_to(a, shape, dtype=jnp.float32):
    out = jnp.zeros(shape, dtype)
    return out.at[tuple(slice(0, d) for d in a.shape)].set(a.astype(dtype))


def pack_params(params):
    """One-time weight transform: zero-pad feature dims to 128 lanes, convert
    matmul weights to bf16 (MXU-native), fuse q/k/v into one [H,3H] projection
    (with the constant-1 pad-bias lane baked into the q bias), and stack the
    per-layer tensors so the whole encoder runs in a single pallas_call."""
    layers = params["layers"]

    def qkv_w(l):
        w = jnp.zeros((HP, QKV_W), jnp.float32)
        w = w.at[:HIDDEN, 0:HIDDEN].set(l["wq"])
        w = w.at[:HIDDEN, HP:HP + HIDDEN].set(l["wk"])
        w = w.at[:HIDDEN, 2 * HP:2 * HP + HIDDEN].set(l["wv"])
        return w.astype(jnp.bfloat16)

    def qkv_b(l):
        b = jnp.zeros((1, QKV_W), jnp.float32)
        b = b.at[0, 0:HIDDEN].set(l["bq"])
        b = b.at[0, HP:HP + HIDDEN].set(l["bk"])
        b = b.at[0, 2 * HP:2 * HP + HIDDEN].set(l["bv"])
        b = b.at[0, BIAS_LANE].set(1.0)   # q "constant-1" lane for pad-key bias
        return b

    stack = lambda fn: jnp.stack([fn(l) for l in layers], axis=0)

    # mimic torch nn.Embedding(padding_idx=PAD_IDX): pad row embeds to zero
    tok = params["tok_emb"].at[PAD_IDX].set(0.0)

    return {
        "tok": _pad_to(tok, (VP, HP), jnp.bfloat16),
        "pos_full": _pad_to(params["pos_emb"], (MAX_SEQ, HP)),
        "lnf_g": _pad_to(params["lnf_g"].reshape(1, HIDDEN), (1, HP)),
        "lnf_b": _pad_to(params["lnf_b"].reshape(1, HIDDEN), (1, HP)),
        "lm_w": _pad_to(params["lm_head_w"], (HP, VP), jnp.bfloat16),
        "ln1_g": stack(lambda l: _pad_to(l["ln1_g"].reshape(1, HIDDEN), (1, HP))),
        "ln1_b": stack(lambda l: _pad_to(l["ln1_b"].reshape(1, HIDDEN), (1, HP))),
        "wqkv": stack(qkv_w),
        "bqkv": stack(qkv_b),
        "wo": stack(lambda l: _pad_to(l["wo"], (HP, HP), jnp.bfloat16)),
        "bo": stack(lambda l: _pad_to(l["bo"].reshape(1, HIDDEN), (1, HP))),
        "ln2_g": stack(lambda l: _pad_to(l["ln2_g"].reshape(1, HIDDEN), (1, HP))),
        "ln2_b": stack(lambda l: _pad_to(l["ln2_b"].reshape(1, HIDDEN), (1, HP))),
        "w1": stack(lambda l: _pad_to(l["w1"], (HP, FP), jnp.bfloat16)),
        "b1": stack(lambda l: _pad_to(l["b1"].reshape(1, FFN), (1, FP))),
        "w2": stack(lambda l: _pad_to(l["w2"], (FP, HP), jnp.bfloat16)),
        "b2": stack(lambda l: _pad_to(l["b2"].reshape(1, HIDDEN), (1, HP))),
    }


# ----------------------------- forward ---------------------------------------
def _const_spec(shape):
    # full array as one block, same block for every grid step -> VMEM-resident
    return pl.BlockSpec(shape, lambda i: (0,) * len(shape))


def _pick_seqs_per_block(batch, seq, requested):
    if requested is None:
        sb = max(1, min(batch, TARGET_ROWS // max(seq, 1)))
    else:
        sb = max(1, min(batch, requested))
    while batch % sb:                 # whole sequences per block, B divisible
        sb -= 1
    if (sb * seq) % 8 != 0 and sb != batch:
        sb = batch                    # fall back to one block (block == full)
    return sb


def esm_mlm_forward(packed, input_ids, attention_mask=None, labels=None,
                    seqs_per_block=None):
    """Mirrors ESMForMaskedLM.forward: returns (loss, logits).

    The reference forward accepts `attention_mask` but never passes it to the
    ESM model; ESM derives its key-padding mask internally from PAD_IDX, which
    is reproduced here (in-kernel, from input_ids).
    """
    del attention_mask
    B, S = input_ids.shape
    assert S <= MAX_SEQ
    M = B * S

    SB = _pick_seqs_per_block(B, S, seqs_per_block)   # sequences per grid step
    MB = SB * S                                       # rows per grid step
    NB = B // SB                                      # grid size (row blocks)

    ids2 = input_ids.reshape(M, 1).astype(jnp.int32)
    if labels is None:
        labels2 = jnp.full((M, 1), -100, jnp.int32)
    else:
        labels2 = labels.reshape(M, 1).astype(jnp.int32)

    # positional slab for one row block (same for every block; tiled once here
    # so the kernel does a plain add -- no in-kernel concatenate/reshape)
    pos_block = jnp.tile(packed["pos_full"][:S], (SB, 1))           # [MB, HP]

    operands = (ids2, labels2, pos_block,
                packed["tok"], packed["lnf_g"], packed["lnf_b"], packed["lm_w"],
                packed["ln1_g"], packed["ln1_b"], packed["wqkv"], packed["bqkv"],
                packed["wo"], packed["bo"],
                packed["ln2_g"], packed["ln2_b"],
                packed["w1"], packed["b1"], packed["w2"], packed["b2"])

    row_spec = pl.BlockSpec((MB, 1), lambda i: (i, 0))
    in_specs = [row_spec, row_spec] + [_const_spec(op.shape) for op in operands[2:]]

    logits_pad, loss_parts = pl.pallas_call(
        functools.partial(_fused_esm_kernel, seqs_per_block=SB, seq=S),
        out_shape=(jax.ShapeDtypeStruct((M, VP), jnp.float32),
                   jax.ShapeDtypeStruct((NB * 8, VP), jnp.float32)),
        grid=(NB,),
        in_specs=in_specs,
        out_specs=(pl.BlockSpec((MB, VP), lambda i: (i, 0)),
                   pl.BlockSpec((8, VP), lambda i: (i, 0))),
        compiler_params=pltpu.CompilerParams(
            dimension_semantics=("parallel",)),
    )(*operands)

    logits = logits_pad.reshape(B, S, VP)[:, :, :VOCAB]
    loss = None
    if labels is not None:
        parts = loss_parts.reshape(NB, 8, VP)
        total_nll = jnp.sum(parts[:, 0, 0])
        total_cnt = jnp.sum(parts[:, 0, 1])
        loss = total_nll / total_cnt   # matches torch mean w/ ignore_index
    return loss, logits


# ------------------------------- main -----------------------------------------
if __name__ == "__main__":
    key = jax.random.PRNGKey(0)
    pkey, ikey = jax.random.split(key)
    params = init_params(pkey)
    packed = pack_params(params)

    B, S = 2, 8
    input_ids = jax.random.randint(ikey, (B, S), 0, VOCAB, dtype=jnp.int32)
    attention_mask = jnp.ones((B, S), jnp.int32)
    labels = input_ids.at[:, ::2].set(-100)   # ignore half the positions

    # seqs_per_block=1 -> grid=(2,) "parallel" row-block axis so the tiny demo
    # also exercises the multi-block / multi-TensorCore path; the default
    # (None) packs ~TARGET_ROWS rows per step for MXU utilization.
    loss, logits = esm_mlm_forward(packed, input_ids, attention_mask, labels,
                                   seqs_per_block=1)
    jax.block_until_ready((loss, logits))

    assert logits.shape == (B, S, VOCAB) and logits.dtype == jnp.float32
    assert bool(jnp.isfinite(loss))
    assert bool(jnp.all(jnp.isfinite(logits)))
    print("KERNEL_OK")
</pallas_src>

<mosaic_0001>
module attributes {stable_mosaic.version = 11 : i64} {
  func.func @_fused_esm_kernel(%arg0: i32, %arg1: memref<8x1xi32, #tpu.memory_space<vmem>>, %arg2: memref<8x1xi32, #tpu.memory_space<vmem>>, %arg3: memref<8x128xf32, #tpu.memory_space<vmem>>, %arg4: memref<128x128xbf16, #tpu.memory_space<vmem>>, %arg5: memref<1x128xf32, #tpu.memory_space<vmem>>, %arg6: memref<1x128xf32, #tpu.memory_space<vmem>>, %arg7: memref<128x128xbf16, #tpu.memory_space<vmem>>, %arg8: memref<2x1x128xf32, #tpu.memory_space<vmem>>, %arg9: memref<2x1x128xf32, #tpu.memory_space<vmem>>, %arg10: memref<2x128x384xbf16, #tpu.memory_space<vmem>>, %arg11: memref<2x1x384xf32, #tpu.memory_space<vmem>>, %arg12: memref<2x128x128xbf16, #tpu.memory_space<vmem>>, %arg13: memref<2x1x128xf32, #tpu.memory_space<vmem>>, %arg14: memref<2x1x128xf32, #tpu.memory_space<vmem>>, %arg15: memref<2x1x128xf32, #tpu.memory_space<vmem>>, %arg16: memref<2x128x128xbf16, #tpu.memory_space<vmem>>, %arg17: memref<2x1x128xf32, #tpu.memory_space<vmem>>, %arg18: memref<2x128x128xbf16, #tpu.memory_space<vmem>>, %arg19: memref<2x1x128xf32, #tpu.memory_space<vmem>>, %arg20: memref<8x128xf32, #tpu.memory_space<vmem>>, %arg21: memref<8x128xf32, #tpu.memory_space<vmem>>) attributes {dimension_semantics = [#tpu.dimension_semantics<parallel>], iteration_bounds = array<i64: 2>, scalar_prefetch = 0 : i64, scratch_operands = 0 : i64, tpu.core_type = #tpu.core_type<tc>, window_params = [{transform_indices = @transform_0, window_bounds = array<i64: 8, 1>}, {transform_indices = @transform_1, window_bounds = array<i64: 8, 1>}, {pipeline_mode = #tpu.pipeline_mode<synchronous>, transform_indices = @transform_2, window_bounds = array<i64: 8, 128>}, {pipeline_mode = #tpu.pipeline_mode<synchronous>, transform_indices = @transform_3, window_bounds = array<i64: 128, 128>}, {pipeline_mode = #tpu.pipeline_mode<synchronous>, transform_indices = @transform_4, window_bounds = array<i64: 1, 128>}, {pipeline_mode = #tpu.pipeline_mode<synchronous>, transform_indices = @transform_5, window_bounds = array<i64: 1, 128>}, {pipeline_mode = #tpu.pipeline_mode<synchronous>, transform_indices = @transform_6, window_bounds = array<i64: 128, 128>}, {pipeline_mode = #tpu.pipeline_mode<synchronous>, transform_indices = @transform_7, window_bounds = array<i64: 2, 1, 128>}, {pipeline_mode = #tpu.pipeline_mode<synchronous>, transform_indices = @transform_8, window_bounds = array<i64: 2, 1, 128>}, {pipeline_mode = #tpu.pipeline_mode<synchronous>, transform_indices = @transform_9, window_bounds = array<i64: 2, 128, 384>}, {pipeline_mode = #tpu.pipeline_mode<synchronous>, transform_indices = @transform_10, window_bounds = array<i64: 2, 1, 384>}, {pipeline_mode = #tpu.pipeline_mode<synchronous>, transform_indices = @transform_11, window_bounds = array<i64: 2, 128, 128>}, {pipeline_mode = #tpu.pipeline_mode<synchronous>, transform_indices = @transform_12, window_bounds = array<i64: 2, 1, 128>}, {pipeline_mode = #tpu.pipeline_mode<synchronous>, transform_indices = @transform_13, window_bounds = array<i64: 2, 1, 128>}, {pipeline_mode = #tpu.pipeline_mode<synchronous>, transform_indices = @transform_14, window_bounds = array<i64: 2, 1, 128>}, {pipeline_mode = #tpu.pipeline_mode<synchronous>, transform_indices = @transform_15, window_bounds = array<i64: 2, 128, 128>}, {pipeline_mode = #tpu.pipeline_mode<synchronous>, transform_indices = @transform_16, window_bounds = array<i64: 2, 1, 128>}, {pipeline_mode = #tpu.pipeline_mode<synchronous>, transform_indices = @transform_17, window_bounds = array<i64: 2, 128, 128>}, {pipeline_mode = #tpu.pipeline_mode<synchronous>, transform_indices = @transform_18, window_bounds = array<i64: 2, 1, 128>}, {transform_indices = @transform_19, window_bounds = array<i64: 8, 128>}, {transform_indices = @transform_20, window_bounds = array<i64: 8, 128>}]} {
    %0 = tpu.iota {dimensions = array<i32: 1>} : vector<1x128xi32>
    %c32_i32 = arith.constant 32 : i32
    %1 = vector.broadcast %c32_i32 : i32 to vector<1x128xi32>
    %2 = arith.cmpi slt, %0, %1 : vector<1x128xi32>
    %3 = arith.extui %2 : vector<1x128xi1> to vector<1x128xi32>
    %4 = arith.sitofp %3 : vector<1x128xi32> to vector<1x128xf32>
    %c127_i32 = arith.constant 127 : i32
    %5 = vector.broadcast %c127_i32 : i32 to vector<1x128xi32>
    %6 = arith.cmpi eq, %0, %5 : vector<1x128xi32>
    %7 = arith.extui %6 : vector<1x128xi1> to vector<1x128xi32>
    %8 = arith.sitofp %7 : vector<1x128xi32> to vector<1x128xf32>
    %c0_i32 = arith.constant 0 : i32
    %9 = vector.broadcast %c0_i32 : i32 to vector<1x128xi32>
    %10 = arith.cmpi sge, %0, %9 : vector<1x128xi32>
    %c8_i32 = arith.constant 8 : i32
    %11 = vector.broadcast %c8_i32 : i32 to vector<1x128xi32>
    %12 = arith.cmpi slt, %0, %11 : vector<1x128xi32>
    %13 = arith.andi %10, %12 : vector<1x128xi1>
    %c127_i32_0 = arith.constant 127 : i32
    %14 = vector.broadcast %c127_i32_0 : i32 to vector<1x128xi32>
    %15 = arith.cmpi eq, %0, %14 : vector<1x128xi32>
    %16 = arith.ori %13, %15 : vector<1x128xi1>
    %17 = arith.extui %16 : vector<1x128xi1> to vector<1x128xi32>
    %18 = arith.sitofp %17 : vector<1x128xi32> to vector<1x128xf32>
    %19 = arith.extui %13 : vector<1x128xi1> to vector<1x128xi32>
    %20 = arith.sitofp %19 : vector<1x128xi32> to vector<1x128xf32>
    %c8_i32_1 = arith.constant 8 : i32
    %21 = vector.broadcast %c8_i32_1 : i32 to vector<1x128xi32>
    %22 = arith.cmpi sge, %0, %21 : vector<1x128xi32>
    %c16_i32 = arith.constant 16 : i32
    %23 = vector.broadcast %c16_i32 : i32 to vector<1x128xi32>
    %24 = arith.cmpi slt, %0, %23 : vector<1x128xi32>
    %25 = arith.andi %22, %24 : vector<1x128xi1>
    %c127_i32_2 = arith.constant 127 : i32
    %26 = vector.broadcast %c127_i32_2 : i32 to vector<1x128xi32>
    %27 = arith.cmpi eq, %0, %26 : vector<1x128xi32>
    %28 = arith.ori %25, %27 : vector<1x128xi1>
    %29 = arith.extui %28 : vector<1x128xi1> to vector<1x128xi32>
    %30 = arith.sitofp %29 : vector<1x128xi32> to vector<1x128xf32>
    %31 = arith.extui %25 : vector<1x128xi1> to vector<1x128xi32>
    %32 = arith.sitofp %31 : vector<1x128xi32> to vector<1x128xf32>
    %c16_i32_3 = arith.constant 16 : i32
    %33 = vector.broadcast %c16_i32_3 : i32 to vector<1x128xi32>
    %34 = arith.cmpi sge, %0, %33 : vector<1x128xi32>
    %c24_i32 = arith.constant 24 : i32
    %35 = vector.broadcast %c24_i32 : i32 to vector<1x128xi32>
    %36 = arith.cmpi slt, %0, %35 : vector<1x128xi32>
    %37 = arith.andi %34, %36 : vector<1x128xi1>
    %c127_i32_4 = arith.constant 127 : i32
    %38 = vector.broadcast %c127_i32_4 : i32 to vector<1x128xi32>
    %39 = arith.cmpi eq, %0, %38 : vector<1x128xi32>
    %40 = arith.ori %37, %39 : vector<1x128xi1>
    %41 = arith.extui %40 : vector<1x128xi1> to vector<1x128xi32>
    %42 = arith.sitofp %41 : vector<1x128xi32> to vector<1x128xf32>
    %43 = arith.extui %37 : vector<1x128xi1> to vector<1x128xi32>
    %44 = arith.sitofp %43 : vector<1x128xi32> to vector<1x128xf32>
    %c24_i32_5 = arith.constant 24 : i32
    %45 = vector.broadcast %c24_i32_5 : i32 to vector<1x128xi32>
    %46 = arith.cmpi sge, %0, %45 : vector<1x128xi32>
    %c32_i32_6 = arith.constant 32 : i32
    %47 = vector.broadcast %c32_i32_6 : i32 to vector<1x128xi32>
    %48 = arith.cmpi slt, %0, %47 : vector<1x128xi32>
    %49 = arith.andi %46, %48 : vector<1x128xi1>
    %c127_i32_7 = arith.constant 127 : i32
    %50 = vector.broadcast %c127_i32_7 : i32 to vector<1x128xi32>
    %51 = arith.cmpi eq, %0, %50 : vector<1x128xi32>
    %52 = arith.ori %49, %51 : vector<1x128xi1>
    %53 = arith.extui %52 : vector<1x128xi1> to vector<1x128xi32>
    %54 = arith.sitofp %53 : vector<1x128xi32> to vector<1x128xf32>
    %55 = arith.extui %49 : vector<1x128xi1> to vector<1x128xi32>
    %56 = arith.sitofp %55 : vector<1x128xi32> to vector<1x128xf32>
    %c0 = arith.constant 0 : index
    %c0_8 = arith.constant 0 : index
    %57 = vector.load %arg1[%c0, %c0_8] : memref<8x1xi32, #tpu.memory_space<vmem>>, vector<8x1xi32>
    %58 = tpu.iota {dimensions = array<i32: 1>} : vector<8x128xi32>
    %59 = vector.broadcast %57 : vector<8x1xi32> to vector<8x128xi32>
    %60 = arith.cmpi eq, %58, %59 : vector<8x128xi32>
    %61 = arith.extui %60 : vector<8x128xi1> to vector<8x128xi32>
    %62 = arith.sitofp %61 : vector<8x128xi32> to vector<8x128xf32>
    %63 = arith.truncf %62 : vector<8x128xf32> to vector<8x128xbf16>
    %c0_9 = arith.constant 0 : index
    %c0_10 = arith.constant 0 : index
    %64 = vector.load %arg4[%c0_9, %c0_10] : memref<128x128xbf16, #tpu.memory_space<vmem>>, vector<128x128xbf16>
    %cst = arith.constant dense<0.000000e+00> : vector<8x128xf32>
    %65 = tpu.matmul %63, %64, %cst {dimension_numbers = #tpu.dot_dimension_numbers<[1], [0], [0], [1], [0, 0, 1, 1], [], []>} : vector<8x128xbf16>, vector<128x128xbf16>, vector<8x128xf32> -> vector<8x128xf32>
    %c0_11 = arith.constant 0 : index
    %c0_12 = arith.constant 0 : index
    %66 = vector.load %arg3[%c0_11, %c0_12] : memref<8x128xf32, #tpu.memory_space<vmem>>, vector<8x128xf32>
    %67 = arith.addf %65, %66 : vector<8x128xf32>
    %c1_i32 = arith.constant 1 : i32
    %68 = vector.broadcast %c1_i32 : i32 to vector<8x1xi32>
    %69 = arith.cmpi eq, %57, %68 : vector<8x1xi32>
    %70 = arith.extui %69 : vector<8x1xi1> to vector<8x1xi32>
    %71 = arith.sitofp %70 : vector<8x1xi32> to vector<8x1xf32>
    %cst_13 = arith.constant -1.000000e+09 : f32
    %72 = vector.broadcast %cst_13 : f32 to vector<8x1xf32>
    %73 = arith.mulf %71, %72 : vector<8x1xf32>
    %c0_14 = arith.constant 0 : index
    %c0_15 = arith.constant 0 : index
    %c0_16 = arith.constant 0 : index
    %74 = vector.load %arg8[%c0_14, %c0_15, %c0_16] : memref<2x1x128xf32, #tpu.memory_space<vmem>>, vector<1x1x128xf32>
    %75 = vector.shape_cast %74 : vector<1x1x128xf32> to vector<1x128xf32>
    %c0_17 = arith.constant 0 : index
    %c0_18 = arith.constant 0 : index
    %c0_19 = arith.constant 0 : index
    %76 = vector.load %arg9[%c0_17, %c0_18, %c0_19] : memref<2x1x128xf32, #tpu.memory_space<vmem>>, vector<1x1x128xf32>
    %77 = vector.shape_cast %76 : vector<1x1x128xf32> to vector<1x128xf32>
    %cst_20 = arith.constant dense<0.000000e+00> : vector<8xf32>
    %78 = vector.multi_reduction <add>, %67, %cst_20 [1] : vector<8x128xf32> to vector<8xf32>
    %79 = vector.shape_cast %78 : vector<8xf32> to vector<8x1xf32>
    %cst_21 = arith.constant 3.125000e-02 : f32
    %80 = vector.broadcast %cst_21 : f32 to vector<8x1xf32>
    %81 = arith.mulf %79, %80 : vector<8x1xf32>
    %82 = vector.broadcast %81 : vector<8x1xf32> to vector<8x128xf32>
    %83 = arith.subf %67, %82 : vector<8x128xf32>
    %84 = vector.broadcast %4 : vector<1x128xf32> to vector<8x128xf32>
    %85 = arith.mulf %83, %84 : vector<8x128xf32>
    %86 = arith.mulf %85, %85 : vector<8x128xf32>
    %cst_22 = arith.constant dense<0.000000e+00> : vector<8xf32>
    %87 = vector.multi_reduction <add>, %86, %cst_22 [1] : vector<8x128xf32> to vector<8xf32>
    %88 = vector.shape_cast %87 : vector<8xf32> to vector<8x1xf32>
    %cst_23 = arith.constant 3.125000e-02 : f32
    %89 = vector.broadcast %cst_23 : f32 to vector<8x1xf32>
    %90 = arith.mulf %88, %89 : vector<8x1xf32>
    %cst_24 = arith.constant 9.99999974E-6 : f32
    %91 = vector.broadcast %cst_24 : f32 to vector<8x1xf32>
    %92 = arith.addf %90, %91 : vector<8x1xf32>
    %93 = math.rsqrt %92 : vector<8x1xf32>
    %94 = vector.broadcast %93 : vector<8x1xf32> to vector<8x128xf32>
    %95 = arith.mulf %85, %94 : vector<8x128xf32>
    %96 = vector.broadcast %75 : vector<1x128xf32> to vector<8x128xf32>
    %97 = arith.mulf %95, %96 : vector<8x128xf32>
    %98 = vector.broadcast %77 : vector<1x128xf32> to vector<8x128xf32>
    %99 = arith.addf %97, %98 : vector<8x128xf32>
    %100 = arith.truncf %99 : vector<8x128xf32> to vector<8x128xbf16>
    %c0_25 = arith.constant 0 : index
    %c0_26 = arith.constant 0 : index
    %c0_27 = arith.constant 0 : index
    %101 = vector.load %arg10[%c0_25, %c0_26, %c0_27] : memref<2x128x384xbf16, #tpu.memory_space<vmem>>, vector<1x128x384xbf16>
    %102 = vector.shape_cast %101 : vector<1x128x384xbf16> to vector<128x384xbf16>
    %cst_28 = arith.constant dense<0.000000e+00> : vector<8x384xf32>
    %103 = tpu.matmul %100, %102, %cst_28 {dimension_numbers = #tpu.dot_dimension_numbers<[1], [0], [0], [1], [0, 0, 1, 1], [], []>} : vector<8x128xbf16>, vector<128x384xbf16>, vector<8x384xf32> -> vector<8x384xf32>
    %c0_29 = arith.constant 0 : index
    %c0_30 = arith.constant 0 : index
    %c0_31 = arith.constant 0 : index
    %104 = vector.load %arg11[%c0_29, %c0_30, %c0_31] : memref<2x1x384xf32, #tpu.memory_space<vmem>>, vector<1x1x384xf32>
    %105 = vector.shape_cast %104 : vector<1x1x384xf32> to vector<1x384xf32>
    %106 = vector.broadcast %105 : vector<1x384xf32> to vector<8x384xf32>
    %107 = arith.addf %103, %106 : vector<8x384xf32>
    %108 = vector.extract_strided_slice %107 {offsets = [0, 0], sizes = [8, 128], strides = [1, 1]} : vector<8x384xf32> to vector<8x128xf32>
    %109 = vector.extract_strided_slice %107 {offsets = [0, 256], sizes = [8, 128], strides = [1, 1]} : vector<8x384xf32> to vector<8x128xf32>
    %110 = vector.extract_strided_slice %107 {offsets = [0, 128], sizes = [8, 128], strides = [1, 1]} : vector<8x384xf32> to vector<8x128xf32>
    %111 = vector.broadcast %73 : vector<8x1xf32> to vector<8x128xf32>
    %112 = vector.broadcast %8 : vector<1x128xf32> to vector<8x128xf32>
    %113 = arith.mulf %111, %112 : vector<8x128xf32>
    %114 = arith.addf %110, %113 : vector<8x128xf32>
    %115 = arith.truncf %114 : vector<8x128xf32> to vector<8x128xbf16>
    %cst_32 = arith.constant 0.000000e+00 : f32
    %116 = vector.broadcast %cst_32 : f32 to vector<8x128xf32>
    %117 = vector.broadcast %18 : vector<1x128xf32> to vector<8x128xf32>
    %118 = arith.mulf %108, %117 : vector<8x128xf32>
    %119 = arith.truncf %118 : vector<8x128xf32> to vector<8x128xbf16>
    %cst_33 = arith.constant dense<0.000000e+00> : vector<8x8xf32>
    %120 = tpu.matmul %119, %115, %cst_33 {dimension_numbers = #tpu.dot_dimension_numbers<[1], [1], [0], [0], [0, 0, 1, 0], [], []>} : vector<8x128xbf16>, vector<8x128xbf16>, vector<8x8xf32> -> vector<8x8xf32>
    %cst_34 = arith.constant 0.353553385 : f32
    %121 = vector.broadcast %cst_34 : f32 to vector<8x8xf32>
    %122 = arith.mulf %120, %121 : vector<8x8xf32>
    %cst_35 = arith.constant dense<0xFF800000> : vector<8xf32>
    %123 = vector.multi_reduction <maximumf>, %122, %cst_35 [1] : vector<8x8xf32> to vector<8xf32>
    %124 = vector.shape_cast %123 : vector<8xf32> to vector<8x1xf32>
    %125 = vector.broadcast %124 : vector<8x1xf32> to vector<8x8xf32>
    %126 = arith.subf %122, %125 : vector<8x8xf32>
    %127 = math.exp %126 : vector<8x8xf32>
    %cst_36 = arith.constant dense<0.000000e+00> : vector<8xf32>
    %128 = vector.multi_reduction <add>, %127, %cst_36 [1] : vector<8x8xf32> to vector<8xf32>
    %129 = vector.shape_cast %128 : vector<8xf32> to vector<8x1xf32>
    %130 = tpu.reciprocal %129 {approx = true} : vector<8x1xf32> -> vector<8x1xf32>
    %131 = vector.broadcast %130 : vector<8x1xf32> to vector<8x8xf32>
    %132 = arith.mulf %127, %131 : vector<8x8xf32>
    %133 = arith.truncf %132 : vector<8x8xf32> to vector<8x8xbf16>
    %134 = vector.broadcast %20 : vector<1x128xf32> to vector<8x128xf32>
    %135 = arith.mulf %109, %134 : vector<8x128xf32>
    %136 = arith.truncf %135 : vector<8x128xf32> to vector<8x128xbf16>
    %cst_37 = arith.constant dense<0.000000e+00> : vector<8x128xf32>
    %137 = tpu.matmul %133, %136, %cst_37 {dimension_numbers = #tpu.dot_dimension_numbers<[1], [0], [0], [1], [0, 0, 1, 1], [], []>} : vector<8x8xbf16>, vector<8x128xbf16>, vector<8x128xf32> -> vector<8x128xf32>
    %138 = arith.addf %116, %137 : vector<8x128xf32>
    %139 = vector.broadcast %30 : vector<1x128xf32> to vector<8x128xf32>
    %140 = arith.mulf %108, %139 : vector<8x128xf32>
    %141 = arith.truncf %140 : vector<8x128xf32> to vector<8x128xbf16>
    %cst_38 = arith.constant dense<0.000000e+00> : vector<8x8xf32>
    %142 = tpu.matmul %141, %115, %cst_38 {dimension_numbers = #tpu.dot_dimension_numbers<[1], [1], [0], [0], [0, 0, 1, 0], [], []>} : vector<8x128xbf16>, vector<8x128xbf16>, vector<8x8xf32> -> vector<8x8xf32>
    %cst_39 = arith.constant 0.353553385 : f32
    %143 = vector.broadcast %cst_39 : f32 to vector<8x8xf32>
    %144 = arith.mulf %142, %143 : vector<8x8xf32>
    %cst_40 = arith.constant dense<0xFF800000> : vector<8xf32>
    %145 = vector.multi_reduction <maximumf>, %144, %cst_40 [1] : vector<8x8xf32> to vector<8xf32>
    %146 = vector.shape_cast %145 : vector<8xf32> to vector<8x1xf32>
    %147 = vector.broadcast %146 : vector<8x1xf32> to vector<8x8xf32>
    %148 = arith.subf %144, %147 : vector<8x8xf32>
    %149 = math.exp %148 : vector<8x8xf32>
    %cst_41 = arith.constant dense<0.000000e+00> : vector<8xf32>
    %150 = vector.multi_reduction <add>, %149, %cst_41 [1] : vector<8x8xf32> to vector<8xf32>
    %151 = vector.shape_cast %150 : vector<8xf32> to vector<8x1xf32>
    %152 = tpu.reciprocal %151 {approx = true} : vector<8x1xf32> -> vector<8x1xf32>
    %153 = vector.broadcast %152 : vector<8x1xf32> to vector<8x8xf32>
    %154 = arith.mulf %149, %153 : vector<8x8xf32>
    %155 = arith.truncf %154 : vector<8x8xf32> to vector<8x8xbf16>
    %156 = vector.broadcast %32 : vector<1x128xf32> to vector<8x128xf32>
    %157 = arith.mulf %109, %156 : vector<8x128xf32>
    %158 = arith.truncf %157 : vector<8x128xf32> to vector<8x128xbf16>
    %cst_42 = arith.constant dense<0.000000e+00> : vector<8x128xf32>
    %159 = tpu.matmul %155, %158, %cst_42 {dimension_numbers = #tpu.dot_dimension_numbers<[1], [0], [0], [1], [0, 0, 1, 1], [], []>} : vector<8x8xbf16>, vector<8x128xbf16>, vector<8x128xf32> -> vector<8x128xf32>
    %160 = arith.addf %138, %159 : vector<8x128xf32>
    %161 = vector.broadcast %42 : vector<1x128xf32> to vector<8x128xf32>
    %162 = arith.mulf %108, %161 : vector<8x128xf32>
    %163 = arith.truncf %162 : vector<8x128xf32> to vector<8x128xbf16>
    %cst_43 = arith.constant dense<0.000000e+00> : vector<8x8xf32>
    %164 = tpu.matmul %163, %115, %cst_43 {dimension_numbers = #tpu.dot_dimension_numbers<[1], [1], [0], [0], [0, 0, 1, 0], [], []>} : vector<8x128xbf16>, vector<8x128xbf16>, vector<8x8xf32> -> vector<8x8xf32>
    %cst_44 = arith.constant 0.353553385 : f32
    %165 = vector.broadcast %cst_44 : f32 to vector<8x8xf32>
    %166 = arith.mulf %164, %165 : vector<8x8xf32>
    %cst_45 = arith.constant dense<0xFF800000> : vector<8xf32>
    %167 = vector.multi_reduction <maximumf>, %166, %cst_45 [1] : vector<8x8xf32> to vector<8xf32>
    %168 = vector.shape_cast %167 : vector<8xf32> to vector<8x1xf32>
    %169 = vector.broadcast %168 : vector<8x1xf32> to vector<8x8xf32>
    %170 = arith.subf %166, %169 : vector<8x8xf32>
    %171 = math.exp %170 : vector<8x8xf32>
    %cst_46 = arith.constant dense<0.000000e+00> : vector<8xf32>
    %172 = vector.multi_reduction <add>, %171, %cst_46 [1] : vector<8x8xf32> to vector<8xf32>
    %173 = vector.shape_cast %172 : vector<8xf32> to vector<8x1xf32>
    %174 = tpu.reciprocal %173 {approx = true} : vector<8x1xf32> -> vector<8x1xf32>
    %175 = vector.broadcast %174 : vector<8x1xf32> to vector<8x8xf32>
    %176 = arith.mulf %171, %175 : vector<8x8xf32>
    %177 = arith.truncf %176 : vector<8x8xf32> to vector<8x8xbf16>
    %178 = vector.broadcast %44 : vector<1x128xf32> to vector<8x128xf32>
    %179 = arith.mulf %109, %178 : vector<8x128xf32>
    %180 = arith.truncf %179 : vector<8x128xf32> to vector<8x128xbf16>
    %cst_47 = arith.constant dense<0.000000e+00> : vector<8x128xf32>
    %181 = tpu.matmul %177, %180, %cst_47 {dimension_numbers = #tpu.dot_dimension_numbers<[1], [0], [0], [1], [0, 0, 1, 1], [], []>} : vector<8x8xbf16>, vector<8x128xbf16>, vector<8x128xf32> -> vector<8x128xf32>
    %182 = arith.addf %160, %181 : vector<8x128xf32>
    %183 = vector.broadcast %54 : vector<1x128xf32> to vector<8x128xf32>
    %184 = arith.mulf %108, %183 : vector<8x128xf32>
    %185 = arith.truncf %184 : vector<8x128xf32> to vector<8x128xbf16>
    %cst_48 = arith.constant dense<0.000000e+00> : vector<8x8xf32>
    %186 = tpu.matmul %185, %115, %cst_48 {dimension_numbers = #tpu.dot_dimension_numbers<[1], [1], [0], [0], [0, 0, 1, 0], [], []>} : vector<8x128xbf16>, vector<8x128xbf16>, vector<8x8xf32> -> vector<8x8xf32>
    %cst_49 = arith.constant 0.353553385 : f32
    %187 = vector.broadcast %cst_49 : f32 to vector<8x8xf32>
    %188 = arith.mulf %186, %187 : vector<8x8xf32>
    %cst_50 = arith.constant dense<0xFF800000> : vector<8xf32>
    %189 = vector.multi_reduction <maximumf>, %188, %cst_50 [1] : vector<8x8xf32> to vector<8xf32>
    %190 = vector.shape_cast %189 : vector<8xf32> to vector<8x1xf32>
    %191 = vector.broadcast %190 : vector<8x1xf32> to vector<8x8xf32>
    %192 = arith.subf %188, %191 : vector<8x8xf32>
    %193 = math.exp %192 : vector<8x8xf32>
    %cst_51 = arith.constant dense<0.000000e+00> : vector<8xf32>
    %194 = vector.multi_reduction <add>, %193, %cst_51 [1] : vector<8x8xf32> to vector<8xf32>
    %195 = vector.shape_cast %194 : vector<8xf32> to vector<8x1xf32>
    %196 = tpu.reciprocal %195 {approx = true} : vector<8x1xf32> -> vector<8x1xf32>
    %197 = vector.broadcast %196 : vector<8x1xf32> to vector<8x8xf32>
    %198 = arith.mulf %193, %197 : vector<8x8xf32>
    %199 = arith.truncf %198 : vector<8x8xf32> to vector<8x8xbf16>
    %200 = vector.broadcast %56 : vector<1x128xf32> to vector<8x128xf32>
    %201 = arith.mulf %109, %200 : vector<8x128xf32>
    %202 = arith.truncf %201 : vector<8x128xf32> to vector<8x128xbf16>
    %cst_52 = arith.constant dense<0.000000e+00> : vector<8x128xf32>
    %203 = tpu.matmul %199, %202, %cst_52 {dimension_numbers = #tpu.dot_dimension_numbers<[1], [0], [0], [1], [0, 0, 1, 1], [], []>} : vector<8x8xbf16>, vector<8x128xbf16>, vector<8x128xf32> -> vector<8x128xf32>
    %204 = arith.addf %182, %203 : vector<8x128xf32>
    %205 = arith.truncf %204 : vector<8x128xf32> to vector<8x128xbf16>
    %c0_53 = arith.constant 0 : index
    %c0_54 = arith.constant 0 : index
    %c0_55 = arith.constant 0 : index
    %206 = vector.load %arg12[%c0_53, %c0_54, %c0_55] : memref<2x128x128xbf16, #tpu.memory_space<vmem>>, vector<1x128x128xbf16>
    %207 = vector.shape_cast %206 : vector<1x128x128xbf16> to vector<128x128xbf16>
    %cst_56 = arith.constant dense<0.000000e+00> : vector<8x128xf32>
    %208 = tpu.matmul %205, %207, %cst_56 {dimension_numbers = #tpu.dot_dimension_numbers<[1], [0], [0], [1], [0, 0, 1, 1], [], []>} : vector<8x128xbf16>, vector<128x128xbf16>, vector<8x128xf32> -> vector<8x128xf32>
    %209 = arith.addf %67, %208 : vector<8x128xf32>
    %c0_57 = arith.constant 0 : index
    %c0_58 = arith.constant 0 : index
    %c0_59 = arith.constant 0 : index
    %210 = vector.load %arg13[%c0_57, %c0_58, %c0_59] : memref<2x1x128xf32, #tpu.memory_space<vmem>>, vector<1x1x128xf32>
    %211 = vector.shape_cast %210 : vector<1x1x128xf32> to vector<1x128xf32>
    %212 = vector.broadcast %211 : vector<1x128xf32> to vector<8x128xf32>
    %213 = arith.addf %209, %212 : vector<8x128xf32>
    %c0_60 = arith.constant 0 : index
    %c0_61 = arith.constant 0 : index
    %c0_62 = arith.constant 0 : index
    %214 = vector.load %arg14[%c0_60, %c0_61, %c0_62] : memref<2x1x128xf32, #tpu.memory_space<vmem>>, vector<1x1x128xf32>
    %215 = vector.shape_cast %214 : vector<1x1x128xf32> to vector<1x128xf32>
    %c0_63 = arith.constant 0 : index
    %c0_64 = arith.constant 0 : index
    %c0_65 = arith.constant 0 : index
    %216 = vector.load %arg15[%c0_63, %c0_64, %c0_65] : memref<2x1x128xf32, #tpu.memory_space<vmem>>, vector<1x1x128xf32>
    %217 = vector.shape_cast %216 : vector<1x1x128xf32> to vector<1x128xf32>
    %cst_66 = arith.constant dense<0.000000e+00> : vector<8xf32>
    %218 = vector.multi_reduction <add>, %213, %cst_66 [1] : vector<8x128xf32> to vector<8xf32>
    %219 = vector.shape_cast %218 : vector<8xf32> to vector<8x1xf32>
    %cst_67 = arith.constant 3.125000e-02 : f32
    %220 = vector.broadcast %cst_67 : f32 to vector<8x1xf32>
    %221 = arith.mulf %219, %220 : vector<8x1xf32>
    %222 = vector.broadcast %221 : vector<8x1xf32> to vector<8x128xf32>
    %223 = arith.subf %213, %222 : vector<8x128xf32>
    %224 = vector.broadcast %4 : vector<1x128xf32> to vector<8x128xf32>
    %225 = arith.mulf %223, %224 : vector<8x128xf32>
    %226 = arith.mulf %225, %225 : vector<8x128xf32>
    %cst_68 = arith.constant dense<0.000000e+00> : vector<8xf32>
    %227 = vector.multi_reduction <add>, %226, %cst_68 [1] : vector<8x128xf32> to vector<8xf32>
    %228 = vector.shape_cast %227 : vector<8xf32> to vector<8x1xf32>
    %cst_69 = arith.constant 3.125000e-02 : f32
    %229 = vector.broadcast %cst_69 : f32 to vector<8x1xf32>
    %230 = arith.mulf %228, %229 : vector<8x1xf32>
    %cst_70 = arith.constant 9.99999974E-6 : f32
    %231 = vector.broadcast %cst_70 : f32 to vector<8x1xf32>
    %232 = arith.addf %230, %231 : vector<8x1xf32>
    %233 = math.rsqrt %232 : vector<8x1xf32>
    %234 = vector.broadcast %233 : vector<8x1xf32> to vector<8x128xf32>
    %235 = arith.mulf %225, %234 : vector<8x128xf32>
    %236 = vector.broadcast %215 : vector<1x128xf32> to vector<8x128xf32>
    %237 = arith.mulf %235, %236 : vector<8x128xf32>
    %238 = vector.broadcast %217 : vector<1x128xf32> to vector<8x128xf32>
    %239 = arith.addf %237, %238 : vector<8x128xf32>
    %240 = arith.truncf %239 : vector<8x128xf32> to vector<8x128xbf16>
    %c0_71 = arith.constant 0 : index
    %c0_72 = arith.constant 0 : index
    %c0_73 = arith.constant 0 : index
    %241 = vector.load %arg16[%c0_71, %c0_72, %c0_73] : memref<2x128x128xbf16, #tpu.memory_space<vmem>>, vector<1x128x128xbf16>
    %242 = vector.shape_cast %241 : vector<1x128x128xbf16> to vector<128x128xbf16>
    %cst_74 = arith.constant dense<0.000000e+00> : vector<8x128xf32>
    %243 = tpu.matmul %240, %242, %cst_74 {dimension_numbers = #tpu.dot_dimension_numbers<[1], [0], [0], [1], [0, 0, 1, 1], [], []>} : vector<8x128xbf16>, vector<128x128xbf16>, vector<8x128xf32> -> vector<8x128xf32>
    %c0_75 = arith.constant 0 : index
    %c0_76 = arith.constant 0 : index
    %c0_77 = arith.constant 0 : index
    %244 = vector.load %arg17[%c0_75, %c0_76, %c0_77] : memref<2x1x128xf32, #tpu.memory_space<vmem>>, vector<1x1x128xf32>
    %245 = vector.shape_cast %244 : vector<1x1x128xf32> to vector<1x128xf32>
    %246 = vector.broadcast %245 : vector<1x128xf32> to vector<8x128xf32>
    %247 = arith.addf %243, %246 : vector<8x128xf32>
    %248 = arith.mulf %247, %247 : vector<8x128xf32>
    %249 = arith.mulf %247, %248 : vector<8x128xf32>
    %cst_78 = arith.constant 4.471500e-02 : f32
    %250 = vector.broadcast %cst_78 : f32 to vector<8x128xf32>
    %251 = arith.mulf %250, %249 : vector<8x128xf32>
    %252 = arith.addf %247, %251 : vector<8x128xf32>
    %cst_79 = arith.constant 0.797884583 : f32
    %253 = vector.broadcast %cst_79 : f32 to vector<8x128xf32>
    %254 = arith.mulf %253, %252 : vector<8x128xf32>
    %255 = math.tanh %254 : vector<8x128xf32>
    %cst_80 = arith.constant 1.000000e+00 : f32
    %256 = vector.broadcast %cst_80 : f32 to vector<8x128xf32>
    %257 = arith.addf %256, %255 : vector<8x128xf32>
    %cst_81 = arith.constant 5.000000e-01 : f32
    %258 = vector.broadcast %cst_81 : f32 to vector<8x128xf32>
    %259 = arith.mulf %258, %257 : vector<8x128xf32>
    %260 = arith.mulf %247, %259 : vector<8x128xf32>
    %261 = arith.truncf %260 : vector<8x128xf32> to vector<8x128xbf16>
    %c0_82 = arith.constant 0 : index
    %c0_83 = arith.constant 0 : index
    %c0_84 = arith.constant 0 : index
    %262 = vector.load %arg18[%c0_82, %c0_83, %c0_84] : memref<2x128x128xbf16, #tpu.memory_space<vmem>>, vector<1x128x128xbf16>
    %263 = vector.shape_cast %262 : vector<1x128x128xbf16> to vector<128x128xbf16>
    %cst_85 = arith.constant dense<0.000000e+00> : vector<8x128xf32>
    %264 = tpu.matmul %261, %263, %cst_85 {dimension_numbers = #tpu.dot_dimension_numbers<[1], [0], [0], [1], [0, 0, 1, 1], [], []>} : vector<8x128xbf16>, vector<128x128xbf16>, vector<8x128xf32> -> vector<8x128xf32>
    %265 = arith.addf %213, %264 : vector<8x128xf32>
    %c0_86 = arith.constant 0 : index
    %c0_87 = arith.constant 0 : index
    %c0_88 = arith.constant 0 : index
    %266 = vector.load %arg19[%c0_86, %c0_87, %c0_88] : memref<2x1x128xf32, #tpu.memory_space<vmem>>, vector<1x1x128xf32>
    %267 = vector.shape_cast %266 : vector<1x1x128xf32> to vector<1x128xf32>
    %268 = vector.broadcast %267 : vector<1x128xf32> to vector<8x128xf32>
    %269 = arith.addf %265, %268 : vector<8x128xf32>
    %c1 = arith.constant 1 : index
    %c0_89 = arith.constant 0 : index
    %c0_90 = arith.constant 0 : index
    %270 = vector.load %arg8[%c1, %c0_89, %c0_90] : memref<2x1x128xf32, #tpu.memory_space<vmem>>, vector<1x1x128xf32>
    %271 = vector.shape_cast %270 : vector<1x1x128xf32> to vector<1x128xf32>
    %c1_91 = arith.constant 1 : index
    %c0_92 = arith.constant 0 : index
    %c0_93 = arith.constant 0 : index
    %272 = vector.load %arg9[%c1_91, %c0_92, %c0_93] : memref<2x1x128xf32, #tpu.memory_space<vmem>>, vector<1x1x128xf32>
    %273 = vector.shape_cast %272 : vector<1x1x128xf32> to vector<1x128xf32>
    %cst_94 = arith.constant dense<0.000000e+00> : vector<8xf32>
    %274 = vector.multi_reduction <add>, %269, %cst_94 [1] : vector<8x128xf32> to vector<8xf32>
    %275 = vector.shape_cast %274 : vector<8xf32> to vector<8x1xf32>
    %cst_95 = arith.constant 3.125000e-02 : f32
    %276 = vector.broadcast %cst_95 : f32 to vector<8x1xf32>
    %277 = arith.mulf %275, %276 : vector<8x1xf32>
    %278 = vector.broadcast %277 : vector<8x1xf32> to vector<8x128xf32>
    %279 = arith.subf %269, %278 : vector<8x128xf32>
    %280 = vector.broadcast %4 : vector<1x128xf32> to vector<8x128xf32>
    %281 = arith.mulf %279, %280 : vector<8x128xf32>
    %282 = arith.mulf %281, %281 : vector<8x128xf32>
    %cst_96 = arith.constant dense<0.000000e+00> : vector<8xf32>
    %283 = vector.multi_reduction <add>, %282, %cst_96 [1] : vector<8x128xf32> to vector<8xf32>
    %284 = vector.shape_cast %283 : vector<8xf32> to vector<8x1xf32>
    %cst_97 = arith.constant 3.125000e-02 : f32
    %285 = vector.broadcast %cst_97 : f32 to vector<8x1xf32>
    %286 = arith.mulf %284, %285 : vector<8x1xf32>
    %cst_98 = arith.constant 9.99999974E-6 : f32
    %287 = vector.broadcast %cst_98 : f32 to vector<8x1xf32>
    %288 = arith.addf %286, %287 : vector<8x1xf32>
    %289 = math.rsqrt %288 : vector<8x1xf32>
    %290 = vector.broadcast %289 : vector<8x1xf32> to vector<8x128xf32>
    %291 = arith.mulf %281, %290 : vector<8x128xf32>
    %292 = vector.broadcast %271 : vector<1x128xf32> to vector<8x128xf32>
    %293 = arith.mulf %291, %292 : vector<8x128xf32>
    %294 = vector.broadcast %273 : vector<1x128xf32> to vector<8x128xf32>
    %295 = arith.addf %293, %294 : vector<8x128xf32>
    %296 = arith.truncf %295 : vector<8x128xf32> to vector<8x128xbf16>
    %c1_99 = arith.constant 1 : index
    %c0_100 = arith.constant 0 : index
    %c0_101 = arith.constant 0 : index
    %297 = vector.load %arg10[%c1_99, %c0_100, %c0_101] : memref<2x128x384xbf16, #tpu.memory_space<vmem>>, vector<1x128x384xbf16>
    %298 = vector.shape_cast %297 : vector<1x128x384xbf16> to vector<128x384xbf16>
    %cst_102 = arith.constant dense<0.000000e+00> : vector<8x384xf32>
    %299 = tpu.matmul %296, %298, %cst_102 {dimension_numbers = #tpu.dot_dimension_numbers<[1], [0], [0], [1], [0, 0, 1, 1], [], []>} : vector<8x128xbf16>, vector<128x384xbf16>, vector<8x384xf32> -> vector<8x384xf32>
    %c1_103 = arith.constant 1 : index
    %c0_104 = arith.constant 0 : index
    %c0_105 = arith.constant 0 : index
    %300 = vector.load %arg11[%c1_103, %c0_104, %c0_105] : memref<2x1x384xf32, #tpu.memory_space<vmem>>, vector<1x1x384xf32>
    %301 = vector.shape_cast %300 : vector<1x1x384xf32> to vector<1x384xf32>
    %302 = vector.broadcast %301 : vector<1x384xf32> to vector<8x384xf32>
    %303 = arith.addf %299, %302 : vector<8x384xf32>
    %304 = vector.extract_strided_slice %303 {offsets = [0, 0], sizes = [8, 128], strides = [1, 1]} : vector<8x384xf32> to vector<8x128xf32>
    %305 = vector.extract_strided_slice %303 {offsets = [0, 256], sizes = [8, 128], strides = [1, 1]} : vector<8x384xf32> to vector<8x128xf32>
    %306 = vector.extract_strided_slice %303 {offsets = [0, 128], sizes = [8, 128], strides = [1, 1]} : vector<8x384xf32> to vector<8x128xf32>
    %307 = vector.broadcast %73 : vector<8x1xf32> to vector<8x128xf32>
    %308 = vector.broadcast %8 : vector<1x128xf32> to vector<8x128xf32>
    %309 = arith.mulf %307, %308 : vector<8x128xf32>
    %310 = arith.addf %306, %309 : vector<8x128xf32>
    %311 = arith.truncf %310 : vector<8x128xf32> to vector<8x128xbf16>
    %cst_106 = arith.constant 0.000000e+00 : f32
    %312 = vector.broadcast %cst_106 : f32 to vector<8x128xf32>
    %313 = vector.broadcast %18 : vector<1x128xf32> to vector<8x128xf32>
    %314 = arith.mulf %304, %313 : vector<8x128xf32>
    %315 = arith.truncf %314 : vector<8x128xf32> to vector<8x128xbf16>
    %cst_107 = arith.constant dense<0.000000e+00> : vector<8x8xf32>
    %316 = tpu.matmul %315, %311, %cst_107 {dimension_numbers = #tpu.dot_dimension_numbers<[1], [1], [0], [0], [0, 0, 1, 0], [], []>} : vector<8x128xbf16>, vector<8x128xbf16>, vector<8x8xf32> -> vector<8x8xf32>
    %cst_108 = arith.constant 0.353553385 : f32
    %317 = vector.broadcast %cst_108 : f32 to vector<8x8xf32>
    %318 = arith.mulf %316, %317 : vector<8x8xf32>
    %cst_109 = arith.constant dense<0xFF800000> : vector<8xf32>
    %319 = vector.multi_reduction <maximumf>, %318, %cst_109 [1] : vector<8x8xf32> to vector<8xf32>
    %320 = vector.shape_cast %319 : vector<8xf32> to vector<8x1xf32>
    %321 = vector.broadcast %320 : vector<8x1xf32> to vector<8x8xf32>
    %322 = arith.subf %318, %321 : vector<8x8xf32>
    %323 = math.exp %322 : vector<8x8xf32>
    %cst_110 = arith.constant dense<0.000000e+00> : vector<8xf32>
    %324 = vector.multi_reduction <add>, %323, %cst_110 [1] : vector<8x8xf32> to vector<8xf32>
    %325 = vector.shape_cast %324 : vector<8xf32> to vector<8x1xf32>
    %326 = tpu.reciprocal %325 {approx = true} : vector<8x1xf32> -> vector<8x1xf32>
    %327 = vector.broadcast %326 : vector<8x1xf32> to vector<8x8xf32>
    %328 = arith.mulf %323, %327 : vector<8x8xf32>
    %329 = arith.truncf %328 : vector<8x8xf32> to vector<8x8xbf16>
    %330 = vector.broadcast %20 : vector<1x128xf32> to vector<8x128xf32>
    %331 = arith.mulf %305, %330 : vector<8x128xf32>
    %332 = arith.truncf %331 : vector<8x128xf32> to vector<8x128xbf16>
    %cst_111 = arith.constant dense<0.000000e+00> : vector<8x128xf32>
    %333 = tpu.matmul %329, %332, %cst_111 {dimension_numbers = #tpu.dot_dimension_numbers<[1], [0], [0], [1], [0, 0, 1, 1], [], []>} : vector<8x8xbf16>, vector<8x128xbf16>, vector<8x128xf32> -> vector<8x128xf32>
    %334 = arith.addf %312, %333 : vector<8x128xf32>
    %335 = vector.broadcast %30 : vector<1x128xf32> to vector<8x128xf32>
    %336 = arith.mulf %304, %335 : vector<8x128xf32>
    %337 = arith.truncf %336 : vector<8x128xf32> to vector<8x128xbf16>
    %cst_112 = arith.constant dense<0.000000e+00> : vector<8x8xf32>
    %338 = tpu.matmul %337, %311, %cst_112 {dimension_numbers = #tpu.dot_dimension_numbers<[1], [1], [0], [0], [0, 0, 1, 0], [], []>} : vector<8x128xbf16>, vector<8x128xbf16>, vector<8x8xf32> -> vector<8x8xf32>
    %cst_113 = arith.constant 0.353553385 : f32
    %339 = vector.broadcast %cst_113 : f32 to vector<8x8xf32>
    %340 = arith.mulf %338, %339 : vector<8x8xf32>
    %cst_114 = arith.constant dense<0xFF800000> : vector<8xf32>
    %341 = vector.multi_reduction <maximumf>, %340, %cst_114 [1] : vector<8x8xf32> to vector<8xf32>
    %342 = vector.shape_cast %341 : vector<8xf32> to vector<8x1xf32>
    %343 = vector.broadcast %342 : vector<8x1xf32> to vector<8x8xf32>
    %344 = arith.subf %340, %343 : vector<8x8xf32>
    %345 = math.exp %344 : vector<8x8xf32>
    %cst_115 = arith.constant dense<0.000000e+00> : vector<8xf32>
    %346 = vector.multi_reduction <add>, %345, %cst_115 [1] : vector<8x8xf32> to vector<8xf32>
    %347 = vector.shape_cast %346 : vector<8xf32> to vector<8x1xf32>
    %348 = tpu.reciprocal %347 {approx = true} : vector<8x1xf32> -> vector<8x1xf32>
    %349 = vector.broadcast %348 : vector<8x1xf32> to vector<8x8xf32>
    %350 = arith.mulf %345, %349 : vector<8x8xf32>
    %351 = arith.truncf %350 : vector<8x8xf32> to vector<8x8xbf16>
    %352 = vector.broadcast %32 : vector<1x128xf32> to vector<8x128xf32>
    %353 = arith.mulf %305, %352 : vector<8x128xf32>
    %354 = arith.truncf %353 : vector<8x128xf32> to vector<8x128xbf16>
    %cst_116 = arith.constant dense<0.000000e+00> : vector<8x128xf32>
    %355 = tpu.matmul %351, %354, %cst_116 {dimension_numbers = #tpu.dot_dimension_numbers<[1], [0], [0], [1], [0, 0, 1, 1], [], []>} : vector<8x8xbf16>, vector<8x128xbf16>, vector<8x128xf32> -> vector<8x128xf32>
    %356 = arith.addf %334, %355 : vector<8x128xf32>
    %357 = vector.broadcast %42 : vector<1x128xf32> to vector<8x128xf32>
    %358 = arith.mulf %304, %357 : vector<8x128xf32>
    %359 = arith.truncf %358 : vector<8x128xf32> to vector<8x128xbf16>
    %cst_117 = arith.constant dense<0.000000e+00> : vector<8x8xf32>
    %360 = tpu.matmul %359, %311, %cst_117 {dimension_numbers = #tpu.dot_dimension_numbers<[1], [1], [0], [0], [0, 0, 1, 0], [], []>} : vector<8x128xbf16>, vector<8x128xbf16>, vector<8x8xf32> -> vector<8x8xf32>
    %cst_118 = arith.constant 0.353553385 : f32
    %361 = vector.broadcast %cst_118 : f32 to vector<8x8xf32>
    %362 = arith.mulf %360, %361 : vector<8x8xf32>
    %cst_119 = arith.constant dense<0xFF800000> : vector<8xf32>
    %363 = vector.multi_reduction <maximumf>, %362, %cst_119 [1] : vector<8x8xf32> to vector<8xf32>
    %364 = vector.shape_cast %363 : vector<8xf32> to vector<8x1xf32>
    %365 = vector.broadcast %364 : vector<8x1xf32> to vector<8x8xf32>
    %366 = arith.subf %362, %365 : vector<8x8xf32>
    %367 = math.exp %366 : vector<8x8xf32>
    %cst_120 = arith.constant dense<0.000000e+00> : vector<8xf32>
    %368 = vector.multi_reduction <add>, %367, %cst_120 [1] : vector<8x8xf32> to vector<8xf32>
    %369 = vector.shape_cast %368 : vector<8xf32> to vector<8x1xf32>
    %370 = tpu.reciprocal %369 {approx = true} : vector<8x1xf32> -> vector<8x1xf32>
    %371 = vector.broadcast %370 : vector<8x1xf32> to vector<8x8xf32>
    %372 = arith.mulf %367, %371 : vector<8x8xf32>
    %373 = arith.truncf %372 : vector<8x8xf32> to vector<8x8xbf16>
    %374 = vector.broadcast %44 : vector<1x128xf32> to vector<8x128xf32>
    %375 = arith.mulf %305, %374 : vector<8x128xf32>
    %376 = arith.truncf %375 : vector<8x128xf32> to vector<8x128xbf16>
    %cst_121 = arith.constant dense<0.000000e+00> : vector<8x128xf32>
    %377 = tpu.matmul %373, %376, %cst_121 {dimension_numbers = #tpu.dot_dimension_numbers<[1], [0], [0], [1], [0, 0, 1, 1], [], []>} : vector<8x8xbf16>, vector<8x128xbf16>, vector<8x128xf32> -> vector<8x128xf32>
    %378 = arith.addf %356, %377 : vector<8x128xf32>
    %379 = vector.broadcast %54 : vector<1x128xf32> to vector<8x128xf32>
    %380 = arith.mulf %304, %379 : vector<8x128xf32>
    %381 = arith.truncf %380 : vector<8x128xf32> to vector<8x128xbf16>
    %cst_122 = arith.constant dense<0.000000e+00> : vector<8x8xf32>
    %382 = tpu.matmul %381, %311, %cst_122 {dimension_numbers = #tpu.dot_dimension_numbers<[1], [1], [0], [0], [0, 0, 1, 0], [], []>} : vector<8x128xbf16>, vector<8x128xbf16>, vector<8x8xf32> -> vector<8x8xf32>
    %cst_123 = arith.constant 0.353553385 : f32
    %383 = vector.broadcast %cst_123 : f32 to vector<8x8xf32>
    %384 = arith.mulf %382, %383 : vector<8x8xf32>
    %cst_124 = arith.constant dense<0xFF800000> : vector<8xf32>
    %385 = vector.multi_reduction <maximumf>, %384, %cst_124 [1] : vector<8x8xf32> to vector<8xf32>
    %386 = vector.shape_cast %385 : vector<8xf32> to vector<8x1xf32>
    %387 = vector.broadcast %386 : vector<8x1xf32> to vector<8x8xf32>
    %388 = arith.subf %384, %387 : vector<8x8xf32>
    %389 = math.exp %388 : vector<8x8xf32>
    %cst_125 = arith.constant dense<0.000000e+00> : vector<8xf32>
    %390 = vector.multi_reduction <add>, %389, %cst_125 [1] : vector<8x8xf32> to vector<8xf32>
    %391 = vector.shape_cast %390 : vector<8xf32> to vector<8x1xf32>
    %392 = tpu.reciprocal %391 {approx = true} : vector<8x1xf32> -> vector<8x1xf32>
    %393 = vector.broadcast %392 : vector<8x1xf32> to vector<8x8xf32>
    %394 = arith.mulf %389, %393 : vector<8x8xf32>
    %395 = arith.truncf %394 : vector<8x8xf32> to vector<8x8xbf16>
    %396 = vector.broadcast %56 : vector<1x128xf32> to vector<8x128xf32>
    %397 = arith.mulf %305, %396 : vector<8x128xf32>
    %398 = arith.truncf %397 : vector<8x128xf32> to vector<8x128xbf16>
    %cst_126 = arith.constant dense<0.000000e+00> : vector<8x128xf32>
    %399 = tpu.matmul %395, %398, %cst_126 {dimension_numbers = #tpu.dot_dimension_numbers<[1], [0], [0], [1], [0, 0, 1, 1], [], []>} : vector<8x8xbf16>, vector<8x128xbf16>, vector<8x128xf32> -> vector<8x128xf32>
    %400 = arith.addf %378, %399 : vector<8x128xf32>
    %401 = arith.truncf %400 : vector<8x128xf32> to vector<8x128xbf16>
    %c1_127 = arith.constant 1 : index
    %c0_128 = arith.constant 0 : index
    %c0_129 = arith.constant 0 : index
    %402 = vector.load %arg12[%c1_127, %c0_128, %c0_129] : memref<2x128x128xbf16, #tpu.memory_space<vmem>>, vector<1x128x128xbf16>
    %403 = vector.shape_cast %402 : vector<1x128x128xbf16> to vector<128x128xbf16>
    %cst_130 = arith.constant dense<0.000000e+00> : vector<8x128xf32>
    %404 = tpu.matmul %401, %403, %cst_130 {dimension_numbers = #tpu.dot_dimension_numbers<[1], [0], [0], [1], [0, 0, 1, 1], [], []>} : vector<8x128xbf16>, vector<128x128xbf16>, vector<8x128xf32> -> vector<8x128xf32>
    %405 = arith.addf %269, %404 : vector<8x128xf32>
    %c1_131 = arith.constant 1 : index
    %c0_132 = arith.constant 0 : index
    %c0_133 = arith.constant 0 : index
    %406 = vector.load %arg13[%c1_131, %c0_132, %c0_133] : memref<2x1x128xf32, #tpu.memory_space<vmem>>, vector<1x1x128xf32>
    %407 = vector.shape_cast %406 : vector<1x1x128xf32> to vector<1x128xf32>
    %408 = vector.broadcast %407 : vector<1x128xf32> to vector<8x128xf32>
    %409 = arith.addf %405, %408 : vector<8x128xf32>
    %c1_134 = arith.constant 1 : index
    %c0_135 = arith.constant 0 : index
    %c0_136 = arith.constant 0 : index
    %410 = vector.load %arg14[%c1_134, %c0_135, %c0_136] : memref<2x1x128xf32, #tpu.memory_space<vmem>>, vector<1x1x128xf32>
    %411 = vector.shape_cast %410 : vector<1x1x128xf32> to vector<1x128xf32>
    %c1_137 = arith.constant 1 : index
    %c0_138 = arith.constant 0 : index
    %c0_139 = arith.constant 0 : index
    %412 = vector.load %arg15[%c1_137, %c0_138, %c0_139] : memref<2x1x128xf32, #tpu.memory_space<vmem>>, vector<1x1x128xf32>
    %413 = vector.shape_cast %412 : vector<1x1x128xf32> to vector<1x128xf32>
    %cst_140 = arith.constant dense<0.000000e+00> : vector<8xf32>
    %414 = vector.multi_reduction <add>, %409, %cst_140 [1] : vector<8x128xf32> to vector<8xf32>
    %415 = vector.shape_cast %414 : vector<8xf32> to vector<8x1xf32>
    %cst_141 = arith.constant 3.125000e-02 : f32
    %416 = vector.broadcast %cst_141 : f32 to vector<8x1xf32>
    %417 = arith.mulf %415, %416 : vector<8x1xf32>
    %418 = vector.broadcast %417 : vector<8x1xf32> to vector<8x128xf32>
    %419 = arith.subf %409, %418 : vector<8x128xf32>
    %420 = vector.broadcast %4 : vector<1x128xf32> to vector<8x128xf32>
    %421 = arith.mulf %419, %420 : vector<8x128xf32>
    %422 = arith.mulf %421, %421 : vector<8x128xf32>
    %cst_142 = arith.constant dense<0.000000e+00> : vector<8xf32>
    %423 = vector.multi_reduction <add>, %422, %cst_142 [1] : vector<8x128xf32> to vector<8xf32>
    %424 = vector.shape_cast %423 : vector<8xf32> to vector<8x1xf32>
    %cst_143 = arith.constant 3.125000e-02 : f32
    %425 = vector.broadcast %cst_143 : f32 to vector<8x1xf32>
    %426 = arith.mulf %424, %425 : vector<8x1xf32>
    %cst_144 = arith.constant 9.99999974E-6 : f32
    %427 = vector.broadcast %cst_144 : f32 to vector<8x1xf32>
    %428 = arith.addf %426, %427 : vector<8x1xf32>
    %429 = math.rsqrt %428 : vector<8x1xf32>
    %430 = vector.broadcast %429 : vector<8x1xf32> to vector<8x128xf32>
    %431 = arith.mulf %421, %430 : vector<8x128xf32>
    %432 = vector.broadcast %411 : vector<1x128xf32> to vector<8x128xf32>
    %433 = arith.mulf %431, %432 : vector<8x128xf32>
    %434 = vector.broadcast %413 : vector<1x128xf32> to vector<8x128xf32>
    %435 = arith.addf %433, %434 : vector<8x128xf32>
    %436 = arith.truncf %435 : vector<8x128xf32> to vector<8x128xbf16>
    %c1_145 = arith.constant 1 : index
    %c0_146 = arith.constant 0 : index
    %c0_147 = arith.constant 0 : index
    %437 = vector.load %arg16[%c1_145, %c0_146, %c0_147] : memref<2x128x128xbf16, #tpu.memory_space<vmem>>, vector<1x128x128xbf16>
    %438 = vector.shape_cast %437 : vector<1x128x128xbf16> to vector<128x128xbf16>
    %cst_148 = arith.constant dense<0.000000e+00> : vector<8x128xf32>
    %439 = tpu.matmul %436, %438, %cst_148 {dimension_numbers = #tpu.dot_dimension_numbers<[1], [0], [0], [1], [0, 0, 1, 1], [], []>} : vector<8x128xbf16>, vector<128x128xbf16>, vector<8x128xf32> -> vector<8x128xf32>
    %c1_149 = arith.constant 1 : index
    %c0_150 = arith.constant 0 : index
    %c0_151 = arith.constant 0 : index
    %440 = vector.load %arg17[%c1_149, %c0_150, %c0_151] : memref<2x1x128xf32, #tpu.memory_space<vmem>>, vector<1x1x128xf32>
    %441 = vector.shape_cast %440 : vector<1x1x128xf32> to vector<1x128xf32>
    %442 = vector.broadcast %441 : vector<1x128xf32> to vector<8x128xf32>
    %443 = arith.addf %439, %442 : vector<8x128xf32>
    %444 = arith.mulf %443, %443 : vector<8x128xf32>
    %445 = arith.mulf %443, %444 : vector<8x128xf32>
    %cst_152 = arith.constant 4.471500e-02 : f32
    %446 = vector.broadcast %cst_152 : f32 to vector<8x128xf32>
    %447 = arith.mulf %446, %445 : vector<8x128xf32>
    %448 = arith.addf %443, %447 : vector<8x128xf32>
    %cst_153 = arith.constant 0.797884583 : f32
    %449 = vector.broadcast %cst_153 : f32 to vector<8x128xf32>
    %450 = arith.mulf %449, %448 : vector<8x128xf32>
    %451 = math.tanh %450 : vector<8x128xf32>
    %cst_154 = arith.constant 1.000000e+00 : f32
    %452 = vector.broadcast %cst_154 : f32 to vector<8x128xf32>
    %453 = arith.addf %452, %451 : vector<8x128xf32>
    %cst_155 = arith.constant 5.000000e-01 : f32
    %454 = vector.broadcast %cst_155 : f32 to vector<8x128xf32>
    %455 = arith.mulf %454, %453 : vector<8x128xf32>
    %456 = arith.mulf %443, %455 : vector<8x128xf32>
    %457 = arith.truncf %456 : vector<8x128xf32> to vector<8x128xbf16>
    %c1_156 = arith.constant 1 : index
    %c0_157 = arith.constant 0 : index
    %c0_158 = arith.constant 0 : index
    %458 = vector.load %arg18[%c1_156, %c0_157, %c0_158] : memref<2x128x128xbf16, #tpu.memory_space<vmem>>, vector<1x128x128xbf16>
    %459 = vector.shape_cast %458 : vector<1x128x128xbf16> to vector<128x128xbf16>
    %cst_159 = arith.constant dense<0.000000e+00> : vector<8x128xf32>
    %460 = tpu.matmul %457, %459, %cst_159 {dimension_numbers = #tpu.dot_dimension_numbers<[1], [0], [0], [1], [0, 0, 1, 1], [], []>} : vector<8x128xbf16>, vector<128x128xbf16>, vector<8x128xf32> -> vector<8x128xf32>
    %461 = arith.addf %409, %460 : vector<8x128xf32>
    %c1_160 = arith.constant 1 : index
    %c0_161 = arith.constant 0 : index
    %c0_162 = arith.constant 0 : index
    %462 = vector.load %arg19[%c1_160, %c0_161, %c0_162] : memref<2x1x128xf32, #tpu.memory_space<vmem>>, vector<1x1x128xf32>
    %463 = vector.shape_cast %462 : vector<1x1x128xf32> to vector<1x128xf32>
    %464 = vector.broadcast %463 : vector<1x128xf32> to vector<8x128xf32>
    %465 = arith.addf %461, %464 : vector<8x128xf32>
    %c0_163 = arith.constant 0 : index
    %c0_164 = arith.constant 0 : index
    %466 = vector.load %arg5[%c0_163, %c0_164] : memref<1x128xf32, #tpu.memory_space<vmem>>, vector<1x128xf32>
    %c0_165 = arith.constant 0 : index
    %c0_166 = arith.constant 0 : index
    %467 = vector.load %arg6[%c0_165, %c0_166] : memref<1x128xf32, #tpu.memory_space<vmem>>, vector<1x128xf32>
    %cst_167 = arith.constant dense<0.000000e+00> : vector<8xf32>
    %468 = vector.multi_reduction <add>, %465, %cst_167 [1] : vector<8x128xf32> to vector<8xf32>
    %469 = vector.shape_cast %468 : vector<8xf32> to vector<8x1xf32>
    %cst_168 = arith.constant 3.125000e-02 : f32
    %470 = vector.broadcast %cst_168 : f32 to vector<8x1xf32>
    %471 = arith.mulf %469, %470 : vector<8x1xf32>
    %472 = vector.broadcast %471 : vector<8x1xf32> to vector<8x128xf32>
    %473 = arith.subf %465, %472 : vector<8x128xf32>
    %474 = vector.broadcast %4 : vector<1x128xf32> to vector<8x128xf32>
    %475 = arith.mulf %473, %474 : vector<8x128xf32>
    %476 = arith.mulf %475, %475 : vector<8x128xf32>
    %cst_169 = arith.constant dense<0.000000e+00> : vector<8xf32>
    %477 = vector.multi_reduction <add>, %476, %cst_169 [1] : vector<8x128xf32> to vector<8xf32>
    %478 = vector.shape_cast %477 : vector<8xf32> to vector<8x1xf32>
    %cst_170 = arith.constant 3.125000e-02 : f32
    %479 = vector.broadcast %cst_170 : f32 to vector<8x1xf32>
    %480 = arith.mulf %478, %479 : vector<8x1xf32>
    %cst_171 = arith.constant 9.99999974E-6 : f32
    %481 = vector.broadcast %cst_171 : f32 to vector<8x1xf32>
    %482 = arith.addf %480, %481 : vector<8x1xf32>
    %483 = math.rsqrt %482 : vector<8x1xf32>
    %484 = vector.broadcast %483 : vector<8x1xf32> to vector<8x128xf32>
    %485 = arith.mulf %475, %484 : vector<8x128xf32>
    %486 = vector.broadcast %466 : vector<1x128xf32> to vector<8x128xf32>
    %487 = arith.mulf %485, %486 : vector<8x128xf32>
    %488 = vector.broadcast %467 : vector<1x128xf32> to vector<8x128xf32>
    %489 = arith.addf %487, %488 : vector<8x128xf32>
    %490 = arith.truncf %489 : vector<8x128xf32> to vector<8x128xbf16>
    %c0_172 = arith.constant 0 : index
    %c0_173 = arith.constant 0 : index
    %491 = vector.load %arg7[%c0_172, %c0_173] : memref<128x128xbf16, #tpu.memory_space<vmem>>, vector<128x128xbf16>
    %cst_174 = arith.constant dense<0.000000e+00> : vector<8x128xf32>
    %492 = tpu.matmul %490, %491, %cst_174 {dimension_numbers = #tpu.dot_dimension_numbers<[1], [0], [0], [1], [0, 0, 1, 1], [], []>} : vector<8x128xbf16>, vector<128x128xbf16>, vector<8x128xf32> -> vector<8x128xf32>
    %c0_175 = arith.constant 0 : index
    %c0_176 = arith.constant 0 : index
    %493 = vector.load %arg20[%c0_175, %c0_176] : memref<8x128xf32, #tpu.memory_space<vmem>>, vector<8x128xf32>
    tpu.vector_store %arg20[%c0_175, %c0_176], %492 {strides = array<i32>} : memref<8x128xf32, #tpu.memory_space<vmem>>, vector<8x128xf32>,
    %c0_177 = arith.constant 0 : index
    %c0_178 = arith.constant 0 : index
    %494 = vector.load %arg2[%c0_177, %c0_178] : memref<8x1xi32, #tpu.memory_space<vmem>>, vector<8x1xi32>
    %c33_i32 = arith.constant 33 : i32
    %495 = vector.broadcast %c33_i32 : i32 to vector<8x128xi32>
    %496 = arith.cmpi slt, %58, %495 : vector<8x128xi32>
    %cst_179 = arith.constant -1.000000e+30 : f32
    %497 = vector.broadcast %cst_179 : f32 to vector<8x128xf32>
    %498 = arith.select %496, %492, %497 : vector<8x128xi1>, vector<8x128xf32>
    %cst_180 = arith.constant dense<0xFF800000> : vector<8xf32>
    %499 = vector.multi_reduction <maximumf>, %498, %cst_180 [1] : vector<8x128xf32> to vector<8xf32>
    %500 = vector.shape_cast %499 : vector<8xf32> to vector<8x1xf32>
    %501 = vector.broadcast %500 : vector<8x1xf32> to vector<8x128xf32>
    %502 = arith.subf %498, %501 : vector<8x128xf32>
    %503 = math.exp %502 : vector<8x128xf32>
    %cst_181 = arith.constant dense<0.000000e+00> : vector<8xf32>
    %504 = vector.multi_reduction <add>, %503, %cst_181 [1] : vector<8x128xf32> to vector<8xf32>
    %505 = vector.shape_cast %504 : vector<8xf32> to vector<8x1xf32>
    %506 = math.log %505 : vector<8x1xf32>
    %507 = arith.addf %500, %506 : vector<8x1xf32>
    %508 = vector.broadcast %494 : vector<8x1xi32> to vector<8x128xi32>
    %509 = arith.cmpi eq, %58, %508 : vector<8x128xi32>
    %510 = arith.extui %509 : vector<8x128xi1> to vector<8x128xi32>
    %511 = arith.sitofp %510 : vector<8x128xi32> to vector<8x128xf32>
    %512 = arith.mulf %492, %511 : vector<8x128xf32>
    %cst_182 = arith.constant dense<0.000000e+00> : vector<8xf32>
    %513 = vector.multi_reduction <add>, %512, %cst_182 [1] : vector<8x128xf32> to vector<8xf32>
    %514 = vector.shape_cast %513 : vector<8xf32> to vector<8x1xf32>
    %c-100_i32 = arith.constant -100 : i32
    %515 = vector.broadcast %c-100_i32 : i32 to vector<8x1xi32>
    %516 = arith.cmpi ne, %494, %515 : vector<8x1xi32>
    %517 = arith.extui %516 : vector<8x1xi1> to vector<8x1xi32>
    %518 = arith.sitofp %517 : vector<8x1xi32> to vector<8x1xf32>
    %519 = arith.subf %507, %514 : vector<8x1xf32>
    %520 = arith.mulf %519, %518 : vector<8x1xf32>
    %521 = vector.shape_cast %520 : vector<8x1xf32> to vector<1x8x1xf32>
    %cst_183 = arith.constant dense<0.000000e+00> : vector<1xf32>
    %522 = vector.multi_reduction <add>, %521, %cst_183 [1, 2] : vector<1x8x1xf32> to vector<1xf32>
    %523 = vector.shape_cast %522 : vector<1xf32> to vector<1x1x1xf32>
    %524 = vector.extract %523[0, 0, 0] : f32 from vector<1x1x1xf32>
    %525 = vector.shape_cast %518 : vector<8x1xf32> to vector<1x8x1xf32>
    %cst_184 = arith.constant dense<0.000000e+00> : vector<1xf32>
    %526 = vector.multi_reduction <add>, %525, %cst_184 [1, 2] : vector<1x8x1xf32> to vector<1xf32>
    %527 = vector.shape_cast %526 : vector<1xf32> to vector<1x1x1xf32>
    %528 = vector.extract %527[0, 0, 0] : f32 from vector<1x1x1xf32>
    %529 = tpu.iota {dimensions = array<i32: 1>} : vector<1x128xi32>
    %c0_i32_185 = arith.constant 0 : i32
    %530 = vector.broadcast %c0_i32_185 : i32 to vector<1x128xi32>
    %531 = arith.cmpi eq, %529, %530 : vector<1x128xi32>
    %532 = arith.extui %531 : vector<1x128xi1> to vector<1x128xi32>
    %533 = arith.sitofp %532 : vector<1x128xi32> to vector<1x128xf32>
    %534 = vector.broadcast %524 : f32 to vector<1x128xf32>
    %535 = arith.mulf %534, %533 : vector<1x128xf32>
    %c1_i32_186 = arith.constant 1 : i32
    %536 = vector.broadcast %c1_i32_186 : i32 to vector<1x128xi32>
    %537 = arith.cmpi eq, %529, %536 : vector<1x128xi32>
    %538 = arith.extui %537 : vector<1x128xi1> to vector<1x128xi32>
    %539 = arith.sitofp %538 : vector<1x128xi32> to vector<1x128xf32>
    %540 = vector.broadcast %528 : f32 to vector<1x128xf32>
    %541 = arith.mulf %540, %539 : vector<1x128xf32>
    %542 = arith.addf %535, %541 : vector<1x128xf32>
    %cst_187 = arith.constant 0.000000e+00 : f32
    %543 = vector.broadcast %cst_187 : f32 to vector<8x128xf32>
    %544 = vector.broadcast %542 : vector<1x128xf32> to vector<8x128xf32>
    %545 = arith.addf %543, %544 : vector<8x128xf32>
    %c0_188 = arith.constant 0 : index
    %c0_189 = arith.constant 0 : index
    %546 = vector.load %arg21[%c0_188, %c0_189] : memref<8x128xf32, #tpu.memory_space<vmem>>, vector<8x128xf32>
    tpu.vector_store %arg21[%c0_188, %c0_189], %545 {strides = array<i32>} : memref<8x128xf32, #tpu.memory_space<vmem>>, vector<8x128xf32>,
    return
  }
  func.func @transform_0(%arg0: i32) -> (i32, i32) {
    %c0_i32 = arith.constant 0 : i32
    %c0_i32_0 = arith.constant 0 : i32
    return %arg0, %c0_i32 : i32, i32
  }
  func.func @transform_1(%arg0: i32) -> (i32, i32) {
    %c0_i32 = arith.constant 0 : i32
    %c0_i32_0 = arith.constant 0 : i32
    return %arg0, %c0_i32 : i32, i32
  }
  func.func @transform_2(%arg0: i32) -> (i32, i32) {
    %c0_i32 = arith.constant 0 : i32
    %c0_i32_0 = arith.constant 0 : i32
    %c0_i32_1 = arith.constant 0 : i32
    return %c0_i32, %c0_i32_0 : i32, i32
  }
  func.func @transform_3(%arg0: i32) -> (i32, i32) {
    %c0_i32 = arith.constant 0 : i32
    %c0_i32_0 = arith.constant 0 : i32
    %c0_i32_1 = arith.constant 0 : i32
    return %c0_i32, %c0_i32_0 : i32, i32
  }
  func.func @transform_4(%arg0: i32) -> (i32, i32) {
    %c0_i32 = arith.constant 0 : i32
    %c0_i32_0 = arith.constant 0 : i32
    %c0_i32_1 = arith.constant 0 : i32
    return %c0_i32, %c0_i32_0 : i32, i32
  }
  func.func @transform_5(%arg0: i32) -> (i32, i32) {
    %c0_i32 = arith.constant 0 : i32
    %c0_i32_0 = arith.constant 0 : i32
    %c0_i32_1 = arith.constant 0 : i32
    return %c0_i32, %c0_i32_0 : i32, i32
  }
  func.func @transform_6(%arg0: i32) -> (i32, i32) {
    %c0_i32 = arith.constant 0 : i32
    %c0_i32_0 = arith.constant 0 : i32
    %c0_i32_1 = arith.constant 0 : i32
    return %c0_i32, %c0_i32_0 : i32, i32
  }
  func.func @transform_7(%arg0: i32) -> (i32, i32, i32) {
    %c0_i32 = arith.constant 0 : i32
    %c0_i32_0 = arith.constant 0 : i32
    %c0_i32_1 = arith.constant 0 : i32
    %c0_i32_2 = arith.constant 0 : i32
    return %c0_i32, %c0_i32_0, %c0_i32_1 : i32, i32, i32
  }
  func.func @transform_8(%arg0: i32) -> (i32, i32, i32) {
    %c0_i32 = arith.constant 0 : i32
    %c0_i32_0 = arith.constant 0 : i32
    %c0_i32_1 = arith.constant 0 : i32
    %c0_i32_2 = arith.constant 0 : i32
    return %c0_i32, %c0_i32_0, %c0_i32_1 : i32, i32, i32
  }
  func.func @transform_9(%arg0: i32) -> (i32, i32, i32) {
    %c0_i32 = arith.constant 0 : i32
    %c0_i32_0 = arith.constant 0 : i32
    %c0_i32_1 = arith.constant 0 : i32
    %c0_i32_2 = arith.constant 0 : i32
    return %c0_i32, %c0_i32_0, %c0_i32_1 : i32, i32, i32
  }
  func.func @transform_10(%arg0: i32) -> (i32, i32, i32) {
    %c0_i32 = arith.constant 0 : i32
    %c0_i32_0 = arith.constant 0 : i32
    %c0_i32_1 = arith.constant 0 : i32
    %c0_i32_2 = arith.constant 0 : i32
    return %c0_i32, %c0_i32_0, %c0_i32_1 : i32, i32, i32
  }
  func.func @transform_11(%arg0: i32) -> (i32, i32, i32) {
    %c0_i32 = arith.constant 0 : i32
    %c0_i32_0 = arith.constant 0 : i32
    %c0_i32_1 = arith.constant 0 : i32
    %c0_i32_2 = arith.constant 0 : i32
    return %c0_i32, %c0_i32_0, %c0_i32_1 : i32, i32, i32
  }
  func.func @transform_12(%arg0: i32) -> (i32, i32, i32) {
    %c0_i32 = arith.constant 0 : i32
    %c0_i32_0 = arith.constant 0 : i32
    %c0_i32_1 = arith.constant 0 : i32
    %c0_i32_2 = arith.constant 0 : i32
    return %c0_i32, %c0_i32_0, %c0_i32_1 : i32, i32, i32
  }
  func.func @transform_13(%arg0: i32) -> (i32, i32, i32) {
    %c0_i32 = arith.constant 0 : i32
    %c0_i32_0 = arith.constant 0 : i32
    %c0_i32_1 = arith.constant 0 : i32
    %c0_i32_2 = arith.constant 0 : i32
    return %c0_i32, %c0_i32_0, %c0_i32_1 : i32, i32, i32
  }
  func.func @transform_14(%arg0: i32) -> (i32, i32, i32) {
    %c0_i32 = arith.constant 0 : i32
    %c0_i32_0 = arith.constant 0 : i32
    %c0_i32_1 = arith.constant 0 : i32
    %c0_i32_2 = arith.constant 0 : i32
    return %c0_i32, %c0_i32_0, %c0_i32_1 : i32, i32, i32
  }
  func.func @transform_15(%arg0: i32) -> (i32, i32, i32) {
    %c0_i32 = arith.constant 0 : i32
    %c0_i32_0 = arith.constant 0 : i32
    %c0_i32_1 = arith.constant 0 : i32
    %c0_i32_2 = arith.constant 0 : i32
    return %c0_i32, %c0_i32_0, %c0_i32_1 : i32, i32, i32
  }
  func.func @transform_16(%arg0: i32) -> (i32, i32, i32) {
    %c0_i32 = arith.constant 0 : i32
    %c0_i32_0 = arith.constant 0 : i32
    %c0_i32_1 = arith.constant 0 : i32
    %c0_i32_2 = arith.constant 0 : i32
    return %c0_i32, %c0_i32_0, %c0_i32_1 : i32, i32, i32
  }
  func.func @transform_17(%arg0: i32) -> (i32, i32, i32) {
    %c0_i32 = arith.constant 0 : i32
    %c0_i32_0 = arith.constant 0 : i32
    %c0_i32_1 = arith.constant 0 : i32
    %c0_i32_2 = arith.constant 0 : i32
    return %c0_i32, %c0_i32_0, %c0_i32_1 : i32, i32, i32
  }
  func.func @transform_18(%arg0: i32) -> (i32, i32, i32) {
    %c0_i32 = arith.constant 0 : i32
    %c0_i32_0 = arith.constant 0 : i32
    %c0_i32_1 = arith.constant 0 : i32
    %c0_i32_2 = arith.constant 0 : i32
    return %c0_i32, %c0_i32_0, %c0_i32_1 : i32, i32, i32
  }
  func.func @transform_19(%arg0: i32) -> (i32, i32) {
    %c0_i32 = arith.constant 0 : i32
    %c0_i32_0 = arith.constant 0 : i32
    return %arg0, %c0_i32 : i32, i32
  }
  func.func @transform_20(%arg0: i32) -> (i32, i32) {
    %c0_i32 = arith.constant 0 : i32
    %c0_i32_0 = arith.constant 0 : i32
    return %arg0, %c0_i32 : i32, i32
  }
}

</mosaic_0001>

<llo_original>
// kernel: tpu_custom_call.1
$region0: #{tpu_custom_call.1}
  #allocation0 [shape = 'u32[]', space=smem, size = 0x4, offset = 0x4, fixed_abs, tag = 'smem constant byte address 0x4 - core index']
  #allocation1 [shape = 'u32[144,128]{1,0:T(1,128)}', space=vmem, size = 0x12000, scoped, tag = 'internal scratch']
  %s0 = inlined_call_operand.vmem [shape: s32[16,1], index: 0, kind: input, shape index: {}]
  %s1 = inlined_call_operand.vmem [shape: s32[16,1], index: 1, kind: input, shape index: {}]
  %s2 = inlined_call_operand.vmem [shape: f32[8,128], index: 2, kind: input, shape index: {}]
  %s3 = inlined_call_operand.hbm [shape: bf16[128,128], index: 3, kind: input, shape index: {}]
  %s4 = inlined_call_operand.vmem [shape: f32[1,128], index: 4, kind: input, shape index: {}]
  %s5 = inlined_call_operand.vmem [shape: f32[1,128], index: 5, kind: input, shape index: {}]
  %s6 = inlined_call_operand.hbm [shape: bf16[128,128], index: 6, kind: input, shape index: {}]
  %s7 = inlined_call_operand.vmem [shape: f32[2,1,128], index: 7, kind: input, shape index: {}]
  %s8 = inlined_call_operand.vmem [shape: f32[2,1,128], index: 8, kind: input, shape index: {}]
  %s9 = inlined_call_operand.hbm [shape: bf16[2,128,384], index: 9, kind: input, shape index: {}]
  %s10 = inlined_call_operand.vmem [shape: f32[2,1,384], index: 10, kind: input, shape index: {}]
  %s11 = inlined_call_operand.hbm [shape: bf16[2,128,128], index: 11, kind: input, shape index: {}]
  %s12 = inlined_call_operand.vmem [shape: f32[2,1,128], index: 12, kind: input, shape index: {}]
  %s13 = inlined_call_operand.vmem [shape: f32[2,1,128], index: 13, kind: input, shape index: {}]
  %s14 = inlined_call_operand.vmem [shape: f32[2,1,128], index: 14, kind: input, shape index: {}]
  %s15 = inlined_call_operand.hbm [shape: bf16[2,128,128], index: 15, kind: input, shape index: {}]
  %s16 = inlined_call_operand.vmem [shape: f32[2,1,128], index: 16, kind: input, shape index: {}]
  %s17 = inlined_call_operand.hbm [shape: bf16[2,128,128], index: 17, kind: input, shape index: {}]
  %s18 = inlined_call_operand.vmem [shape: f32[2,1,128], index: 18, kind: input, shape index: {}]
  %s19 = inlined_call_operand.hbm [shape: f32[16,128], index: 19, kind: output, shape index: {0}]
  %s20 = inlined_call_operand.hbm [shape: f32[16,128], index: 20, kind: output, shape index: {1}]
  %21 = xla_tuple %s19, %s20
  %s22 = sld [smem:[#allocation0]]
  $region141: #{tpu_custom_call.1} parent=0
    _
  %s24 = ssub.s32 1, %s22
  %s25 = scalar_select 0, %s24, %s22
  $region1: #{tpu_custom_call.1} parent=0
    #allocation2 [shape = 'u8[32768]{0}', space=vmem, size = 0x8000, scoped, tag = 'input window, operand 3, single buffered']
    #allocation3 [shape = 's32[2]{0}', space=sflag, size = 0x8, scoped, tag = 'scoped memory for tpu_custom_call.1']
    #allocation4 [shape = 's32[2]{0}', space=sflag, size = 0x8, scoped, tag = 'scoped memory for tpu_custom_call.1']
    #allocation5 [shape = 'u8[32768]{0}', space=vmem, size = 0x8000, scoped, tag = 'input window, operand 6, single buffered']
    #allocation6 [shape = 's32[1]{0}', space=sflag, size = 0x4, scoped, tag = 'scoped memory for tpu_custom_call.1']
    #allocation7 [shape = 'u8[196608]{0}', space=vmem, size = 0x30000, scoped, tag = 'input window, operand 9, single buffered']
    #allocation8 [shape = 'u8[65536]{0}', space=vmem, size = 0x10000, scoped, tag = 'input window, operand 11, single buffered']
    #allocation9 [shape = 's32[1]{0}', space=sflag, size = 0x4, scoped, tag = 'scoped memory for tpu_custom_call.1']
    #allocation10 [shape = 'u8[65536]{0}', space=vmem, size = 0x10000, scoped, tag = 'input window, operand 15, single buffered']
    #allocation11 [shape = 'u8[65536]{0}', space=vmem, size = 0x10000, scoped, tag = 'input window, operand 17, single buffered']
    #allocation12 [shape = 's32[1]{0}', space=sflag, size = 0x4, scoped, tag = 'scoped memory for tpu_custom_call.1']
    #allocation13 [shape = 'u8[8192]{0}', space=vmem, size = 0x2000, scoped, tag = 'output window, operand 0']
    #allocation14 [shape = 'u8[8192]{0}', space=vmem, size = 0x2000, scoped, tag = 'output window, operand 1']
    #allocation15 [shape = 's32[2]{0}', space=sflag, size = 0x8, scoped, tag = 'scoped memory for tpu_custom_call.1']
    %26 = vsyncpa [#allocation3], 0
    %27 = vsyncpa [#allocation6], 0
    %28 = vsyncpa [#allocation9], 0
    %29 = vsyncpa [#allocation12], 0
    %30 = vsyncpa [#allocation4], 0
    %s31 = scalar_lea.sflag [#allocation4], 1
    %32 = vsyncpa %s31, 0
    %33 = vsyncpa [#allocation15], 0
    %s34 = scalar_lea.sflag [#allocation15], 1
    %35 = vsyncpa %s34, 0
    loop: start=0, step=1, limit=4
    $region2: #{tpu_custom_call.1} parent=1 // loop_pre_header
      _
    $region3: #{tpu_custom_call.1} parent=1 // loop_header
      %s37 = sphi 0, %s41
      %p38 = scmp.ge.s32.totalorder %s37, 4
      %s47 = sphi 0, %s49
      %s50 = sphi 0, %s47
      %s51 = sphi 0, %s50
      %s67 = sphi 0, %s51
      %s73 = sphi 0, %s75
      %s76 = sphi 0, %s73
      %s77 = sphi 0, %s76
      %s93 = sphi 0, %s77
      %s97 = sphi 0, %s97
      %s99 = sphi 0, %s97
      %s100 = sphi 0, %s99
      %s114 = sphi 0, %s100
      %s118 = sphi 0, %s118
      %s120 = sphi 0, %s118
      %s121 = sphi 0, %s120
      %s135 = sphi 0, %s121
      %s139 = sphi 0, %s139
      %s141 = sphi 0, %s139
      %s142 = sphi 0, %s141
      %s156 = sphi 0, %s142
      %s160 = sphi 0, %s160
      %s162 = sphi 0, %s160
      %s163 = sphi 0, %s162
      %s177 = sphi 0, %s163
      %s181 = sphi 0, %s181
      %s183 = sphi 0, %s181
      %s184 = sphi 0, %s183
      %s198 = sphi 0, %s184
      %s202 = sphi 0, %s202
      %s204 = sphi 0, %s202
      %s205 = sphi 0, %s204
      %s219 = sphi 0, %s205
      %s223 = sphi 0, %s223
      %s225 = sphi 0, %s223
      %s226 = sphi 0, %s225
      %s240 = sphi 0, %s226
      %s244 = sphi 0, %s244
      %s246 = sphi 0, %s244
      %s247 = sphi 0, %s246
      %s261 = sphi 0, %s247
      %s265 = sphi 0, %s265
      %s267 = sphi 0, %s265
      %s268 = sphi 0, %s267
      %s282 = sphi 0, %s268
      %s286 = sphi 0, %s286
      %s288 = sphi 0, %s286
      %s289 = sphi 0, %s288
      %s303 = sphi 0, %s289
      %s307 = sphi 0, %s307
      %s309 = sphi 0, %s307
      %s310 = sphi 0, %s309
      %s324 = sphi 0, %s310
      %s328 = sphi 0, %s328
      %s330 = sphi 0, %s328
      %s331 = sphi 0, %s330
      %s345 = sphi 0, %s331
      %s349 = sphi 0, %s349
      %s351 = sphi 0, %s349
      %s352 = sphi 0, %s351
      %s366 = sphi 0, %s352
      %s370 = sphi 0, %s370
      %s372 = sphi 0, %s370
      %s373 = sphi 0, %s372
      %s387 = sphi 0, %s373
      %s391 = sphi 0, %s391
      %s393 = sphi 0, %s391
      %s394 = sphi 0, %s393
      %s408 = sphi 0, %s394
      %s412 = sphi 0, %s412
      %s414 = sphi 0, %s412
      %s415 = sphi 0, %s414
      %s429 = sphi 0, %s415
      %s433 = sphi 0, %s433
      %s435 = sphi 0, %s433
      %s436 = sphi 0, %s435
      %s450 = sphi 0, %s436
      %s456 = sphi 0, %s458
      %s459 = sphi 0, %s456
      %s460 = sphi 0, %s459
      %s476 = sphi 0, %s460
      %s482 = sphi 0, %s484
      %s485 = sphi 0, %s482
      %s486 = sphi 0, %s485
      %s502 = sphi 0, %s486
    $region4: #{tpu_custom_call.1} parent=1 // loop_header_branch
      %40 = sbr.rel (%p38) target = $region8
    $region5: #{tpu_custom_call.1} parent=1 // loop_body
      %s42 = ssub.s32 %s37, 1
      %s43 = ssub.s32 %s37, 2
      %s44 = sadd.s32 %s37, 1
      %s45 = ssub.s32 %s37, %s44
      %p46 = scmp.eq.s32.totalorder %s45, 0
      %s48 = sadd.s32 %s47, 1
      %s49 = scalar_select %p46, %s47, %s48
      %p52 = pneg %p46
      %p53 = scmp.eq.s32.totalorder %s37, 1
      %p54 = por %p52, %p53
      %p55 = scmp.ne.s32.totalorder %s47, %s50
      %p56 = scmp.eq.s32.totalorder %s37, 0
      %p57 = por %p55, %p56
      %p58 = scmp.ne.s32.totalorder %s47, %s50
      %p59 = scmp.eq.s32.totalorder %s42, 1
      %p60 = por %p58, %p59
      %p61 = scmp.ne.s32.totalorder %s50, %s51
      %p62 = scmp.eq.s32.totalorder %s42, 0
      %p63 = por %p61, %p62
      %p64 = scmp.ne.s32.totalorder %s50, %s51
      %p65 = scmp.eq.s32.totalorder %s43, 1
      %p66 = por %p64, %p65
      %p68 = scmp.ne.s32.totalorder %s51, %s67
      %p69 = scmp.eq.s32.totalorder %s43, 0
      %p70 = por %p68, %p69
      %s71 = ssub.s32 %s37, %s44
      %p72 = scmp.eq.s32.totalorder %s71, 0
      %s74 = sadd.s32 %s73, 1
      %s75 = scalar_select %p72, %s73, %s74
      %p78 = pneg %p72
      %p79 = scmp.eq.s32.totalorder %s37, 1
      %p80 = por %p78, %p79
      %p81 = scmp.ne.s32.totalorder %s73, %s76
      %p82 = scmp.eq.s32.totalorder %s37, 0
      %p83 = por %p81, %p82
      %p84 = scmp.ne.s32.totalorder %s73, %s76
      %p85 = scmp.eq.s32.totalorder %s42, 1
      %p86 = por %p84, %p85
      %p87 = scmp.ne.s32.totalorder %s76, %s77
      %p88 = scmp.eq.s32.totalorder %s42, 0
      %p89 = por %p87, %p88
      %p90 = scmp.ne.s32.totalorder %s76, %s77
      %p91 = scmp.eq.s32.totalorder %s43, 1
      %p92 = por %p90, %p91
      %p94 = scmp.ne.s32.totalorder %s77, %s93
      %p95 = scmp.eq.s32.totalorder %s43, 0
      %p96 = por %p94, %p95
      %s98 = sadd.s32 %s97, 1
      %p101 = scmp.eq.s32.totalorder %s37, 1
      %p102 = scmp.ne.s32.totalorder %s97, %s99
      %p103 = scmp.eq.s32.totalorder %s37, 0
      %p104 = por %p102, %p103
      %p105 = scmp.ne.s32.totalorder %s97, %s99
      %p106 = scmp.eq.s32.totalorder %s42, 1
      %p107 = por %p105, %p106
      %p108 = scmp.ne.s32.totalorder %s99, %s100
      %p109 = scmp.eq.s32.totalorder %s42, 0
      %p110 = por %p108, %p109
      %p111 = scmp.ne.s32.totalorder %s99, %s100
      %p112 = scmp.eq.s32.totalorder %s43, 1
      %p113 = por %p111, %p112
      %p115 = scmp.ne.s32.totalorder %s100, %s114
      %p116 = scmp.eq.s32.totalorder %s43, 0
      %p117 = por %p115, %p116
      %s119 = sadd.s32 %s118, 1
      %p122 = scmp.eq.s32.totalorder %s37, 1
      %p123 = scmp.ne.s32.totalorder %s118, %s120
      %p124 = scmp.eq.s32.totalorder %s37, 0
      %p125 = por %p123, %p124
      %p126 = scmp.ne.s32.totalorder %s118, %s120
      %p127 = scmp.eq.s32.totalorder %s42, 1
      %p128 = por %p126, %p127
      %p129 = scmp.ne.s32.totalorder %s120, %s121
      %p130 = scmp.eq.s32.totalorder %s42, 0
      %p131 = por %p129, %p130
      %p132 = scmp.ne.s32.totalorder %s120, %s121
      %p133 = scmp.eq.s32.totalorder %s43, 1
      %p134 = por %p132, %p133
      %p136 = scmp.ne.s32.totalorder %s121, %s135
      %p137 = scmp.eq.s32.totalorder %s43, 0
      %p138 = por %p136, %p137
      %s140 = sadd.s32 %s139, 1
      %p143 = scmp.eq.s32.totalorder %s37, 1
      %p144 = scmp.ne.s32.totalorder %s139, %s141
      %p145 = scmp.eq.s32.totalorder %s37, 0
      %p146 = por %p144, %p145
      %p147 = scmp.ne.s32.totalorder %s139, %s141
      %p148 = scmp.eq.s32.totalorder %s42, 1
      %p149 = por %p147, %p148
      %p150 = scmp.ne.s32.totalorder %s141, %s142
      %p151 = scmp.eq.s32.totalorder %s42, 0
      %p152 = por %p150, %p151
      %p153 = scmp.ne.s32.totalorder %s141, %s142
      %p154 = scmp.eq.s32.totalorder %s43, 1
      %p155 = por %p153, %p154
      %p157 = scmp.ne.s32.totalorder %s142, %s156
      %p158 = scmp.eq.s32.totalorder %s43, 0
      %p159 = por %p157, %p158
      %s161 = sadd.s32 %s160, 1
      %p164 = scmp.eq.s32.totalorder %s37, 1
      %p165 = scmp.ne.s32.totalorder %s160, %s162
      %p166 = scmp.eq.s32.totalorder %s37, 0
      %p167 = por %p165, %p166
      %p168 = scmp.ne.s32.totalorder %s160, %s162
      %p169 = scmp.eq.s32.totalorder %s42, 1
      %p170 = por %p168, %p169
      %p171 = scmp.ne.s32.totalorder %s162, %s163
      %p172 = scmp.eq.s32.totalorder %s42, 0
      %p173 = por %p171, %p172
      %p174 = scmp.ne.s32.totalorder %s162, %s163
      %p175 = scmp.eq.s32.totalorder %s43, 1
      %p176 = por %p174, %p175
      %p178 = scmp.ne.s32.totalorder %s163, %s177
      %p179 = scmp.eq.s32.totalorder %s43, 0
      %p180 = por %p178, %p179
      %s182 = sadd.s32 %s181, 1
      %p185 = scmp.eq.s32.totalorder %s37, 1
      %p186 = scmp.ne.s32.totalorder %s181, %s183
      %p187 = scmp.eq.s32.totalorder %s37, 0
      %p188 = por %p186, %p187
      %p189 = scmp.ne.s32.totalorder %s181, %s183
      %p190 = scmp.eq.s32.totalorder %s42, 1
      %p191 = por %p189, %p190
      %p192 = scmp.ne.s32.totalorder %s183, %s184
      %p193 = scmp.eq.s32.totalorder %s42, 0
      %p194 = por %p192, %p193
      %p195 = scmp.ne.s32.totalorder %s183, %s184
      %p196 = scmp.eq.s32.totalorder %s43, 1
      %p197 = por %p195, %p196
      %p199 = scmp.ne.s32.totalorder %s184, %s198
      %p200 = scmp.eq.s32.totalorder %s43, 0
      %p201 = por %p199, %p200
      %s203 = sadd.s32 %s202, 1
      %p206 = scmp.eq.s32.totalorder %s37, 1
      %p207 = scmp.ne.s32.totalorder %s202, %s204
      %p208 = scmp.eq.s32.totalorder %s37, 0
      %p209 = por %p207, %p208
      %p210 = scmp.ne.s32.totalorder %s202, %s204
      %p211 = scmp.eq.s32.totalorder %s42, 1
      %p212 = por %p210, %p211
      %p213 = scmp.ne.s32.totalorder %s204, %s205
      %p214 = scmp.eq.s32.totalorder %s42, 0
      %p215 = por %p213, %p214
      %p216 = scmp.ne.s32.totalorder %s204, %s205
      %p217 = scmp.eq.s32.totalorder %s43, 1
      %p218 = por %p216, %p217
      %p220 = scmp.ne.s32.totalorder %s205, %s219
      %p221 = scmp.eq.s32.totalorder %s43, 0
      %p222 = por %p220, %p221
      %s224 = sadd.s32 %s223, 1
      %p227 = scmp.eq.s32.totalorder %s37, 1
      %p228 = scmp.ne.s32.totalorder %s223, %s225
      %p229 = scmp.eq.s32.totalorder %s37, 0
      %p230 = por %p228, %p229
      %p231 = scmp.ne.s32.totalorder %s223, %s225
      %p232 = scmp.eq.s32.totalorder %s42, 1
      %p233 = por %p231, %p232
      %p234 = scmp.ne.s32.totalorder %s225, %s226
      %p235 = scmp.eq.s32.totalorder %s42, 0
      %p236 = por %p234, %p235
      %p237 = scmp.ne.s32.totalorder %s225, %s226
      %p238 = scmp.eq.s32.totalorder %s43, 1
      %p239 = por %p237, %p238
      %p241 = scmp.ne.s32.totalorder %s226, %s240
      %p242 = scmp.eq.s32.totalorder %s43, 0
      %p243 = por %p241, %p242
      %s245 = sadd.s32 %s244, 1
      %p248 = scmp.eq.s32.totalorder %s37, 1
      %p249 = scmp.ne.s32.totalorder %s244, %s246
      %p250 = scmp.eq.s32.totalorder %s37, 0
      %p251 = por %p249, %p250
      %p252 = scmp.ne.s32.totalorder %s244, %s246
      %p253 = scmp.eq.s32.totalorder %s42, 1
      %p254 = por %p252, %p253
      %p255 = scmp.ne.s32.totalorder %s246, %s247
      %p256 = scmp.eq.s32.totalorder %s42, 0
      %p257 = por %p255, %p256
      %p258 = scmp.ne.s32.totalorder %s246, %s247
      %p259 = scmp.eq.s32.totalorder %s43, 1
      %p260 = por %p258, %p259
      %p262 = scmp.ne.s32.totalorder %s247, %s261
      %p263 = scmp.eq.s32.totalorder %s43, 0
      %p264 = por %p262, %p263
      %s266 = sadd.s32 %s265, 1
      %p269 = scmp.eq.s32.totalorder %s37, 1
      %p270 = scmp.ne.s32.totalorder %s265, %s267
      %p271 = scmp.eq.s32.totalorder %s37, 0
      %p272 = por %p270, %p271
      %p273 = scmp.ne.s32.totalorder %s265, %s267
      %p274 = scmp.eq.s32.totalorder %s42, 1
      %p275 = por %p273, %p274
      %p276 = scmp.ne.s32.totalorder %s267, %s268
      %p277 = scmp.eq.s32.totalorder %s42, 0
      %p278 = por %p276, %p277
      %p279 = scmp.ne.s32.totalorder %s267, %s268
      %p280 = scmp.eq.s32.totalorder %s43, 1
      %p281 = por %p279, %p280
      %p283 = scmp.ne.s32.totalorder %s268, %s282
      %p284 = scmp.eq.s32.totalorder %s43, 0
      %p285 = por %p283, %p284
      %s287 = sadd.s32 %s286, 1
      %p290 = scmp.eq.s32.totalorder %s37, 1
      %p291 = scmp.ne.s32.totalorder %s286, %s288
      %p292 = scmp.eq.s32.totalorder %s37, 0
      %p293 = por %p291, %p292
      %p294 = scmp.ne.s32.totalorder %s286, %s288
      %p295 = scmp.eq.s32.totalorder %s42, 1
      %p296 = por %p294, %p295
      %p297 = scmp.ne.s32.totalorder %s288, %s289
      %p298 = scmp.eq.s32.totalorder %s42, 0
      %p299 = por %p297, %p298
      %p300 = scmp.ne.s32.totalorder %s288, %s289
      %p301 = scmp.eq.s32.totalorder %s43, 1
      %p302 = por %p300, %p301
      %p304 = scmp.ne.s32.totalorder %s289, %s303
      %p305 = scmp.eq.s32.totalorder %s43, 0
      %p306 = por %p304, %p305
      %s308 = sadd.s32 %s307, 1
      %p311 = scmp.eq.s32.totalorder %s37, 1
      %p312 = scmp.ne.s32.totalorder %s307, %s309
      %p313 = scmp.eq.s32.totalorder %s37, 0
      %p314 = por %p312, %p313
      %p315 = scmp.ne.s32.totalorder %s307, %s309
      %p316 = scmp.eq.s32.totalorder %s42, 1
      %p317 = por %p315, %p316
      %p318 = scmp.ne.s32.totalorder %s309, %s310
      %p319 = scmp.eq.s32.totalorder %s42, 0
      %p320 = por %p318, %p319
      %p321 = scmp.ne.s32.totalorder %s309, %s310
      %p322 = scmp.eq.s32.totalorder %s43, 1
      %p323 = por %p321, %p322
      %p325 = scmp.ne.s32.totalorder %s310, %s324
      %p326 = scmp.eq.s32.totalorder %s43, 0
      %p327 = por %p325, %p326
      %s329 = sadd.s32 %s328, 1
      %p332 = scmp.eq.s32.totalorder %s37, 1
      %p333 = scmp.ne.s32.totalorder %s328, %s330
      %p334 = scmp.eq.s32.totalorder %s37, 0
      %p335 = por %p333, %p334
      %p336 = scmp.ne.s32.totalorder %s328, %s330
      %p337 = scmp.eq.s32.totalorder %s42, 1
      %p338 = por %p336, %p337
      %p339 = scmp.ne.s32.totalorder %s330, %s331
      %p340 = scmp.eq.s32.totalorder %s42, 0
      %p341 = por %p339, %p340
      %p342 = scmp.ne.s32.totalorder %s330, %s331
      %p343 = scmp.eq.s32.totalorder %s43, 1
      %p344 = por %p342, %p343
      %p346 = scmp.ne.s32.totalorder %s331, %s345
      %p347 = scmp.eq.s32.totalorder %s43, 0
      %p348 = por %p346, %p347
      %s350 = sadd.s32 %s349, 1
      %p353 = scmp.eq.s32.totalorder %s37, 1
      %p354 = scmp.ne.s32.totalorder %s349, %s351
      %p355 = scmp.eq.s32.totalorder %s37, 0
      %p356 = por %p354, %p355
      %p357 = scmp.ne.s32.totalorder %s349, %s351
      %p358 = scmp.eq.s32.totalorder %s42, 1
      %p359 = por %p357, %p358
      %p360 = scmp.ne.s32.totalorder %s351, %s352
      %p361 = scmp.eq.s32.totalorder %s42, 0
      %p362 = por %p360, %p361
      %p363 = scmp.ne.s32.totalorder %s351, %s352
      %p364 = scmp.eq.s32.totalorder %s43, 1
      %p365 = por %p363, %p364
      %p367 = scmp.ne.s32.totalorder %s352, %s366
      %p368 = scmp.eq.s32.totalorder %s43, 0
      %p369 = por %p367, %p368
      %s371 = sadd.s32 %s370, 1
      %p374 = scmp.eq.s32.totalorder %s37, 1
      %p375 = scmp.ne.s32.totalorder %s370, %s372
      %p376 = scmp.eq.s32.totalorder %s37, 0
      %p377 = por %p375, %p376
      %p378 = scmp.ne.s32.totalorder %s370, %s372
      %p379 = scmp.eq.s32.totalorder %s42, 1
      %p380 = por %p378, %p379
      %p381 = scmp.ne.s32.totalorder %s372, %s373
      %p382 = scmp.eq.s32.totalorder %s42, 0
      %p383 = por %p381, %p382
      %p384 = scmp.ne.s32.totalorder %s372, %s373
      %p385 = scmp.eq.s32.totalorder %s43, 1
      %p386 = por %p384, %p385
      %p388 = scmp.ne.s32.totalorder %s373, %s387
      %p389 = scmp.eq.s32.totalorder %s43, 0
      %p390 = por %p388, %p389
      %s392 = sadd.s32 %s391, 1
      %p395 = scmp.eq.s32.totalorder %s37, 1
      %p396 = scmp.ne.s32.totalorder %s391, %s393
      %p397 = scmp.eq.s32.totalorder %s37, 0
      %p398 = por %p396, %p397
      %p399 = scmp.ne.s32.totalorder %s391, %s393
      %p400 = scmp.eq.s32.totalorder %s42, 1
      %p401 = por %p399, %p400
      %p402 = scmp.ne.s32.totalorder %s393, %s394
      %p403 = scmp.eq.s32.totalorder %s42, 0
      %p404 = por %p402, %p403
      %p405 = scmp.ne.s32.totalorder %s393, %s394
      %p406 = scmp.eq.s32.totalorder %s43, 1
      %p407 = por %p405, %p406
      %p409 = scmp.ne.s32.totalorder %s394, %s408
      %p410 = scmp.eq.s32.totalorder %s43, 0
      %p411 = por %p409, %p410
      %s413 = sadd.s32 %s412, 1
      %p416 = scmp.eq.s32.totalorder %s37, 1
      %p417 = scmp.ne.s32.totalorder %s412, %s414
      %p418 = scmp.eq.s32.totalorder %s37, 0
      %p419 = por %p417, %p418
      %p420 = scmp.ne.s32.totalorder %s412, %s414
      %p421 = scmp.eq.s32.totalorder %s42, 1
      %p422 = por %p420, %p421
      %p423 = scmp.ne.s32.totalorder %s414, %s415
      %p424 = scmp.eq.s32.totalorder %s42, 0
      %p425 = por %p423, %p424
      %p426 = scmp.ne.s32.totalorder %s414, %s415
      %p427 = scmp.eq.s32.totalorder %s43, 1
      %p428 = por %p426, %p427
      %p430 = scmp.ne.s32.totalorder %s415, %s429
      %p431 = scmp.eq.s32.totalorder %s43, 0
      %p432 = por %p430, %p431
      %s434 = sadd.s32 %s433, 1
      %p437 = scmp.eq.s32.totalorder %s37, 1
      %p438 = scmp.ne.s32.totalorder %s433, %s435
      %p439 = scmp.eq.s32.totalorder %s37, 0
      %p440 = por %p438, %p439
      %p441 = scmp.ne.s32.totalorder %s433, %s435
      %p442 = scmp.eq.s32.totalorder %s42, 1
      %p443 = por %p441, %p442
      %p444 = scmp.ne.s32.totalorder %s435, %s436
      %p445 = scmp.eq.s32.totalorder %s42, 0
      %p446 = por %p444, %p445
      %p447 = scmp.ne.s32.totalorder %s435, %s436
      %p448 = scmp.eq.s32.totalorder %s43, 1
      %p449 = por %p447, %p448
      %p451 = scmp.ne.s32.totalorder %s436, %s450
      %p452 = scmp.eq.s32.totalorder %s43, 0
      %p453 = por %p451, %p452
      %s454 = ssub.s32 %s37, %s44
      %p455 = scmp.eq.s32.totalorder %s454, 0
      %s457 = sadd.s32 %s456, 1
      %s458 = scalar_select %p455, %s456, %s457
      %p461 = pneg %p455
      %p462 = scmp.eq.s32.totalorder %s37, 1
      %p463 = por %p461, %p462
      %p464 = scmp.ne.s32.totalorder %s456, %s459
      %p465 = scmp.eq.s32.totalorder %s37, 0
      %p466 = por %p464, %p465
      %p467 = scmp.ne.s32.totalorder %s456, %s459
      %p468 = scmp.eq.s32.totalorder %s42, 1
      %p469 = por %p467, %p468
      %p470 = scmp.ne.s32.totalorder %s459, %s460
      %p471 = scmp.eq.s32.totalorder %s42, 0
      %p472 = por %p470, %p471
      %p473 = scmp.ne.s32.totalorder %s459, %s460
      %p474 = scmp.eq.s32.totalorder %s43, 1
      %p475 = por %p473, %p474
      %p477 = scmp.ne.s32.totalorder %s460, %s476
      %p478 = scmp.eq.s32.totalorder %s43, 0
      %p479 = por %p477, %p478
      %s480 = ssub.s32 %s37, %s44
      %p481 = scmp.eq.s32.totalorder %s480, 0
      %s483 = sadd.s32 %s482, 1
      %s484 = scalar_select %p481, %s482, %s483
      %p487 = pneg %p481
      %p488 = scmp.eq.s32.totalorder %s37, 1
      %p489 = por %p487, %p488
      %p490 = scmp.ne.s32.totalorder %s482, %s485
      %p491 = scmp.eq.s32.totalorder %s37, 0
      %p492 = por %p490, %p491
      %p493 = scmp.ne.s32.totalorder %s482, %s485
      %p494 = scmp.eq.s32.totalorder %s42, 1
      %p495 = por %p493, %p494
      %p496 = scmp.ne.s32.totalorder %s485, %s486
      %p497 = scmp.eq.s32.totalorder %s42, 0
      %p498 = por %p496, %p497
      %p499 = scmp.ne.s32.totalorder %s485, %s486
      %p500 = scmp.eq.s32.totalorder %s43, 1
      %p501 = por %p499, %p500
      %p503 = scmp.ne.s32.totalorder %s486, %s502
      %p504 = scmp.eq.s32.totalorder %s43, 0
      %p505 = por %p503, %p504
      %p506 = scmp.le.s32.totalorder 1, %s37
      %p507 = scmp.lt.s32.totalorder %s37, 3
      %p508 = pnand %p506, %p507
      %p509 = pneg %p508
      // Predicated region
      $region9: #{tpu_custom_call.1} parent=5 // pred_check
        _
      $region10: #{tpu_custom_call.1} parent=5 // pred_check_branch
        %511 = sbr.rel (%p508) target = $region12
      $region11: #{tpu_custom_call.1} parent=5 // pred_region
        %s512 = ssub.s32 %s37, 1
        // Predicated region
        $region13: #{tpu_custom_call.1} parent=11 // pred_check
          %p513 = pneg %p110
        $region14: #{tpu_custom_call.1} parent=11 // pred_check_branch
          %515 = sbr.rel (%p513) target = $region16
        $region15: #{tpu_custom_call.1} parent=11 // pred_region
          _
        $region16: #{tpu_custom_call.1} parent=11 // pred_fallthru
          _
        // Predicated region
        $region17: #{tpu_custom_call.1} parent=11 // pred_check
          %p516 = pneg %p131
        $region18: #{tpu_custom_call.1} parent=11 // pred_check_branch
          %518 = sbr.rel (%p516) target = $region20
        $region19: #{tpu_custom_call.1} parent=11 // pred_region
          %s520 = ssub.s32 1024, 1024
          %521 = vsyncadd [#allocation3], %s520
          %s522 = sshll.u32 [#allocation2], 4
          %s523 = int_to_ptr.vmem [resolvable:$true] %s522
          %528 = dma.hbm_to_vmem [thread:$0]  %s3, 1024, %s523, [#allocation3], 64, 64, 4
        $region20: #{tpu_custom_call.1} parent=11 // pred_fallthru
          _
        // Predicated region
        $region21: #{tpu_custom_call.1} parent=11 // pred_check
          %p529 = pneg %p152
        $region22: #{tpu_custom_call.1} parent=11 // pred_check_branch
          %531 = sbr.rel (%p529) target = $region24
        $region23: #{tpu_custom_call.1} parent=11 // pred_region
          _
        $region24: #{tpu_custom_call.1} parent=11 // pred_fallthru
          _
        // Predicated region
        $region25: #{tpu_custom_call.1} parent=11 // pred_check
          %p532 = pneg %p173
        $region26: #{tpu_custom_call.1} parent=11 // pred_check_branch
          %534 = sbr.rel (%p532) target = $region28
        $region27: #{tpu_custom_call.1} parent=11 // pred_region
          _
        $region28: #{tpu_custom_call.1} parent=11 // pred_fallthru
          _
        // Predicated region
        $region29: #{tpu_custom_call.1} parent=11 // pred_check
          %p535 = pneg %p194
        $region30: #{tpu_custom_call.1} parent=11 // pred_check_branch
          %537 = sbr.rel (%p535) target = $region32
        $region31: #{tpu_custom_call.1} parent=11 // pred_region
          %s539 = ssub.s32 1024, 1024
          %540 = vsyncadd [#allocation6], %s539
          %s541 = sshll.u32 [#allocation5], 4
          %s542 = int_to_ptr.vmem [resolvable:$true] %s541
          %547 = dma.hbm_to_vmem [thread:$0]  %s6, 1024, %s542, [#allocation6], 64, 64, 4
        $region32: #{tpu_custom_call.1} parent=11 // pred_fallthru
          _
        // Predicated region
        $region33: #{tpu_custom_call.1} parent=11 // pred_check
          %p548 = pneg %p215
        $region34: #{tpu_custom_call.1} parent=11 // pred_check_branch
          %550 = sbr.rel (%p548) target = $region36
        $region35: #{tpu_custom_call.1} parent=11 // pred_region
          _
        $region36: #{tpu_custom_call.1} parent=11 // pred_fallthru
          _
        // Predicated region
        $region37: #{tpu_custom_call.1} parent=11 // pred_check
          %p551 = pneg %p236
        $region38: #{tpu_custom_call.1} parent=11 // pred_check_branch
          %553 = sbr.rel (%p551) target = $region40
        $region39: #{tpu_custom_call.1} parent=11 // pred_region
          _
        $region40: #{tpu_custom_call.1} parent=11 // pred_fallthru
          _
        // Predicated region
        $region41: #{tpu_custom_call.1} parent=11 // pred_check
          %p554 = pneg %p257
        $region42: #{tpu_custom_call.1} parent=11 // pred_check_branch
          %556 = sbr.rel (%p554) target = $region44
        $region43: #{tpu_custom_call.1} parent=11 // pred_region
          %s558 = ssub.s32 6144, 6144
          %559 = vsyncadd [#allocation6], %s558
          %s560 = sshll.u32 [#allocation7], 4
          %s561 = int_to_ptr.vmem [resolvable:$true] %s560
          %566 = dma.hbm_to_vmem [thread:$0]  %s9, 6144, %s561, [#allocation6], 192, 192, 12
        $region44: #{tpu_custom_call.1} parent=11 // pred_fallthru
          _
        // Predicated region
        $region45: #{tpu_custom_call.1} parent=11 // pred_check
          %p567 = pneg %p278
        $region46: #{tpu_custom_call.1} parent=11 // pred_check_branch
          %569 = sbr.rel (%p567) target = $region48
        $region47: #{tpu_custom_call.1} parent=11 // pred_region
          _
        $region48: #{tpu_custom_call.1} parent=11 // pred_fallthru
          _
        // Predicated region
        $region49: #{tpu_custom_call.1} parent=11 // pred_check
          %p570 = pneg %p299
        $region50: #{tpu_custom_call.1} parent=11 // pred_check_branch
          %572 = sbr.rel (%p570) target = $region52
        $region51: #{tpu_custom_call.1} parent=11 // pred_region
          %s574 = ssub.s32 2048, 2048
          %575 = vsyncadd [#allocation9], %s574
          %s576 = sshll.u32 [#allocation8], 4
          %s577 = int_to_ptr.vmem [resolvable:$true] %s576
          %582 = dma.hbm_to_vmem [thread:$0]  %s11, 2048, %s577, [#allocation9], 64, 64, 4
        $region52: #{tpu_custom_call.1} parent=11 // pred_fallthru
          _
        // Predicated region
        $region53: #{tpu_custom_call.1} parent=11 // pred_check
          %p583 = pneg %p320
        $region54: #{tpu_custom_call.1} parent=11 // pred_check_branch
          %585 = sbr.rel (%p583) target = $region56
        $region55: #{tpu_custom_call.1} parent=11 // pred_region
          _
        $region56: #{tpu_custom_call.1} parent=11 // pred_fallthru
          _
        // Predicated region
        $region57: #{tpu_custom_call.1} parent=11 // pred_check
          %p586 = pneg %p341
        $region58: #{tpu_custom_call.1} parent=11 // pred_check_branch
          %588 = sbr.rel (%p586) target = $region60
        $region59: #{tpu_custom_call.1} parent=11 // pred_region
          _
        $region60: #{tpu_custom_call.1} parent=11 // pred_fallthru
          _
        // Predicated region
        $region61: #{tpu_custom_call.1} parent=11 // pred_check
          %p589 = pneg %p362
        $region62: #{tpu_custom_call.1} parent=11 // pred_check_branch
          %591 = sbr.rel (%p589) target = $region64
        $region63: #{tpu_custom_call.1} parent=11 // pred_region
          _
        $region64: #{tpu_custom_call.1} parent=11 // pred_fallthru
          _
        // Predicated region
        $region65: #{tpu_custom_call.1} parent=11 // pred_check
          %p592 = pneg %p383
        $region66: #{tpu_custom_call.1} parent=11 // pred_check_branch
          %594 = sbr.rel (%p592) target = $region68
        $region67: #{tpu_custom_call.1} parent=11 // pred_region
          %s596 = ssub.s32 2048, 2048
          %597 = vsyncadd [#allocation9], %s596
          %s598 = sshll.u32 [#allocation10], 4
          %s599 = int_to_ptr.vmem [resolvable:$true] %s598
          %604 = dma.hbm_to_vmem [thread:$0]  %s15, 2048, %s599, [#allocation9], 64, 64, 4
        $region68: #{tpu_custom_call.1} parent=11 // pred_fallthru
          _
        // Predicated region
        $region69: #{tpu_custom_call.1} parent=11 // pred_check
          %p605 = pneg %p404
        $region70: #{tpu_custom_call.1} parent=11 // pred_check_branch
          %607 = sbr.rel (%p605) target = $region72
        $region71: #{tpu_custom_call.1} parent=11 // pred_region
          _
        $region72: #{tpu_custom_call.1} parent=11 // pred_fallthru
          _
        // Predicated region
        $region73: #{tpu_custom_call.1} parent=11 // pred_check
          %p608 = pneg %p425
        $region74: #{tpu_custom_call.1} parent=11 // pred_check_branch
          %610 = sbr.rel (%p608) target = $region76
        $region75: #{tpu_custom_call.1} parent=11 // pred_region
          %s612 = ssub.s32 2048, 2048
          %613 = vsyncadd [#allocation12], %s612
          %s614 = sshll.u32 [#allocation11], 4
          %s615 = int_to_ptr.vmem [resolvable:$true] %s614
          %620 = dma.hbm_to_vmem [thread:$0]  %s17, 2048, %s615, [#allocation12], 64, 64, 4
        $region76: #{tpu_custom_call.1} parent=11 // pred_fallthru
          _
        // Predicated region
        $region77: #{tpu_custom_call.1} parent=11 // pred_check
          %p621 = pneg %p446
        $region78: #{tpu_custom_call.1} parent=11 // pred_check_branch
          %623 = sbr.rel (%p621) target = $region80
        $region79: #{tpu_custom_call.1} parent=11 // pred_region
          _
        $region80: #{tpu_custom_call.1} parent=11 // pred_fallthru
          _
      $region12: #{tpu_custom_call.1} parent=5 // pred_fallthru
        _
      %p624 = scmp.lt.s32.totalorder %s37, 2
      // Predicated region
      $region81: #{tpu_custom_call.1} parent=5 // pred_check
        %p625 = pneg %p624
      $region82: #{tpu_custom_call.1} parent=5 // pred_check_branch
        %627 = sbr.rel (%p625) target = $region84
      $region83: #{tpu_custom_call.1} parent=5 // pred_region
        // Predicated region
        $region85: #{tpu_custom_call.1} parent=83 // pred_check
          %p628 = pneg %p57
        $region86: #{tpu_custom_call.1} parent=83 // pred_check_branch
          %630 = sbr.rel (%p628) target = $region88
        $region87: #{tpu_custom_call.1} parent=83 // pred_region
          %p631 = scmp.lt.s32.totalorder %s37, 1
          %s632 = scalar_select %p631, %s37, 1
          %s633 = smul.addr %s632, 8
          %s634 = scalar_lea.vmem %s0, %s633
        $region88: #{tpu_custom_call.1} parent=83 // pred_fallthru
          _
        // Predicated region
        $region89: #{tpu_custom_call.1} parent=83 // pred_check
          %p635 = pneg %p83
        $region90: #{tpu_custom_call.1} parent=83 // pred_check_branch
          %637 = sbr.rel (%p635) target = $region92
        $region91: #{tpu_custom_call.1} parent=83 // pred_region
          %p638 = scmp.lt.s32.totalorder %s37, 1
          %s639 = scalar_select %p638, %s37, 1
          %s640 = smul.addr %s639, 8
          %s641 = scalar_lea.vmem %s1, %s640
        $region92: #{tpu_custom_call.1} parent=83 // pred_fallthru
          _
      $region84: #{tpu_custom_call.1} parent=5 // pred_fallthru
        _
      %p642 = scmp.le.s32.totalorder 1, %s37
      %p643 = scmp.lt.s32.totalorder %s37, 3
      %p644 = pnand %p642, %p643
      %p645 = pneg %p644
      // Predicated region
      $region93: #{tpu_custom_call.1} parent=5 // pred_check
        _
      $region94: #{tpu_custom_call.1} parent=5 // pred_check_branch
        %647 = sbr.rel (%p644) target = $region96
      $region95: #{tpu_custom_call.1} parent=5 // pred_region
        %s648 = ssub.s32 %s37, 1
        // Predicated region
        $region97: #{tpu_custom_call.1} parent=95 // pred_check
          %p649 = pneg %p131
        $region98: #{tpu_custom_call.1} parent=95 // pred_check_branch
          %651 = sbr.rel (%p649) target = $region100
        $region99: #{tpu_custom_call.1} parent=95 // pred_region
          %652 = dma.done [#allocation3], 1024
        $region100: #{tpu_custom_call.1} parent=95 // pred_fallthru
          _
        // Predicated region
        $region101: #{tpu_custom_call.1} parent=95 // pred_check
          %p653 = pneg %p194
        $region102: #{tpu_custom_call.1} parent=95 // pred_check_branch
          %655 = sbr.rel (%p653) target = $region104
        $region103: #{tpu_custom_call.1} parent=95 // pred_region
          %656 = dma.done [#allocation6], 1024
        $region104: #{tpu_custom_call.1} parent=95 // pred_fallthru
          _
        // Predicated region
        $region105: #{tpu_custom_call.1} parent=95 // pred_check
          %p657 = pneg %p257
        $region106: #{tpu_custom_call.1} parent=95 // pred_check_branch
          %659 = sbr.rel (%p657) target = $region108
        $region107: #{tpu_custom_call.1} parent=95 // pred_region
          %660 = dma.done [#allocation6], 6144
        $region108: #{tpu_custom_call.1} parent=95 // pred_fallthru
          _
        // Predicated region
        $region109: #{tpu_custom_call.1} parent=95 // pred_check
          %p661 = pneg %p299
        $region110: #{tpu_custom_call.1} parent=95 // pred_check_branch
          %663 = sbr.rel (%p661) target = $region112
        $region111: #{tpu_custom_call.1} parent=95 // pred_region
          %664 = dma.done [#allocation9], 2048
        $region112: #{tpu_custom_call.1} parent=95 // pred_fallthru
          _
        // Predicated region
        $region113: #{tpu_custom_call.1} parent=95 // pred_check
          %p665 = pneg %p383
        $region114: #{tpu_custom_call.1} parent=95 // pred_check_branch
          %667 = sbr.rel (%p665) target = $region116
        $region115: #{tpu_custom_call.1} parent=95 // pred_region
          %668 = dma.done [#allocation9], 2048
        $region116: #{tpu_custom_call.1} parent=95 // pred_fallthru
          _
        // Predicated region
        $region117: #{tpu_custom_call.1} parent=95 // pred_check
          %p669 = pneg %p425
        $region118: #{tpu_custom_call.1} parent=95 // pred_check_branch
          %671 = sbr.rel (%p669) target = $region120
        $region119: #{tpu_custom_call.1} parent=95 // pred_region
          %672 = dma.done [#allocation12], 2048
        $region120: #{tpu_custom_call.1} parent=95 // pred_fallthru
          _
        %p673 = scmp.lt.s32.totalorder %s42, 1
        %s674 = scalar_select %p673, %s42, 1
        %s675 = smul.addr %s674, 8
        %s676 = scalar_lea.vmem %s0, %s675
        %p677 = pneg %p63
        %p678 = pneg %p60
        %p679 = scmp.lt.s32.totalorder %s42, 1
        %s680 = scalar_select %p679, %s42, 1
        %s681 = smul.addr %s680, 8
        %s682 = scalar_lea.vmem %s1, %s681
        %p683 = pneg %p89
        %p684 = pneg %p86
        %p685 = pneg %p110
        %p686 = pneg %p107
        %p687 = pneg %p131
        %p688 = pneg %p128
        %p689 = pneg %p152
        %p690 = pneg %p149
        %p691 = pneg %p173
        %p692 = pneg %p170
        %p693 = pneg %p194
        %p694 = pneg %p191
        %p695 = pneg %p215
        %p696 = pneg %p212
        %p697 = pneg %p236
        %p698 = pneg %p233
        %p699 = pneg %p257
        %p700 = pneg %p254
        %p701 = pneg %p278
        %p702 = pneg %p275
        %p703 = pneg %p299
        %p704 = pneg %p296
        %p705 = pneg %p320
        %p706 = pneg %p317
        %p707 = pneg %p341
        %p708 = pneg %p338
        %p709 = pneg %p362
        %p710 = pneg %p359
        %p711 = pneg %p383
        %p712 = pneg %p380
        %p713 = pneg %p404
        %p714 = pneg %p401
        %p715 = pneg %p425
        %p716 = pneg %p422
        %p717 = pneg %p446
        %p718 = pneg %p443
        %p719 = pneg %p472
        %p720 = pneg %p469
        %s721 = sand.u32 %s459, 1
        %s722 = scalar_lea.sflag [#allocation4], %s721
        %s723 = sand.u32 %s459, 1
        %s724 = smul.addr %s723, 8
        %s725 = scalar_lea.vmem [#allocation13], %s724
        %p726 = pneg %p498
        %p727 = pneg %p495
        %s728 = sand.u32 %s485, 1
        %s729 = scalar_lea.sflag [#allocation15], %s728
        %s730 = sand.u32 %s485, 1
        %s731 = smul.addr %s730, 8
        %s732 = scalar_lea.vmem [#allocation14], %s731
        %p733 = scmp.lt.s32.totalorder %s42, 1
        %s734 = scalar_select %p733, %s42, 1
        %s735 = smul.addr %s734, 8
        %s736 = scalar_lea.vmem %s0, %s735
        %p737 = scmp.lt.s32.totalorder %s42, 1
        %s738 = scalar_select %p737, %s42, 1
        %s739 = smul.addr %s738, 8
        %s740 = scalar_lea.vmem %s1, %s739
        %v742 = vlaneseq
        %v743 = vand.u32 %v742, 127
        %vm744 = vcmp.lt.s32.totalorder %v743, 32
        %v745 = vsel %vm744, 1, 0
        %v746 = vcvt.s32.f32 %v745
        %vm747 = vcmp.eq.s32.totalorder %v743, 127
        %v748 = vsel %vm747, 1, 0
        %v749 = vcvt.s32.f32 %v748
        %vm750 = vcmp.ge.s32.totalorder %v743, 0
        %vm751 = vcmp.lt.s32.totalorder %v743, 8
        %vm752 = vmand %vm750, %vm751
        %vm753 = vmor %vm752, %vm747
        %v754 = vsel %vm753, 1, 0
        %v755 = vcvt.s32.f32 %v754
        %v756 = vsel %vm752, 1, 0
        %v757 = vcvt.s32.f32 %v756
        %vm758 = vcmp.ge.s32.totalorder %v743, 8
        %vm759 = vcmp.lt.s32.totalorder %v743, 16
        %vm760 = vmand %vm758, %vm759
        %vm761 = vmor %vm760, %vm747
        %v762 = vsel %vm761, 1, 0
        %v763 = vcvt.s32.f32 %v762
        %v764 = vsel %vm760, 1, 0
        %v765 = vcvt.s32.f32 %v764
        %vm766 = vcmp.ge.s32.totalorder %v743, 16
        %vm767 = vcmp.lt.s32.totalorder %v743, 24
        %vm768 = vmand %vm766, %vm767
        %vm769 = vmor %vm768, %vm747
        %v770 = vsel %vm769, 1, 0
        %v771 = vcvt.s32.f32 %v770
        %v772 = vsel %vm768, 1, 0
        %v773 = vcvt.s32.f32 %v772
        %vm774 = vcmp.ge.s32.totalorder %v743, 24
        %vm775 = vmand %vm774, %vm744
        %vm776 = vmor %vm775, %vm747
        %v777 = vsel %vm776, 1, 0
        %v778 = vcvt.s32.f32 %v777
        %v779 = vsel %vm775, 1, 0
        %v780 = vcvt.s32.f32 %v779
        %v781 = vld [vmem:[%s736] sm:$0xff]
        %782 = vset.pattern.permute.xlu0 0
        %783 = vperm.xlu0 %782, %v781
        %v784 = vpop.permute.xlu0 %783
        %vm785 = vcmp.eq.s32.totalorder %v743, %v784
        %v786 = vsel %vm785, 1, 0
        %v787 = vcvt.s32.f32 %v786
        %v788 = vpack.c.bf16 %v787, %v787
        %v789 = vld [vmem:[#allocation2] sm:$0xf]
        %v790 = vld [vmem:[#allocation2 + $0x4] sm:$0xf]
        %v791 = vld [vmem:[#allocation2 + $0x8] sm:$0xf]
        %v792 = vld [vmem:[#allocation2 + $0xc] sm:$0xf]
        %v793 = vld [vmem:[#allocation2 + $0x10] sm:$0xf]
        %v794 = vld [vmem:[#allocation2 + $0x14] sm:$0xf]
        %v795 = vld [vmem:[#allocation2 + $0x18] sm:$0xf]
        %v796 = vld [vmem:[#allocation2 + $0x1c] sm:$0xf]
        %v797 = vld [vmem:[#allocation2 + $0x20] sm:$0xf]
        %v798 = vld [vmem:[#allocation2 + $0x24] sm:$0xf]
        %v799 = vld [vmem:[#allocation2 + $0x28] sm:$0xf]
        %v800 = vld [vmem:[#allocation2 + $0x2c] sm:$0xf]
        %v801 = vld [vmem:[#allocation2 + $0x30] sm:$0xf]
        %v802 = vld [vmem:[#allocation2 + $0x34] sm:$0xf]
        %v803 = vld [vmem:[#allocation2 + $0x38] sm:$0xf]
        %v804 = vld [vmem:[#allocation2 + $0x3c] sm:$0xf]
        %v805 = vld [vmem:[%s2] sm:$0xff]
        %v822 = vunpack.c.l.b16 %v789
        %v823 = vunpack.c.l.b16 %v790
        %v824 = vunpack.c.l.b16 %v791
        %v825 = vunpack.c.l.b16 %v792
        %v826 = vunpack.c.l.b16 %v793
        %v827 = vunpack.c.l.b16 %v794
        %v828 = vunpack.c.l.b16 %v795
        %v829 = vunpack.c.l.b16 %v796
        %v830 = vunpack.c.l.b16 %v797
        %v831 = vunpack.c.l.b16 %v798
        %v832 = vunpack.c.l.b16 %v799
        %v833 = vunpack.c.l.b16 %v800
        %v834 = vunpack.c.l.b16 %v801
        %v835 = vunpack.c.l.b16 %v802
        %v836 = vunpack.c.l.b16 %v803
        %v837 = vunpack.c.l.b16 %v804
        %v838 = vpack.c.b16 %v823, %v822
        %v839 = vpack.c.b16 %v825, %v824
        %v840 = vpack.c.b16 %v827, %v826
        %v841 = vpack.c.b16 %v829, %v828
        %v842 = vpack.c.b16 %v831, %v830
        %v843 = vpack.c.b16 %v833, %v832
        %v844 = vpack.c.b16 %v835, %v834
        %v845 = vpack.c.b16 %v837, %v836
        %854 = vmatprep.subr.bf16.mxu0 0
        %855 = vmatpush1.bf16.msra.mxu0 %v838
        %856 = vmatprep.subr.bf16.mxu0 0
        %857 = vmatpush1.bf16.msra.mxu0 %v839
        %858 = vmatprep.subr.bf16.mxu0 0
        %859 = vmatpush1.bf16.msra.mxu0 %v840
        %860 = vmatprep.subr.bf16.mxu0 0
        %861 = vmatpush1.bf16.msra.mxu0 %v841
        %862 = vmatprep.subr.bf16.mxu0 0
        %863 = vmatpush1.bf16.msra.mxu0 %v842
        %864 = vmatprep.subr.bf16.mxu0 0
        %865 = vmatpush1.bf16.msra.mxu0 %v843
        %866 = vmatprep.subr.bf16.mxu0 0
        %867 = vmatpush1.bf16.msra.mxu0 %v844
        %868 = vmatprep.subr.bf16.mxu0 0
        %869 = vmatpush1.bf16.msra.mxu0 %v845
        %870 = vmatprep.subr.bf16.mxu0 0
        %871 = vmatpush1.bf16.msra.mxu0 0
        %872 = vmatprep.subr.bf16.mxu0 0
        %873 = vmatpush1.bf16.msra.mxu0 0
        %874 = vmatprep.subr.bf16.mxu0 0
        %875 = vmatpush1.bf16.msra.mxu0 0
        %876 = vmatprep.subr.bf16.mxu0 0
        %877 = vmatpush1.bf16.msra.mxu0 0
        %878 = vmatprep.subr.bf16.mxu0 0
        %879 = vmatpush1.bf16.msra.mxu0 0
        %880 = vmatprep.subr.bf16.mxu0 0
        %881 = vmatpush1.bf16.msra.mxu0 0
        %882 = vmatprep.subr.bf16.mxu0 0
        %883 = vmatpush1.bf16.msra.mxu0 0
        %884 = vmatprep.subr.bf16.mxu0 0
        %885 = vmatpush1.bf16.msra.mxu0 0
        %886 = vmatprep.mubr.bf16.mxu0 0
        %887 = vmatmul.mubr.bf16.gmra.mrb[0].mxu0 %v788
        %v888 = vpop.f32.mrb[0].mxu0
        %v889 = vadd.f32 %v805, %v888
        %v890 = vpop.f32.mrb[0].mxu0
        %v891 = vpop.f32.mrb[0].mxu0
        %v892 = vpop.f32.mrb[0].mxu0
        %893 = vdwg.mxu0
        %vm894 = vcmp.eq.s32.totalorder %v781, 1
        %v895 = vsel %vm894, 1, 0
        %v896 = vcvt.s32.f32 %v895
        %v897 = vmul.f32 %v896, -1e+09
        %v898 = vld [vmem:[%s7] sm:$0x1]
        %v899 = vld [vmem:[%s8] sm:$0x1]
        %900 = vadd.xlane.f32.xlu0 %v889
        %v901 = vpop.xlane.xlu0 %900
        %v902 = vmul.f32 %v901, 0.03125
        %v903 = vsub.f32 %v889, %v902
        %v904 = vmul.f32 %v903, %v746
        %v905 = vmul.f32 %v904, %v904
        %906 = vadd.xlane.f32.xlu0 %v905
        %v907 = vpop.xlane.xlu0 %906
        %v908 = vmul.f32 %v907, 0.03125
        %v909 = vadd.f32 %v908, 1e-05
        %v910 = vrsqrt.pop %v909
        %v911 = vmul.f32 %v904, %v910
        %v913 = vlaneseq
        %v914 = vshrl.u32 %v913, 7
        %v915 = vsub.s32 0, %v914
        %v916 = vrot.slane %v898, %v915
        %v918 = vmul.f32 %v911, %v916
        %v920 = vlaneseq
        %v921 = vshrl.u32 %v920, 7
        %v922 = vsub.s32 0, %v921
        %v923 = vrot.slane %v899, %v922
        %v925 = vadd.f32 %v918, %v923
        %v926 = vpack.c.bf16 %v925, %v925
        %v927 = vld [vmem:[#allocation7] sm:$0xff]
        %v928 = vld [vmem:[#allocation7 + $0x8] sm:$0xf]
        %v929 = vld [vmem:[#allocation7 + $0xc] sm:$0xff]
        %v930 = vld [vmem:[#allocation7 + $0x14] sm:$0xf]
        %v931 = vld [vmem:[#allocation7 + $0x18] sm:$0xff]
        %v932 = vld [vmem:[#allocation7 + $0x20] sm:$0xf]
        %v933 = vld [vmem:[#allocation7 + $0x24] sm:$0xff]
        %v934 = vld [vmem:[#allocation7 + $0x2c] sm:$0xf]
        %v935 = vld [vmem:[#allocation7 + $0x30] sm:$0xff]
        %v936 = vld [vmem:[#allocation7 + $0x38] sm:$0xf]
        %v937 = vld [vmem:[#allocation7 + $0x3c] sm:$0xff]
        %v938 = vld [vmem:[#allocation7 + $0x44] sm:$0xf]
        %v939 = vld [vmem:[#allocation7 + $0x48] sm:$0xff]
        %v940 = vld [vmem:[#allocation7 + $0x50] sm:$0xf]
        %v941 = vld [vmem:[#allocation7 + $0x54] sm:$0xff]
        %v942 = vld [vmem:[#allocation7 + $0x5c] sm:$0xf]
        %v943 = vld [vmem:[#allocation7 + $0x60] sm:$0xff]
        %v944 = vld [vmem:[#allocation7 + $0x68] sm:$0xf]
        %v945 = vld [vmem:[#allocation7 + $0x6c] sm:$0xff]
        %v946 = vld [vmem:[#allocation7 + $0x74] sm:$0xf]
        %v947 = vld [vmem:[#allocation7 + $0x78] sm:$0xff]
        %v948 = vld [vmem:[#allocation7 + $0x80] sm:$0xf]
        %v949 = vld [vmem:[#allocation7 + $0x84] sm:$0xff]
        %v950 = vld [vmem:[#allocation7 + $0x8c] sm:$0xf]
        %v951 = vld [vmem:[#allocation7 + $0x90] sm:$0xff]
        %v952 = vld [vmem:[#allocation7 + $0x98] sm:$0xf]
        %v953 = vld [vmem:[#allocation7 + $0x9c] sm:$0xff]
        %v954 = vld [vmem:[#allocation7 + $0xa4] sm:$0xf]
        %v955 = vld [vmem:[#allocation7 + $0xa8] sm:$0xff]
        %v956 = vld [vmem:[#allocation7 + $0xb0] sm:$0xf]
        %v957 = vld [vmem:[#allocation7 + $0xb4] sm:$0xff]
        %v958 = vld [vmem:[#allocation7 + $0xbc] sm:$0xf]
        %v959 = vld [vmem:[%s10] sm:$0x7]
        %v961 = vlaneseq
        %v962 = vshrl.u32 %v961, 7
        %v963 = vsub.s32 0, %v962
        %v964 = vrot.slane %v959, %v963
        %v965 = vlaneseq
        %v966 = vshrl.u32 %v965, 7
        %v967 = vsub.s32 1, %v966
        %v968 = vrot.slane %v959, %v967
        %v969 = vlaneseq
        %v970 = vshrl.u32 %v969, 7
        %v971 = vsub.s32 2, %v970
        %v972 = vrot.slane %v959, %v971
        %v1008 = vunpack.c.l.b16 %v927
        %v1009 = vunpack.c.h.b16 %v927
        %v1010 = vunpack.c.l.b16 %v928
        %v1011 = vunpack.c.l.b16 %v929
        %v1012 = vunpack.c.h.b16 %v929
        %v1013 = vunpack.c.l.b16 %v930
        %v1014 = vunpack.c.l.b16 %v931
        %v1015 = vunpack.c.h.b16 %v931
        %v1016 = vunpack.c.l.b16 %v932
        %v1017 = vunpack.c.l.b16 %v933
        %v1018 = vunpack.c.h.b16 %v933
        %v1019 = vunpack.c.l.b16 %v934
        %v1020 = vunpack.c.l.b16 %v935
        %v1021 = vunpack.c.h.b16 %v935
        %v1022 = vunpack.c.l.b16 %v936
        %v1023 = vunpack.c.l.b16 %v937
        %v1024 = vunpack.c.h.b16 %v937
        %v1025 = vunpack.c.l.b16 %v938
        %v1026 = vunpack.c.l.b16 %v939
        %v1027 = vunpack.c.h.b16 %v939
        %v1028 = vunpack.c.l.b16 %v940
        %v1029 = vunpack.c.l.b16 %v941
        %v1030 = vunpack.c.h.b16 %v941
        %v1031 = vunpack.c.l.b16 %v942
        %v1032 = vunpack.c.l.b16 %v943
        %v1033 = vunpack.c.h.b16 %v943
        %v1034 = vunpack.c.l.b16 %v944
        %v1035 = vunpack.c.l.b16 %v945
        %v1036 = vunpack.c.h.b16 %v945
        %v1037 = vunpack.c.l.b16 %v946
        %v1038 = vunpack.c.l.b16 %v947
        %v1039 = vunpack.c.h.b16 %v947
        %v1040 = vunpack.c.l.b16 %v948
        %v1041 = vunpack.c.l.b16 %v949
        %v1042 = vunpack.c.h.b16 %v949
        %v1043 = vunpack.c.l.b16 %v950
        %v1044 = vunpack.c.l.b16 %v951
        %v1045 = vunpack.c.h.b16 %v951
        %v1046 = vunpack.c.l.b16 %v952
        %v1047 = vunpack.c.l.b16 %v953
        %v1048 = vunpack.c.h.b16 %v953
        %v1049 = vunpack.c.l.b16 %v954
        %v1050 = vunpack.c.l.b16 %v955
        %v1051 = vunpack.c.h.b16 %v955
        %v1052 = vunpack.c.l.b16 %v956
        %v1053 = vunpack.c.l.b16 %v957
        %v1054 = vunpack.c.h.b16 %v957
        %v1055 = vunpack.c.l.b16 %v958
        %v1056 = vpack.c.b16 %v1011, %v1008
        %v1057 = vpack.c.b16 %v1012, %v1009
        %v1058 = vpack.c.b16 %v1013, %v1010
        %v1059 = vpack.c.b16 %v1017, %v1014
        %v1060 = vpack.c.b16 %v1018, %v1015
        %v1061 = vpack.c.b16 %v1019, %v1016
        %v1062 = vpack.c.b16 %v1023, %v1020
        %v1063 = vpack.c.b16 %v1024, %v1021
        %v1064 = vpack.c.b16 %v1025, %v1022
        %v1065 = vpack.c.b16 %v1029, %v1026
        %v1066 = vpack.c.b16 %v1030, %v1027
        %v1067 = vpack.c.b16 %v1031, %v1028
        %v1068 = vpack.c.b16 %v1035, %v1032
        %v1069 = vpack.c.b16 %v1036, %v1033
        %v1070 = vpack.c.b16 %v1037, %v1034
        %v1071 = vpack.c.b16 %v1041, %v1038
        %v1072 = vpack.c.b16 %v1042, %v1039
        %v1073 = vpack.c.b16 %v1043, %v1040
        %v1074 = vpack.c.b16 %v1047, %v1044
        %v1075 = vpack.c.b16 %v1048, %v1045
        %v1076 = vpack.c.b16 %v1049, %v1046
        %v1077 = vpack.c.b16 %v1053, %v1050
        %v1078 = vpack.c.b16 %v1054, %v1051
        %v1079 = vpack.c.b16 %v1055, %v1052
        %1104 = vmatprep.subr.bf16.mxu0 %v1057
        %1105 = vmatpush1.bf16.msra.mxu0 %v1056
        %1106 = vmatprep.subr.bf16.mxu0 %v1060
        %1107 = vmatpush1.bf16.msra.mxu0 %v1059
        %1108 = vmatprep.subr.bf16.mxu0 %v1063
        %1109 = vmatpush1.bf16.msra.mxu0 %v1062
        %1110 = vmatprep.subr.bf16.mxu0 %v1066
        %1111 = vmatpush1.bf16.msra.mxu0 %v1065
        %1112 = vmatprep.subr.bf16.mxu0 %v1069
        %1113 = vmatpush1.bf16.msra.mxu0 %v1068
        %1114 = vmatprep.subr.bf16.mxu0 %v1072
        %1115 = vmatpush1.bf16.msra.mxu0 %v1071
        %1116 = vmatprep.subr.bf16.mxu0 %v1075
        %1117 = vmatpush1.bf16.msra.mxu0 %v1074
        %1118 = vmatprep.subr.bf16.mxu0 %v1078
        %1119 = vmatpush1.bf16.msra.mxu0 %v1077
        %1120 = vmatprep.subr.bf16.mxu0 0
        %1121 = vmatpush1.bf16.msra.mxu0 0
        %1122 = vmatprep.subr.bf16.mxu0 0
        %1123 = vmatpush1.bf16.msra.mxu0 0
        %1124 = vmatprep.subr.bf16.mxu0 0
        %1125 = vmatpush1.bf16.msra.mxu0 0
        %1126 = vmatprep.subr.bf16.mxu0 0
        %1127 = vmatpush1.bf16.msra.mxu0 0
        %1128 = vmatprep.subr.bf16.mxu0 0
        %1129 = vmatpush1.bf16.msra.mxu0 0
        %1130 = vmatprep.subr.bf16.mxu0 0
        %1131 = vmatpush1.bf16.msra.mxu0 0
        %1132 = vmatprep.subr.bf16.mxu0 0
        %1133 = vmatpush1.bf16.msra.mxu0 0
        %1134 = vmatprep.subr.bf16.mxu0 0
        %1135 = vmatpush1.bf16.msra.mxu0 0
        %1136 = vmatprep.mubr.bf16.mxu0 0
        %1137 = vmatmul.mubr.bf16.gmra.mrb[0].mxu0 %v926
        %v1138 = vpop.f32.mrb[0].mxu0
        %v1139 = vadd.f32 %v964, %v1138
        %v1140 = vpop.f32.mrb[0].mxu0
        %v1141 = vadd.f32 %v968, %v1140
        %v1142 = vpop.f32.mrb[0].mxu0
        %v1143 = vpop.f32.mrb[0].mxu0
        %1144 = vdwg.mxu0
        %1145 = vmatprep.subr.bf16.mxu0 0
        %1146 = vmatpush1.bf16.msra.mxu0 %v1058
        %1147 = vmatprep.subr.bf16.mxu0 0
        %1148 = vmatpush1.bf16.msra.mxu0 %v1061
        %1149 = vmatprep.subr.bf16.mxu0 0
        %1150 = vmatpush1.bf16.msra.mxu0 %v1064
        %1151 = vmatprep.subr.bf16.mxu0 0
        %1152 = vmatpush1.bf16.msra.mxu0 %v1067
        %1153 = vmatprep.subr.bf16.mxu0 0
        %1154 = vmatpush1.bf16.msra.mxu0 %v1070
        %1155 = vmatprep.subr.bf16.mxu0 0
        %1156 = vmatpush1.bf16.msra.mxu0 %v1073
        %1157 = vmatprep.subr.bf16.mxu0 0
        %1158 = vmatpush1.bf16.msra.mxu0 %v1076
        %1159 = vmatprep.subr.bf16.mxu0 0
        %1160 = vmatpush1.bf16.msra.mxu0 %v1079
        %1161 = vmatprep.subr.bf16.mxu0 0
        %1162 = vmatpush1.bf16.msra.mxu0 0
        %1163 = vmatprep.subr.bf16.mxu0 0
        %1164 = vmatpush1.bf16.msra.mxu0 0
        %1165 = vmatprep.subr.bf16.mxu0 0
        %1166 = vmatpush1.bf16.msra.mxu0 0
        %1167 = vmatprep.subr.bf16.mxu0 0
        %1168 = vmatpush1.bf16.msra.mxu0 0
        %1169 = vmatprep.subr.bf16.mxu0 0
        %1170 = vmatpush1.bf16.msra.mxu0 0
        %1171 = vmatprep.subr.bf16.mxu0 0
        %1172 = vmatpush1.bf16.msra.mxu0 0
        %1173 = vmatprep.subr.bf16.mxu0 0
        %1174 = vmatpush1.bf16.msra.mxu0 0
        %1175 = vmatprep.subr.bf16.mxu0 0
        %1176 = vmatpush1.bf16.msra.mxu0 0
        %1177 = vmatprep.mubr.bf16.mxu0 0
        %1178 = vmatmul.mubr.bf16.gmra.mrb[0].mxu0 %v926
        %v1179 = vpop.f32.mrb[0].mxu0
        %v1180 = vadd.f32 %v972, %v1179
        %v1181 = vpop.f32.mrb[0].mxu0
        %v1182 = vpop.f32.mrb[0].mxu0
        %v1183 = vpop.f32.mrb[0].mxu0
        %1184 = vdwg.mxu0
        %1186 = vset.pattern.permute.xlu0 0
        %1187 = vperm.xlu0 %1186, %v897
        %v1188 = vpop.permute.xlu0 %1187
        %v1190 = vmul.f32 %v1188, %v749
        %v1191 = vadd.f32 %v1141, %v1190
        %v1192 = vpack.c.bf16 %v1191, %v1191
        %v1193 = vmul.f32 %v1139, %v755
        %v1194 = vpack.c.bf16 %v1193, %v1193
        %1195 = vmatprep.subr.bf16.mxu0 0
        %1196 = vmatpush1.bf16.xpose.msra.mxu0 %v1192
        %1197 = vmatprep.subr.bf16.mxu0 0
        %1198 = vmatpush1.bf16.xpose.msra.mxu0 0
        %1199 = vmatprep.subr.bf16.mxu0 0
        %1200 = vmatpush1.bf16.xpose.msra.mxu0 0
        %1201 = vmatprep.subr.bf16.mxu0 0
        %1202 = vmatpush1.bf16.xpose.msra.mxu0 0
        %1203 = vmatprep.subr.bf16.mxu0 0
        %1204 = vmatpush1.bf16.xpose.msra.mxu0 0
        %1205 = vmatprep.subr.bf16.mxu0 0
        %1206 = vmatpush1.bf16.xpose.msra.mxu0 0
        %1207 = vmatprep.subr.bf16.mxu0 0
        %1208 = vmatpush1.bf16.xpose.msra.mxu0 0
        %1209 = vmatprep.subr.bf16.mxu0 0
        %1210 = vmatpush1.bf16.xpose.msra.mxu0 0
        %1211 = vmatprep.subr.bf16.mxu0 0
        %1212 = vmatpush1.bf16.xpose.msra.mxu0 0
        %1213 = vmatprep.subr.bf16.mxu0 0
        %1214 = vmatpush1.bf16.xpose.msra.mxu0 0
        %1215 = vmatprep.subr.bf16.mxu0 0
        %1216 = vmatpush1.bf16.xpose.msra.mxu0 0
        %1217 = vmatprep.subr.bf16.mxu0 0
        %1218 = vmatpush1.bf16.xpose.msra.mxu0 0
        %1219 = vmatprep.subr.bf16.mxu0 0
        %1220 = vmatpush1.bf16.xpose.msra.mxu0 0
        %1221 = vmatprep.subr.bf16.mxu0 0
        %1222 = vmatpush1.bf16.xpose.msra.mxu0 0
        %1223 = vmatprep.subr.bf16.mxu0 0
        %1224 = vmatpush1.bf16.xpose.msra.mxu0 0
        %1225 = vmatprep.subr.bf16.mxu0 0
        %1226 = vmatpush1.bf16.xpose.msra.mxu0 0
        %1227 = vmatprep.mubr.bf16.mxu0 0
        %1228 = vmatmul.mubr.bf16.gmra.mrb[0].mxu0 %v1194
        %v1229 = vpop.f32.mrb[0].mxu0
        %v1230 = vadd.f32 0.0, %v1229
        %v1231 = vpop.f32.mrb[0].mxu0
        %v1232 = vpop.f32.mrb[0].mxu0
        %v1233 = vpop.f32.mrb[0].mxu0
        %1234 = vdwg.mxu0
        %v1235 = vmul.f32 %v1230, 0.35355338
        %vm1236 = vcmask 64512
        %v1237 = vsel %vm1236, %v1235, -inf
        %1238 = vmax.xlane.f32.xlu0 %v1237
        %v1239 = vpop.xlane.xlu0 %1238
        %v1240 = vsub.f32 %v1235, %v1239
        %v1241 = vmul.f32 %v1240, 1.442695
        %v1242 = vpow.pop %v1241
        %v1243 = vsel %vm1236, %v1242, 0.0
        %1244 = vadd.xlane.f32.xlu0 %v1243
        %v1245 = vpop.xlane.xlu0 %1244
        %v1246 = vrcp.pop %v1245
        %v1247 = vmul.f32 %v1242, %v1246
        %v1248 = vpack.c.bf16 %v1247, %v1247
        %v1249 = vmul.f32 %v1180, %v757
        %v1250 = vpack.c.bf16 %v1249, %v1249
        %v1251 = vmul.f32 %v1139, %v763
        %v1252 = vpack.c.bf16 %v1251, %v1251
        %1253 = vmatprep.subr.bf16.mxu0 0
        %1254 = vmatpush1.bf16.xpose.msra.mxu0 %v1192
        %1255 = vmatprep.subr.bf16.mxu0 0
        %1256 = vmatpush1.bf16.xpose.msra.mxu0 0
        %1257 = vmatprep.subr.bf16.mxu0 0
        %1258 = vmatpush1.bf16.xpose.msra.mxu0 0
        %1259 = vmatprep.subr.bf16.mxu0 0
        %1260 = vmatpush1.bf16.xpose.msra.mxu0 0
        %1261 = vmatprep.subr.bf16.mxu0 0
        %1262 = vmatpush1.bf16.xpose.msra.mxu0 0
        %1263 = vmatprep.subr.bf16.mxu0 0
        %1264 = vmatpush1.bf16.xpose.msra.mxu0 0
        %1265 = vmatprep.subr.bf16.mxu0 0
        %1266 = vmatpush1.bf16.xpose.msra.mxu0 0
        %1267 = vmatprep.subr.bf16.mxu0 0
        %1268 = vmatpush1.bf16.xpose.msra.mxu0 0
        %1269 = vmatprep.subr.bf16.mxu0 0
        %1270 = vmatpush1.bf16.xpose.msra.mxu0 0
        %1271 = vmatprep.subr.bf16.mxu0 0
        %1272 = vmatpush1.bf16.xpose.msra.mxu0 0
        %1273 = vmatprep.subr.bf16.mxu0 0
        %1274 = vmatpush1.bf16.xpose.msra.mxu0 0
        %1275 = vmatprep.subr.bf16.mxu0 0
        %1276 = vmatpush1.bf16.xpose.msra.mxu0 0
        %1277 = vmatprep.subr.bf16.mxu0 0
        %1278 = vmatpush1.bf16.xpose.msra.mxu0 0
        %1279 = vmatprep.subr.bf16.mxu0 0
        %1280 = vmatpush1.bf16.xpose.msra.mxu0 0
        %1281 = vmatprep.subr.bf16.mxu0 0
        %1282 = vmatpush1.bf16.xpose.msra.mxu0 0
        %1283 = vmatprep.subr.bf16.mxu0 0
        %1284 = vmatpush1.bf16.xpose.msra.mxu0 0
        %1285 = vmatprep.mubr.bf16.mxu0 0
        %1286 = vmatmul.mubr.bf16.gmra.mrb[0].mxu0 %v1252
        %v1287 = vpop.f32.mrb[0].mxu0
        %v1288 = vadd.f32 0.0, %v1287
        %v1289 = vpop.f32.mrb[0].mxu0
        %v1290 = vpop.f32.mrb[0].mxu0
        %v1291 = vpop.f32.mrb[0].mxu0
        %1292 = vdwg.mxu0
        %v1293 = vmul.f32 %v1288, 0.35355338
        %v1294 = vsel %vm1236, %v1293, -inf
        %1295 = vmax.xlane.f32.xlu0 %v1294
        %v1296 = vpop.xlane.xlu0 %1295
        %v1297 = vsub.f32 %v1293, %v1296
        %v1298 = vmul.f32 %v1297, 1.442695
        %v1299 = vpow.pop %v1298
        %v1300 = vsel %vm1236, %v1299, 0.0
        %1301 = vadd.xlane.f32.xlu0 %v1300
        %v1302 = vpop.xlane.xlu0 %1301
        %v1303 = vrcp.pop %v1302
        %v1304 = vmul.f32 %v1299, %v1303
        %v1305 = vpack.c.bf16 %v1304, %v1304
        %v1306 = vmul.f32 %v1180, %v765
        %v1307 = vpack.c.bf16 %v1306, %v1306
        %v1309 = vsel %vm1236, %v1305, 0
        %vm1311 = vcmask 1043456
        %v1313 = vsel %vm1311, %v1307, 0
        %1315 = vmatprep.subr.bf16.mxu0 0
        %1316 = vmatpush1.bf16.msra.mxu0 %v1313
        %1317 = vmatprep.subr.bf16.mxu0 0
        %1318 = vmatpush1.bf16.msra.mxu0 0
        %1319 = vmatprep.subr.bf16.mxu0 0
        %1320 = vmatpush1.bf16.msra.mxu0 0
        %1321 = vmatprep.subr.bf16.mxu0 0
        %1322 = vmatpush1.bf16.msra.mxu0 0
        %1323 = vmatprep.subr.bf16.mxu0 0
        %1324 = vmatpush1.bf16.msra.mxu0 0
        %1325 = vmatprep.subr.bf16.mxu0 0
        %1326 = vmatpush1.bf16.msra.mxu0 0
        %1327 = vmatprep.subr.bf16.mxu0 0
        %1328 = vmatpush1.bf16.msra.mxu0 0
        %1329 = vmatprep.subr.bf16.mxu0 0
        %1330 = vmatpush1.bf16.msra.mxu0 0
        %1331 = vmatprep.subr.bf16.mxu0 0
        %1332 = vmatpush1.bf16.msra.mxu0 0
        %1333 = vmatprep.subr.bf16.mxu0 0
        %1334 = vmatpush1.bf16.msra.mxu0 0
        %1335 = vmatprep.subr.bf16.mxu0 0
        %1336 = vmatpush1.bf16.msra.mxu0 0
        %1337 = vmatprep.subr.bf16.mxu0 0
        %1338 = vmatpush1.bf16.msra.mxu0 0
        %1339 = vmatprep.subr.bf16.mxu0 0
        %1340 = vmatpush1.bf16.msra.mxu0 0
        %1341 = vmatprep.subr.bf16.mxu0 0
        %1342 = vmatpush1.bf16.msra.mxu0 0
        %1343 = vmatprep.subr.bf16.mxu0 0
        %1344 = vmatpush1.bf16.msra.mxu0 0
        %1345 = vmatprep.subr.bf16.mxu0 0
        %1346 = vmatpush1.bf16.msra.mxu0 0
        %1347 = vmatprep.mubr.bf16.mxu0 0
        %1348 = vmatmul.mubr.bf16.gmra.mrb[0].mxu0 %v1309
        %v1349 = vpop.f32.mrb[0].mxu0
        %v1350 = vadd.f32 0.0, %v1349
        %v1351 = vpop.f32.mrb[0].mxu0
        %v1352 = vpop.f32.mrb[0].mxu0
        %v1353 = vpop.f32.mrb[0].mxu0
        %1354 = vdwg.mxu0
        %v1356 = vsel %vm1236, %v1248, 0
        %v1359 = vsel %vm1311, %v1250, 0
        %1361 = vmatprep.subr.bf16.mxu0 0
        %1362 = vmatpush1.bf16.msra.mxu0 %v1359
        %1363 = vmatprep.subr.bf16.mxu0 0
        %1364 = vmatpush1.bf16.msra.mxu0 0
        %1365 = vmatprep.subr.bf16.mxu0 0
        %1366 = vmatpush1.bf16.msra.mxu0 0
        %1367 = vmatprep.subr.bf16.mxu0 0
        %1368 = vmatpush1.bf16.msra.mxu0 0
        %1369 = vmatprep.subr.bf16.mxu0 0
        %1370 = vmatpush1.bf16.msra.mxu0 0
        %1371 = vmatprep.subr.bf16.mxu0 0
        %1372 = vmatpush1.bf16.msra.mxu0 0
        %1373 = vmatprep.subr.bf16.mxu0 0
        %1374 = vmatpush1.bf16.msra.mxu0 0
        %1375 = vmatprep.subr.bf16.mxu0 0
        %1376 = vmatpush1.bf16.msra.mxu0 0
        %1377 = vmatprep.subr.bf16.mxu0 0
        %1378 = vmatpush1.bf16.msra.mxu0 0
        %1379 = vmatprep.subr.bf16.mxu0 0
        %1380 = vmatpush1.bf16.msra.mxu0 0
        %1381 = vmatprep.subr.bf16.mxu0 0
        %1382 = vmatpush1.bf16.msra.mxu0 0
        %1383 = vmatprep.subr.bf16.mxu0 0
        %1384 = vmatpush1.bf16.msra.mxu0 0
        %1385 = vmatprep.subr.bf16.mxu0 0
        %1386 = vmatpush1.bf16.msra.mxu0 0
        %1387 = vmatprep.subr.bf16.mxu0 0
        %1388 = vmatpush1.bf16.msra.mxu0 0
        %1389 = vmatprep.subr.bf16.mxu0 0
        %1390 = vmatpush1.bf16.msra.mxu0 0
        %1391 = vmatprep.subr.bf16.mxu0 0
        %1392 = vmatpush1.bf16.msra.mxu0 0
        %1393 = vmatprep.mubr.bf16.mxu0 0
        %1394 = vmatmul.mubr.bf16.gmra.mrb[0].mxu0 %v1356
        %v1395 = vpop.f32.mrb[0].mxu0
        %v1396 = vadd.f32 %v1350, %v1395
        %v1397 = vpop.f32.mrb[0].mxu0
        %v1398 = vpop.f32.mrb[0].mxu0
        %v1399 = vpop.f32.mrb[0].mxu0
        %1400 = vdwg.mxu0
        %v1401 = vmul.f32 %v1139, %v771
        %v1402 = vpack.c.bf16 %v1401, %v1401
        %1403 = vmatprep.subr.bf16.mxu0 0
        %1404 = vmatpush1.bf16.xpose.msra.mxu0 %v1192
        %1405 = vmatprep.subr.bf16.mxu0 0
        %1406 = vmatpush1.bf16.xpose.msra.mxu0 0
        %1407 = vmatprep.subr.bf16.mxu0 0
        %1408 = vmatpush1.bf16.xpose.msra.mxu0 0
        %1409 = vmatprep.subr.bf16.mxu0 0
        %1410 = vmatpush1.bf16.xpose.msra.mxu0 0
        %1411 = vmatprep.subr.bf16.mxu0 0
        %1412 = vmatpush1.bf16.xpose.msra.mxu0 0
        %1413 = vmatprep.subr.bf16.mxu0 0
        %1414 = vmatpush1.bf16.xpose.msra.mxu0 0
        %1415 = vmatprep.subr.bf16.mxu0 0
        %1416 = vmatpush1.bf16.xpose.msra.mxu0 0
        %1417 = vmatprep.subr.bf16.mxu0 0
        %1418 = vmatpush1.bf16.xpose.msra.mxu0 0
        %1419 = vmatprep.subr.bf16.mxu0 0
        %1420 = vmatpush1.bf16.xpose.msra.mxu0 0
        %1421 = vmatprep.subr.bf16.mxu0 0
        %1422 = vmatpush1.bf16.xpose.msra.mxu0 0
        %1423 = vmatprep.subr.bf16.mxu0 0
        %1424 = vmatpush1.bf16.xpose.msra.mxu0 0
        %1425 = vmatprep.subr.bf16.mxu0 0
        %1426 = vmatpush1.bf16.xpose.msra.mxu0 0
        %1427 = vmatprep.subr.bf16.mxu0 0
        %1428 = vmatpush1.bf16.xpose.msra.mxu0 0
        %1429 = vmatprep.subr.bf16.mxu0 0
        %1430 = vmatpush1.bf16.xpose.msra.mxu0 0
        %1431 = vmatprep.subr.bf16.mxu0 0
        %1432 = vmatpush1.bf16.xpose.msra.mxu0 0
        %1433 = vmatprep.subr.bf16.mxu0 0
        %1434 = vmatpush1.bf16.xpose.msra.mxu0 0
        %1435 = vmatprep.mubr.bf16.mxu0 0
        %1436 = vmatmul.mubr.bf16.gmra.mrb[0].mxu0 %v1402
        %v1437 = vpop.f32.mrb[0].mxu0
        %v1438 = vadd.f32 0.0, %v1437
        %v1439 = vpop.f32.mrb[0].mxu0
        %v1440 = vpop.f32.mrb[0].mxu0
        %v1441 = vpop.f32.mrb[0].mxu0
        %1442 = vdwg.mxu0
        %v1443 = vmul.f32 %v1438, 0.35355338
        %v1444 = vsel %vm1236, %v1443, -inf
        %1445 = vmax.xlane.f32.xlu0 %v1444
        %v1446 = vpop.xlane.xlu0 %1445
        %v1447 = vsub.f32 %v1443, %v1446
        %v1448 = vmul.f32 %v1447, 1.442695
        %v1449 = vpow.pop %v1448
        %v1450 = vsel %vm1236, %v1449, 0.0
        %1451 = vadd.xlane.f32.xlu0 %v1450
        %v1452 = vpop.xlane.xlu0 %1451
        %v1453 = vrcp.pop %v1452
        %v1454 = vmul.f32 %v1449, %v1453
        %v1455 = vpack.c.bf16 %v1454, %v1454
        %v1456 = vmul.f32 %v1180, %v773
        %v1457 = vpack.c.bf16 %v1456, %v1456
        %v1459 = vsel %vm1236, %v1455, 0
        %v1462 = vsel %vm1311, %v1457, 0
        %1464 = vmatprep.subr.bf16.mxu0 0
        %1465 = vmatpush1.bf16.msra.mxu0 %v1462
        %1466 = vmatprep.subr.bf16.mxu0 0
        %1467 = vmatpush1.bf16.msra.mxu0 0
        %1468 = vmatprep.subr.bf16.mxu0 0
        %1469 = vmatpush1.bf16.msra.mxu0 0
        %1470 = vmatprep.subr.bf16.mxu0 0
        %1471 = vmatpush1.bf16.msra.mxu0 0
        %1472 = vmatprep.subr.bf16.mxu0 0
        %1473 = vmatpush1.bf16.msra.mxu0 0
        %1474 = vmatprep.subr.bf16.mxu0 0
        %1475 = vmatpush1.bf16.msra.mxu0 0
        %1476 = vmatprep.subr.bf16.mxu0 0
        %1477 = vmatpush1.bf16.msra.mxu0 0
        %1478 = vmatprep.subr.bf16.mxu0 0
        %1479 = vmatpush1.bf16.msra.mxu0 0
        %1480 = vmatprep.subr.bf16.mxu0 0
        %1481 = vmatpush1.bf16.msra.mxu0 0
        %1482 = vmatprep.subr.bf16.mxu0 0
        %1483 = vmatpush1.bf16.msra.mxu0 0
        %1484 = vmatprep.subr.bf16.mxu0 0
        %1485 = vmatpush1.bf16.msra.mxu0 0
        %1486 = vmatprep.subr.bf16.mxu0 0
        %1487 = vmatpush1.bf16.msra.mxu0 0
        %1488 = vmatprep.subr.bf16.mxu0 0
        %1489 = vmatpush1.bf16.msra.mxu0 0
        %1490 = vmatprep.subr.bf16.mxu0 0
        %1491 = vmatpush1.bf16.msra.mxu0 0
        %1492 = vmatprep.subr.bf16.mxu0 0
        %1493 = vmatpush1.bf16.msra.mxu0 0
        %1494 = vmatprep.subr.bf16.mxu0 0
        %1495 = vmatpush1.bf16.msra.mxu0 0
        %1496 = vmatprep.mubr.bf16.mxu0 0
        %1497 = vmatmul.mubr.bf16.gmra.mrb[0].mxu0 %v1459
        %v1498 = vpop.f32.mrb[0].mxu0
        %v1499 = vadd.f32 0.0, %v1498
        %v1500 = vpop.f32.mrb[0].mxu0
        %v1501 = vpop.f32.mrb[0].mxu0
        %v1502 = vpop.f32.mrb[0].mxu0
        %1503 = vdwg.mxu0
        %v1504 = vadd.f32 %v1396, %v1499
        %v1505 = vmul.f32 %v1139, %v778
        %v1506 = vpack.c.bf16 %v1505, %v1505
        %1507 = vmatprep.subr.bf16.mxu0 0
        %1508 = vmatpush1.bf16.xpose.msra.mxu0 %v1192
        %1509 = vmatprep.subr.bf16.mxu0 0
        %1510 = vmatpush1.bf16.xpose.msra.mxu0 0
        %1511 = vmatprep.subr.bf16.mxu0 0
        %1512 = vmatpush1.bf16.xpose.msra.mxu0 0
        %1513 = vmatprep.subr.bf16.mxu0 0
        %1514 = vmatpush1.bf16.xpose.msra.mxu0 0
        %1515 = vmatprep.subr.bf16.mxu0 0
        %1516 = vmatpush1.bf16.xpose.msra.mxu0 0
        %1517 = vmatprep.subr.bf16.mxu0 0
        %1518 = vmatpush1.bf16.xpose.msra.mxu0 0
        %1519 = vmatprep.subr.bf16.mxu0 0
        %1520 = vmatpush1.bf16.xpose.msra.mxu0 0
        %1521 = vmatprep.subr.bf16.mxu0 0
        %1522 = vmatpush1.bf16.xpose.msra.mxu0 0
        %1523 = vmatprep.subr.bf16.mxu0 0
        %1524 = vmatpush1.bf16.xpose.msra.mxu0 0
        %1525 = vmatprep.subr.bf16.mxu0 0
        %1526 = vmatpush1.bf16.xpose.msra.mxu0 0
        %1527 = vmatprep.subr.bf16.mxu0 0
        %1528 = vmatpush1.bf16.xpose.msra.mxu0 0
        %1529 = vmatprep.subr.bf16.mxu0 0
        %1530 = vmatpush1.bf16.xpose.msra.mxu0 0
        %1531 = vmatprep.subr.bf16.mxu0 0
        %1532 = vmatpush1.bf16.xpose.msra.mxu0 0
        %1533 = vmatprep.subr.bf16.mxu0 0
        %1534 = vmatpush1.bf16.xpose.msra.mxu0 0
        %1535 = vmatprep.subr.bf16.mxu0 0
        %1536 = vmatpush1.bf16.xpose.msra.mxu0 0
        %1537 = vmatprep.subr.bf16.mxu0 0
        %1538 = vmatpush1.bf16.xpose.msra.mxu0 0
        %1539 = vmatprep.mubr.bf16.mxu0 0
        %1540 = vmatmul.mubr.bf16.gmra.mrb[0].mxu0 %v1506
        %v1541 = vpop.f32.mrb[0].mxu0
        %v1542 = vadd.f32 0.0, %v1541
        %v1543 = vpop.f32.mrb[0].mxu0
        %v1544 = vpop.f32.mrb[0].mxu0
        %v1545 = vpop.f32.mrb[0].mxu0
        %1546 = vdwg.mxu0
        %v1547 = vmul.f32 %v1542, 0.35355338
        %v1548 = vsel %vm1236, %v1547, -inf
        %1549 = vmax.xlane.f32.xlu0 %v1548
        %v1550 = vpop.xlane.xlu0 %1549
        %v1551 = vsub.f32 %v1547, %v1550
        %v1552 = vmul.f32 %v1551, 1.442695
        %v1553 = vpow.pop %v1552
        %v1554 = vsel %vm1236, %v1553, 0.0
        %1555 = vadd.xlane.f32.xlu0 %v1554
        %v1556 = vpop.xlane.xlu0 %1555
        %v1557 = vrcp.pop %v1556
        %v1558 = vmul.f32 %v1553, %v1557
        %v1559 = vpack.c.bf16 %v1558, %v1558
        %v1560 = vmul.f32 %v1180, %v780
        %v1561 = vpack.c.bf16 %v1560, %v1560
        %v1563 = vsel %vm1236, %v1559, 0
        %v1566 = vsel %vm1311, %v1561, 0
        %1568 = vmatprep.subr.bf16.mxu0 0
        %1569 = vmatpush1.bf16.msra.mxu0 %v1566
        %1570 = vmatprep.subr.bf16.mxu0 0
        %1571 = vmatpush1.bf16.msra.mxu0 0
        %1572 = vmatprep.subr.bf16.mxu0 0
        %1573 = vmatpush1.bf16.msra.mxu0 0
        %1574 = vmatprep.subr.bf16.mxu0 0
        %1575 = vmatpush1.bf16.msra.mxu0 0
        %1576 = vmatprep.subr.bf16.mxu0 0
        %1577 = vmatpush1.bf16.msra.mxu0 0
        %1578 = vmatprep.subr.bf16.mxu0 0
        %1579 = vmatpush1.bf16.msra.mxu0 0
        %1580 = vmatprep.subr.bf16.mxu0 0
        %1581 = vmatpush1.bf16.msra.mxu0 0
        %1582 = vmatprep.subr.bf16.mxu0 0
        %1583 = vmatpush1.bf16.msra.mxu0 0
        %1584 = vmatprep.subr.bf16.mxu0 0
        %1585 = vmatpush1.bf16.msra.mxu0 0
        %1586 = vmatprep.subr.bf16.mxu0 0
        %1587 = vmatpush1.bf16.msra.mxu0 0
        %1588 = vmatprep.subr.bf16.mxu0 0
        %1589 = vmatpush1.bf16.msra.mxu0 0
        %1590 = vmatprep.subr.bf16.mxu0 0
        %1591 = vmatpush1.bf16.msra.mxu0 0
        %1592 = vmatprep.subr.bf16.mxu0 0
        %1593 = vmatpush1.bf16.msra.mxu0 0
        %1594 = vmatprep.subr.bf16.mxu0 0
        %1595 = vmatpush1.bf16.msra.mxu0 0
        %1596 = vmatprep.subr.bf16.mxu0 0
        %1597 = vmatpush1.bf16.msra.mxu0 0
        %1598 = vmatprep.subr.bf16.mxu0 0
        %1599 = vmatpush1.bf16.msra.mxu0 0
        %1600 = vmatprep.mubr.bf16.mxu0 0
        %1601 = vmatmul.mubr.bf16.gmra.mrb[0].mxu0 %v1563
        %v1602 = vpop.f32.mrb[0].mxu0
        %v1603 = vadd.f32 0.0, %v1602
        %v1604 = vpop.f32.mrb[0].mxu0
        %v1605 = vpop.f32.mrb[0].mxu0
        %v1606 = vpop.f32.mrb[0].mxu0
        %1607 = vdwg.mxu0
        %v1608 = vadd.f32 %v1504, %v1603
        %v1609 = vpack.c.bf16 %v1608, %v1608
        %v1610 = vld [vmem:[#allocation8] sm:$0xf]
        %v1611 = vld [vmem:[#allocation8 + $0x4] sm:$0xf]
        %v1612 = vld [vmem:[#allocation8 + $0x8] sm:$0xf]
        %v1613 = vld [vmem:[#allocation8 + $0xc] sm:$0xf]
        %v1614 = vld [vmem:[#allocation8 + $0x10] sm:$0xf]
        %v1615 = vld [vmem:[#allocation8 + $0x14] sm:$0xf]
        %v1616 = vld [vmem:[#allocation8 + $0x18] sm:$0xf]
        %v1617 = vld [vmem:[#allocation8 + $0x1c] sm:$0xf]
        %v1618 = vld [vmem:[#allocation8 + $0x20] sm:$0xf]
        %v1619 = vld [vmem:[#allocation8 + $0x24] sm:$0xf]
        %v1620 = vld [vmem:[#allocation8 + $0x28] sm:$0xf]
        %v1621 = vld [vmem:[#allocation8 + $0x2c] sm:$0xf]
        %v1622 = vld [vmem:[#allocation8 + $0x30] sm:$0xf]
        %v1623 = vld [vmem:[#allocation8 + $0x34] sm:$0xf]
        %v1624 = vld [vmem:[#allocation8 + $0x38] sm:$0xf]
        %v1625 = vld [vmem:[#allocation8 + $0x3c] sm:$0xf]
        %v1642 = vunpack.c.l.b16 %v1610
        %v1643 = vunpack.c.l.b16 %v1611
        %v1644 = vunpack.c.l.b16 %v1612
        %v1645 = vunpack.c.l.b16 %v1613
        %v1646 = vunpack.c.l.b16 %v1614
        %v1647 = vunpack.c.l.b16 %v1615
        %v1648 = vunpack.c.l.b16 %v1616
        %v1649 = vunpack.c.l.b16 %v1617
        %v1650 = vunpack.c.l.b16 %v1618
        %v1651 = vunpack.c.l.b16 %v1619
        %v1652 = vunpack.c.l.b16 %v1620
        %v1653 = vunpack.c.l.b16 %v1621
        %v1654 = vunpack.c.l.b16 %v1622
        %v1655 = vunpack.c.l.b16 %v1623
        %v1656 = vunpack.c.l.b16 %v1624
        %v1657 = vunpack.c.l.b16 %v1625
        %v1658 = vpack.c.b16 %v1643, %v1642
        %v1659 = vpack.c.b16 %v1645, %v1644
        %v1660 = vpack.c.b16 %v1647, %v1646
        %v1661 = vpack.c.b16 %v1649, %v1648
        %v1662 = vpack.c.b16 %v1651, %v1650
        %v1663 = vpack.c.b16 %v1653, %v1652
        %v1664 = vpack.c.b16 %v1655, %v1654
        %v1665 = vpack.c.b16 %v1657, %v1656
        %1674 = vmatprep.subr.bf16.mxu0 0
        %1675 = vmatpush1.bf16.msra.mxu0 %v1658
        %1676 = vmatprep.subr.bf16.mxu0 0
        %1677 = vmatpush1.bf16.msra.mxu0 %v1659
        %1678 = vmatprep.subr.bf16.mxu0 0
        %1679 = vmatpush1.bf16.msra.mxu0 %v1660
        %1680 = vmatprep.subr.bf16.mxu0 0
        %1681 = vmatpush1.bf16.msra.mxu0 %v1661
        %1682 = vmatprep.subr.bf16.mxu0 0
        %1683 = vmatpush1.bf16.msra.mxu0 %v1662
        %1684 = vmatprep.subr.bf16.mxu0 0
        %1685 = vmatpush1.bf16.msra.mxu0 %v1663
        %1686 = vmatprep.subr.bf16.mxu0 0
        %1687 = vmatpush1.bf16.msra.mxu0 %v1664
        %1688 = vmatprep.subr.bf16.mxu0 0
        %1689 = vmatpush1.bf16.msra.mxu0 %v1665
        %1690 = vmatprep.subr.bf16.mxu0 0
        %1691 = vmatpush1.bf16.msra.mxu0 0
        %1692 = vmatprep.subr.bf16.mxu0 0
        %1693 = vmatpush1.bf16.msra.mxu0 0
        %1694 = vmatprep.subr.bf16.mxu0 0
        %1695 = vmatpush1.bf16.msra.mxu0 0
        %1696 = vmatprep.subr.bf16.mxu0 0
        %1697 = vmatpush1.bf16.msra.mxu0 0
        %1698 = vmatprep.subr.bf16.mxu0 0
        %1699 = vmatpush1.bf16.msra.mxu0 0
        %1700 = vmatprep.subr.bf16.mxu0 0
        %1701 = vmatpush1.bf16.msra.mxu0 0
        %1702 = vmatprep.subr.bf16.mxu0 0
        %1703 = vmatpush1.bf16.msra.mxu0 0
        %1704 = vmatprep.subr.bf16.mxu0 0
        %1705 = vmatpush1.bf16.msra.mxu0 0
        %1706 = vmatprep.mubr.bf16.mxu0 0
        %1707 = vmatmul.mubr.bf16.gmra.mrb[0].mxu0 %v1609
        %v1708 = vpop.f32.mrb[0].mxu0
        %v1709 = vadd.f32 0.0, %v1708
        %v1710 = vpop.f32.mrb[0].mxu0
        %v1711 = vpop.f32.mrb[0].mxu0
        %v1712 = vpop.f32.mrb[0].mxu0
        %1713 = vdwg.mxu0
        %v1714 = vadd.f32 %v889, %v1709
        %v1715 = vld [vmem:[%s12] sm:$0x1]
        %v1717 = vlaneseq
        %v1718 = vshrl.u32 %v1717, 7
        %v1719 = vsub.s32 0, %v1718
        %v1720 = vrot.slane %v1715, %v1719
        %v1722 = vadd.f32 %v1714, %v1720
        %v1723 = vld [vmem:[%s13] sm:$0x1]
        %v1724 = vld [vmem:[%s14] sm:$0x1]
        %1725 = vadd.xlane.f32.xlu0 %v1722
        %v1726 = vpop.xlane.xlu0 %1725
        %v1727 = vmul.f32 %v1726, 0.03125
        %v1728 = vsub.f32 %v1722, %v1727
        %v1729 = vmul.f32 %v1728, %v746
        %v1730 = vmul.f32 %v1729, %v1729
        %1731 = vadd.xlane.f32.xlu0 %v1730
        %v1732 = vpop.xlane.xlu0 %1731
        %v1733 = vmul.f32 %v1732, 0.03125
        %v1734 = vadd.f32 %v1733, 1e-05
        %v1735 = vrsqrt.pop %v1734
        %v1736 = vmul.f32 %v1729, %v1735
        %v1738 = vlaneseq
        %v1739 = vshrl.u32 %v1738, 7
        %v1740 = vsub.s32 0, %v1739
        %v1741 = vrot.slane %v1723, %v1740
        %v1743 = vmul.f32 %v1736, %v1741
        %v1745 = vlaneseq
        %v1746 = vshrl.u32 %v1745, 7
        %v1747 = vsub.s32 0, %v1746
        %v1748 = vrot.slane %v1724, %v1747
        %v1750 = vadd.f32 %v1743, %v1748
        %v1751 = vpack.c.bf16 %v1750, %v1750
        %v1752 = vld [vmem:[#allocation10] sm:$0xf]
        %v1753 = vld [vmem:[#allocation10 + $0x4] sm:$0xf]
        %v1754 = vld [vmem:[#allocation10 + $0x8] sm:$0xf]
        %v1755 = vld [vmem:[#allocation10 + $0xc] sm:$0xf]
        %v1756 = vld [vmem:[#allocation10 + $0x10] sm:$0xf]
        %v1757 = vld [vmem:[#allocation10 + $0x14] sm:$0xf]
        %v1758 = vld [vmem:[#allocation10 + $0x18] sm:$0xf]
        %v1759 = vld [vmem:[#allocation10 + $0x1c] sm:$0xf]
        %v1760 = vld [vmem:[#allocation10 + $0x20] sm:$0xf]
        %v1761 = vld [vmem:[#allocation10 + $0x24] sm:$0xf]
        %v1762 = vld [vmem:[#allocation10 + $0x28] sm:$0xf]
        %v1763 = vld [vmem:[#allocation10 + $0x2c] sm:$0xf]
        %v1764 = vld [vmem:[#allocation10 + $0x30] sm:$0xf]
        %v1765 = vld [vmem:[#allocation10 + $0x34] sm:$0xf]
        %v1766 = vld [vmem:[#allocation10 + $0x38] sm:$0xf]
        %v1767 = vld [vmem:[#allocation10 + $0x3c] sm:$0xf]
        %v1768 = vld [vmem:[%s16] sm:$0x1]
        %v1770 = vlaneseq
        %v1771 = vshrl.u32 %v1770, 7
        %v1772 = vsub.s32 0, %v1771
        %v1773 = vrot.slane %v1768, %v1772
        %v1791 = vunpack.c.l.b16 %v1752
        %v1792 = vunpack.c.l.b16 %v1753
        %v1793 = vunpack.c.l.b16 %v1754
        %v1794 = vunpack.c.l.b16 %v1755
        %v1795 = vunpack.c.l.b16 %v1756
        %v1796 = vunpack.c.l.b16 %v1757
        %v1797 = vunpack.c.l.b16 %v1758
        %v1798 = vunpack.c.l.b16 %v1759
        %v1799 = vunpack.c.l.b16 %v1760
        %v1800 = vunpack.c.l.b16 %v1761
        %v1801 = vunpack.c.l.b16 %v1762
        %v1802 = vunpack.c.l.b16 %v1763
        %v1803 = vunpack.c.l.b16 %v1764
        %v1804 = vunpack.c.l.b16 %v1765
        %v1805 = vunpack.c.l.b16 %v1766
        %v1806 = vunpack.c.l.b16 %v1767
        %v1807 = vpack.c.b16 %v1792, %v1791
        %v1808 = vpack.c.b16 %v1794, %v1793
        %v1809 = vpack.c.b16 %v1796, %v1795
        %v1810 = vpack.c.b16 %v1798, %v1797
        %v1811 = vpack.c.b16 %v1800, %v1799
        %v1812 = vpack.c.b16 %v1802, %v1801
        %v1813 = vpack.c.b16 %v1804, %v1803
        %v1814 = vpack.c.b16 %v1806, %v1805
        %1823 = vmatprep.subr.bf16.mxu0 0
        %1824 = vmatpush1.bf16.msra.mxu0 %v1807
        %1825 = vmatprep.subr.bf16.mxu0 0
        %1826 = vmatpush1.bf16.msra.mxu0 %v1808
        %1827 = vmatprep.subr.bf16.mxu0 0
        %1828 = vmatpush1.bf16.msra.mxu0 %v1809
        %1829 = vmatprep.subr.bf16.mxu0 0
        %1830 = vmatpush1.bf16.msra.mxu0 %v1810
        %1831 = vmatprep.subr.bf16.mxu0 0
        %1832 = vmatpush1.bf16.msra.mxu0 %v1811
        %1833 = vmatprep.subr.bf16.mxu0 0
        %1834 = vmatpush1.bf16.msra.mxu0 %v1812
        %1835 = vmatprep.subr.bf16.mxu0 0
        %1836 = vmatpush1.bf16.msra.mxu0 %v1813
        %1837 = vmatprep.subr.bf16.mxu0 0
        %1838 = vmatpush1.bf16.msra.mxu0 %v1814
        %1839 = vmatprep.subr.bf16.mxu0 0
        %1840 = vmatpush1.bf16.msra.mxu0 0
        %1841 = vmatprep.subr.bf16.mxu0 0
        %1842 = vmatpush1.bf16.msra.mxu0 0
        %1843 = vmatprep.subr.bf16.mxu0 0
        %1844 = vmatpush1.bf16.msra.mxu0 0
        %1845 = vmatprep.subr.bf16.mxu0 0
        %1846 = vmatpush1.bf16.msra.mxu0 0
        %1847 = vmatprep.subr.bf16.mxu0 0
        %1848 = vmatpush1.bf16.msra.mxu0 0
        %1849 = vmatprep.subr.bf16.mxu0 0
        %1850 = vmatpush1.bf16.msra.mxu0 0
        %1851 = vmatprep.subr.bf16.mxu0 0
        %1852 = vmatpush1.bf16.msra.mxu0 0
        %1853 = vmatprep.subr.bf16.mxu0 0
        %1854 = vmatpush1.bf16.msra.mxu0 0
        %1855 = vmatprep.mubr.bf16.mxu0 0
        %1856 = vmatmul.mubr.bf16.gmra.mrb[0].mxu0 %v1751
        %v1857 = vpop.f32.mrb[0].mxu0
        %v1858 = vadd.f32 %v1773, %v1857
        %v1859 = vpop.f32.mrb[0].mxu0
        %v1860 = vpop.f32.mrb[0].mxu0
        %v1861 = vpop.f32.mrb[0].mxu0
        %1862 = vdwg.mxu0
        %v1863 = vmul.f32 %v1858, %v1858
        %v1864 = vmul.f32 %v1858, %v1863
        %v1865 = vmul.f32 %v1864, 0.044715
        %v1866 = vadd.f32 %v1858, %v1865
        %v1867 = vmul.f32 %v1866, 0.7978846
        %v1868 = vtanh.pop %v1867
        %v1869 = vadd.f32 %v1868, 1.0
        %v1870 = vmul.f32 %v1869, 0.5
        %v1871 = vmul.f32 %v1858, %v1870
        %v1872 = vpack.c.bf16 %v1871, %v1871
        %v1873 = vld [vmem:[#allocation11] sm:$0xf]
        %v1874 = vld [vmem:[#allocation11 + $0x4] sm:$0xf]
        %v1875 = vld [vmem:[#allocation11 + $0x8] sm:$0xf]
        %v1876 = vld [vmem:[#allocation11 + $0xc] sm:$0xf]
        %v1877 = vld [vmem:[#allocation11 + $0x10] sm:$0xf]
        %v1878 = vld [vmem:[#allocation11 + $0x14] sm:$0xf]
        %v1879 = vld [vmem:[#allocation11 + $0x18] sm:$0xf]
        %v1880 = vld [vmem:[#allocation11 + $0x1c] sm:$0xf]
        %v1881 = vld [vmem:[#allocation11 + $0x20] sm:$0xf]
        %v1882 = vld [vmem:[#allocation11 + $0x24] sm:$0xf]
        %v1883 = vld [vmem:[#allocation11 + $0x28] sm:$0xf]
        %v1884 = vld [vmem:[#allocation11 + $0x2c] sm:$0xf]
        %v1885 = vld [vmem:[#allocation11 + $0x30] sm:$0xf]
        %v1886 = vld [vmem:[#allocation11 + $0x34] sm:$0xf]
        %v1887 = vld [vmem:[#allocation11 + $0x38] sm:$0xf]
        %v1888 = vld [vmem:[#allocation11 + $0x3c] sm:$0xf]
        %v1905 = vunpack.c.l.b16 %v1873
        %v1906 = vunpack.c.l.b16 %v1874
        %v1907 = vunpack.c.l.b16 %v1875
        %v1908 = vunpack.c.l.b16 %v1876
        %v1909 = vunpack.c.l.b16 %v1877
        %v1910 = vunpack.c.l.b16 %v1878
        %v1911 = vunpack.c.l.b16 %v1879
        %v1912 = vunpack.c.l.b16 %v1880
        %v1913 = vunpack.c.l.b16 %v1881
        %v1914 = vunpack.c.l.b16 %v1882
        %v1915 = vunpack.c.l.b16 %v1883
        %v1916 = vunpack.c.l.b16 %v1884
        %v1917 = vunpack.c.l.b16 %v1885
        %v1918 = vunpack.c.l.b16 %v1886
        %v1919 = vunpack.c.l.b16 %v1887
        %v1920 = vunpack.c.l.b16 %v1888
        %v1921 = vpack.c.b16 %v1906, %v1905
        %v1922 = vpack.c.b16 %v1908, %v1907
        %v1923 = vpack.c.b16 %v1910, %v1909
        %v1924 = vpack.c.b16 %v1912, %v1911
        %v1925 = vpack.c.b16 %v1914, %v1913
        %v1926 = vpack.c.b16 %v1916, %v1915
        %v1927 = vpack.c.b16 %v1918, %v1917
        %v1928 = vpack.c.b16 %v1920, %v1919
        %1937 = vmatprep.subr.bf16.mxu0 0
        %1938 = vmatpush1.bf16.msra.mxu0 %v1921
        %1939 = vmatprep.subr.bf16.mxu0 0
        %1940 = vmatpush1.bf16.msra.mxu0 %v1922
        %1941 = vmatprep.subr.bf16.mxu0 0
        %1942 = vmatpush1.bf16.msra.mxu0 %v1923
        %1943 = vmatprep.subr.bf16.mxu0 0
        %1944 = vmatpush1.bf16.msra.mxu0 %v1924
        %1945 = vmatprep.subr.bf16.mxu0 0
        %1946 = vmatpush1.bf16.msra.mxu0 %v1925
        %1947 = vmatprep.subr.bf16.mxu0 0
        %1948 = vmatpush1.bf16.msra.mxu0 %v1926
        %1949 = vmatprep.subr.bf16.mxu0 0
        %1950 = vmatpush1.bf16.msra.mxu0 %v1927
        %1951 = vmatprep.subr.bf16.mxu0 0
        %1952 = vmatpush1.bf16.msra.mxu0 %v1928
        %1953 = vmatprep.subr.bf16.mxu0 0
        %1954 = vmatpush1.bf16.msra.mxu0 0
        %1955 = vmatprep.subr.bf16.mxu0 0
        %1956 = vmatpush1.bf16.msra.mxu0 0
        %1957 = vmatprep.subr.bf16.mxu0 0
        %1958 = vmatpush1.bf16.msra.mxu0 0
        %1959 = vmatprep.subr.bf16.mxu0 0
        %1960 = vmatpush1.bf16.msra.mxu0 0
        %1961 = vmatprep.subr.bf16.mxu0 0
        %1962 = vmatpush1.bf16.msra.mxu0 0
        %1963 = vmatprep.subr.bf16.mxu0 0
        %1964 = vmatpush1.bf16.msra.mxu0 0
        %1965 = vmatprep.subr.bf16.mxu0 0
        %1966 = vmatpush1.bf16.msra.mxu0 0
        %1967 = vmatprep.subr.bf16.mxu0 0
        %1968 = vmatpush1.bf16.msra.mxu0 0
        %1969 = vmatprep.mubr.bf16.mxu0 0
        %1970 = vmatmul.mubr.bf16.gmra.mrb[0].mxu0 %v1872
        %v1971 = vpop.f32.mrb[0].mxu0
        %v1972 = vadd.f32 0.0, %v1971
        %v1973 = vpop.f32.mrb[0].mxu0
        %v1974 = vpop.f32.mrb[0].mxu0
        %v1975 = vpop.f32.mrb[0].mxu0
        %1976 = vdwg.mxu0
        %v1977 = vadd.f32 %v1722, %v1972
        %v1978 = vld [vmem:[%s18] sm:$0x1]
        %v1980 = vlaneseq
        %v1981 = vshrl.u32 %v1980, 7
        %v1982 = vsub.s32 0, %v1981
        %v1983 = vrot.slane %v1978, %v1982
        %v1985 = vadd.f32 %v1977, %v1983
        %s1986 = scalar_lea.vmem %s7, 1
        %v1987 = vld [vmem:[%s1986] sm:$0x1]
        %s1988 = scalar_lea.vmem %s8, 1
        %v1989 = vld [vmem:[%s1988] sm:$0x1]
        %1990 = vadd.xlane.f32.xlu0 %v1985
        %v1991 = vpop.xlane.xlu0 %1990
        %v1992 = vmul.f32 %v1991, 0.03125
        %v1993 = vsub.f32 %v1985, %v1992
        %v1994 = vmul.f32 %v1993, %v746
        %v1995 = vmul.f32 %v1994, %v1994
        %1996 = vadd.xlane.f32.xlu0 %v1995
        %v1997 = vpop.xlane.xlu0 %1996
        %v1998 = vmul.f32 %v1997, 0.03125
        %v1999 = vadd.f32 %v1998, 1e-05
        %v2000 = vrsqrt.pop %v1999
        %v2001 = vmul.f32 %v1994, %v2000
        %v2003 = vlaneseq
        %v2004 = vshrl.u32 %v2003, 7
        %v2005 = vsub.s32 0, %v2004
        %v2006 = vrot.slane %v1987, %v2005
        %v2008 = vmul.f32 %v2001, %v2006
        %v2010 = vlaneseq
        %v2011 = vshrl.u32 %v2010, 7
        %v2012 = vsub.s32 0, %v2011
        %v2013 = vrot.slane %v1989, %v2012
        %v2015 = vadd.f32 %v2008, %v2013
        %v2016 = vpack.c.bf16 %v2015, %v2015
        %s2017 = scalar_lea.vmem [#allocation7], 192
        %v2018 = vld [vmem:[%s2017] sm:$0xff]
        %v2019 = vld [vmem:[%s2017 + $0x8] sm:$0xf]
        %v2020 = vld [vmem:[%s2017 + $0xc] sm:$0xff]
        %v2021 = vld [vmem:[%s2017 + $0x14] sm:$0xf]
        %v2022 = vld [vmem:[%s2017 + $0x18] sm:$0xff]
        %v2023 = vld [vmem:[%s2017 + $0x20] sm:$0xf]
        %v2024 = vld [vmem:[%s2017 + $0x24] sm:$0xff]
        %v2025 = vld [vmem:[%s2017 + $0x2c] sm:$0xf]
        %v2026 = vld [vmem:[%s2017 + $0x30] sm:$0xff]
        %v2027 = vld [vmem:[%s2017 + $0x38] sm:$0xf]
        %v2028 = vld [vmem:[%s2017 + $0x3c] sm:$0xff]
        %v2029 = vld [vmem:[%s2017 + $0x44] sm:$0xf]
        %v2030 = vld [vmem:[%s2017 + $0x48] sm:$0xff]
        %v2031 = vld [vmem:[%s2017 + $0x50] sm:$0xf]
        %v2032 = vld [vmem:[%s2017 + $0x54] sm:$0xff]
        %v2033 = vld [vmem:[%s2017 + $0x5c] sm:$0xf]
        %v2034 = vld [vmem:[%s2017 + $0x60] sm:$0xff]
        %v2035 = vld [vmem:[%s2017 + $0x68] sm:$0xf]
        %v2036 = vld [vmem:[%s2017 + $0x6c] sm:$0xff]
        %v2037 = vld [vmem:[%s2017 + $0x74] sm:$0xf]
        %v2038 = vld [vmem:[%s2017 + $0x78] sm:$0xff]
        %v2039 = vld [vmem:[%s2017 + $0x80] sm:$0xf]
        %v2040 = vld [vmem:[%s2017 + $0x84] sm:$0xff]
        %v2041 = vld [vmem:[%s2017 + $0x8c] sm:$0xf]
        %v2042 = vld [vmem:[%s2017 + $0x90] sm:$0xff]
        %v2043 = vld [vmem:[%s2017 + $0x98] sm:$0xf]
        %v2044 = vld [vmem:[%s2017 + $0x9c] sm:$0xff]
        %v2045 = vld [vmem:[%s2017 + $0xa4] sm:$0xf]
        %v2046 = vld [vmem:[%s2017 + $0xa8] sm:$0xff]
        %v2047 = vld [vmem:[%s2017 + $0xb0] sm:$0xf]
        %v2048 = vld [vmem:[%s2017 + $0xb4] sm:$0xff]
        %v2049 = vld [vmem:[%s2017 + $0xbc] sm:$0xf]
        %s2050 = scalar_lea.vmem %s10, 3
        %v2051 = vld [vmem:[%s2050] sm:$0x7]
        %v2053 = vlaneseq
        %v2054 = vshrl.u32 %v2053, 7
        %v2055 = vsub.s32 0, %v2054
        %v2056 = vrot.slane %v2051, %v2055
        %v2057 = vlaneseq
        %v2058 = vshrl.u32 %v2057, 7
        %v2059 = vsub.s32 1, %v2058
        %v2060 = vrot.slane %v2051, %v2059
        %v2061 = vlaneseq
        %v2062 = vshrl.u32 %v2061, 7
        %v2063 = vsub.s32 2, %v2062
        %v2064 = vrot.slane %v2051, %v2063
        %v2100 = vunpack.c.l.b16 %v2018
        %v2101 = vunpack.c.h.b16 %v2018
        %v2102 = vunpack.c.l.b16 %v2019
        %v2103 = vunpack.c.l.b16 %v2020
        %v2104 = vunpack.c.h.b16 %v2020
        %v2105 = vunpack.c.l.b16 %v2021
        %v2106 = vunpack.c.l.b16 %v2022
        %v2107 = vunpack.c.h.b16 %v2022
        %v2108 = vunpack.c.l.b16 %v2023
        %v2109 = vunpack.c.l.b16 %v2024
        %v2110 = vunpack.c.h.b16 %v2024
        %v2111 = vunpack.c.l.b16 %v2025
        %v2112 = vunpack.c.l.b16 %v2026
        %v2113 = vunpack.c.h.b16 %v2026
        %v2114 = vunpack.c.l.b16 %v2027
        %v2115 = vunpack.c.l.b16 %v2028
        %v2116 = vunpack.c.h.b16 %v2028
        %v2117 = vunpack.c.l.b16 %v2029
        %v2118 = vunpack.c.l.b16 %v2030
        %v2119 = vunpack.c.h.b16 %v2030
        %v2120 = vunpack.c.l.b16 %v2031
        %v2121 = vunpack.c.l.b16 %v2032
        %v2122 = vunpack.c.h.b16 %v2032
        %v2123 = vunpack.c.l.b16 %v2033
        %v2124 = vunpack.c.l.b16 %v2034
        %v2125 = vunpack.c.h.b16 %v2034
        %v2126 = vunpack.c.l.b16 %v2035
        %v2127 = vunpack.c.l.b16 %v2036
        %v2128 = vunpack.c.h.b16 %v2036
        %v2129 = vunpack.c.l.b16 %v2037
        %v2130 = vunpack.c.l.b16 %v2038
        %v2131 = vunpack.c.h.b16 %v2038
        %v2132 = vunpack.c.l.b16 %v2039
        %v2133 = vunpack.c.l.b16 %v2040
        %v2134 = vunpack.c.h.b16 %v2040
        %v2135 = vunpack.c.l.b16 %v2041
        %v2136 = vunpack.c.l.b16 %v2042
        %v2137 = vunpack.c.h.b16 %v2042
        %v2138 = vunpack.c.l.b16 %v2043
        %v2139 = vunpack.c.l.b16 %v2044
        %v2140 = vunpack.c.h.b16 %v2044
        %v2141 = vunpack.c.l.b16 %v2045
        %v2142 = vunpack.c.l.b16 %v2046
        %v2143 = vunpack.c.h.b16 %v2046
        %v2144 = vunpack.c.l.b16 %v2047
        %v2145 = vunpack.c.l.b16 %v2048
        %v2146 = vunpack.c.h.b16 %v2048
        %v2147 = vunpack.c.l.b16 %v2049
        %v2148 = vpack.c.b16 %v2103, %v2100
        %v2149 = vpack.c.b16 %v2104, %v2101
        %v2150 = vpack.c.b16 %v2105, %v2102
        %v2151 = vpack.c.b16 %v2109, %v2106
        %v2152 = vpack.c.b16 %v2110, %v2107
        %v2153 = vpack.c.b16 %v2111, %v2108
        %v2154 = vpack.c.b16 %v2115, %v2112
        %v2155 = vpack.c.b16 %v2116, %v2113
        %v2156 = vpack.c.b16 %v2117, %v2114
        %v2157 = vpack.c.b16 %v2121, %v2118
        %v2158 = vpack.c.b16 %v2122, %v2119
        %v2159 = vpack.c.b16 %v2123, %v2120
        %v2160 = vpack.c.b16 %v2127, %v2124
        %v2161 = vpack.c.b16 %v2128, %v2125
        %v2162 = vpack.c.b16 %v2129, %v2126
        %v2163 = vpack.c.b16 %v2133, %v2130
        %v2164 = vpack.c.b16 %v2134, %v2131
        %v2165 = vpack.c.b16 %v2135, %v2132
        %v2166 = vpack.c.b16 %v2139, %v2136
        %v2167 = vpack.c.b16 %v2140, %v2137
        %v2168 = vpack.c.b16 %v2141, %v2138
        %v2169 = vpack.c.b16 %v2145, %v2142
        %v2170 = vpack.c.b16 %v2146, %v2143
        %v2171 = vpack.c.b16 %v2147, %v2144
        %2196 = vmatprep.subr.bf16.mxu0 %v2149
        %2197 = vmatpush1.bf16.msra.mxu0 %v2148
        %2198 = vmatprep.subr.bf16.mxu0 %v2152
        %2199 = vmatpush1.bf16.msra.mxu0 %v2151
        %2200 = vmatprep.subr.bf16.mxu0 %v2155
        %2201 = vmatpush1.bf16.msra.mxu0 %v2154
        %2202 = vmatprep.subr.bf16.mxu0 %v2158
        %2203 = vmatpush1.bf16.msra.mxu0 %v2157
        %2204 = vmatprep.subr.bf16.mxu0 %v2161
        %2205 = vmatpush1.bf16.msra.mxu0 %v2160
        %2206 = vmatprep.subr.bf16.mxu0 %v2164
        %2207 = vmatpush1.bf16.msra.mxu0 %v2163
        %2208 = vmatprep.subr.bf16.mxu0 %v2167
        %2209 = vmatpush1.bf16.msra.mxu0 %v2166
        %2210 = vmatprep.subr.bf16.mxu0 %v2170
        %2211 = vmatpush1.bf16.msra.mxu0 %v2169
        %2212 = vmatprep.subr.bf16.mxu0 0
        %2213 = vmatpush1.bf16.msra.mxu0 0
        %2214 = vmatprep.subr.bf16.mxu0 0
        %2215 = vmatpush1.bf16.msra.mxu0 0
        %2216 = vmatprep.subr.bf16.mxu0 0
        %2217 = vmatpush1.bf16.msra.mxu0 0
        %2218 = vmatprep.subr.bf16.mxu0 0
        %2219 = vmatpush1.bf16.msra.mxu0 0
        %2220 = vmatprep.subr.bf16.mxu0 0
        %2221 = vmatpush1.bf16.msra.mxu0 0
        %2222 = vmatprep.subr.bf16.mxu0 0
        %2223 = vmatpush1.bf16.msra.mxu0 0
        %2224 = vmatprep.subr.bf16.mxu0 0
        %2225 = vmatpush1.bf16.msra.mxu0 0
        %2226 = vmatprep.subr.bf16.mxu0 0
        %2227 = vmatpush1.bf16.msra.mxu0 0
        %2228 = vmatprep.mubr.bf16.mxu0 0
        %2229 = vmatmul.mubr.bf16.gmra.mrb[0].mxu0 %v2016
        %v2230 = vpop.f32.mrb[0].mxu0
        %v2231 = vadd.f32 %v2056, %v2230
        %v2232 = vpop.f32.mrb[0].mxu0
        %v2233 = vadd.f32 %v2060, %v2232
        %v2234 = vpop.f32.mrb[0].mxu0
        %v2235 = vpop.f32.mrb[0].mxu0
        %2236 = vdwg.mxu0
        %2237 = vmatprep.subr.bf16.mxu0 0
        %2238 = vmatpush1.bf16.msra.mxu0 %v2150
        %2239 = vmatprep.subr.bf16.mxu0 0
        %2240 = vmatpush1.bf16.msra.mxu0 %v2153
        %2241 = vmatprep.subr.bf16.mxu0 0
        %2242 = vmatpush1.bf16.msra.mxu0 %v2156
        %2243 = vmatprep.subr.bf16.mxu0 0
        %2244 = vmatpush1.bf16.msra.mxu0 %v2159
        %2245 = vmatprep.subr.bf16.mxu0 0
        %2246 = vmatpush1.bf16.msra.mxu0 %v2162
        %2247 = vmatprep.subr.bf16.mxu0 0
        %2248 = vmatpush1.bf16.msra.mxu0 %v2165
        %2249 = vmatprep.subr.bf16.mxu0 0
        %2250 = vmatpush1.bf16.msra.mxu0 %v2168
        %2251 = vmatprep.subr.bf16.mxu0 0
        %2252 = vmatpush1.bf16.msra.mxu0 %v2171
        %2253 = vmatprep.subr.bf16.mxu0 0
        %2254 = vmatpush1.bf16.msra.mxu0 0
        %2255 = vmatprep.subr.bf16.mxu0 0
        %2256 = vmatpush1.bf16.msra.mxu0 0
        %2257 = vmatprep.subr.bf16.mxu0 0
        %2258 = vmatpush1.bf16.msra.mxu0 0
        %2259 = vmatprep.subr.bf16.mxu0 0
        %2260 = vmatpush1.bf16.msra.mxu0 0
        %2261 = vmatprep.subr.bf16.mxu0 0
        %2262 = vmatpush1.bf16.msra.mxu0 0
        %2263 = vmatprep.subr.bf16.mxu0 0
        %2264 = vmatpush1.bf16.msra.mxu0 0
        %2265 = vmatprep.subr.bf16.mxu0 0
        %2266 = vmatpush1.bf16.msra.mxu0 0
        %2267 = vmatprep.subr.bf16.mxu0 0
        %2268 = vmatpush1.bf16.msra.mxu0 0
        %2269 = vmatprep.mubr.bf16.mxu0 0
        %2270 = vmatmul.mubr.bf16.gmra.mrb[0].mxu0 %v2016
        %v2271 = vpop.f32.mrb[0].mxu0
        %v2272 = vadd.f32 %v2064, %v2271
        %v2273 = vpop.f32.mrb[0].mxu0
        %v2274 = vpop.f32.mrb[0].mxu0
        %v2275 = vpop.f32.mrb[0].mxu0
        %2276 = vdwg.mxu0
        %v2277 = vadd.f32 %v2233, %v1190
        %v2278 = vpack.c.bf16 %v2277, %v2277
        %v2279 = vmul.f32 %v2231, %v755
        %v2280 = vpack.c.bf16 %v2279, %v2279
        %2281 = vmatprep.subr.bf16.mxu0 0
        %2282 = vmatpush1.bf16.xpose.msra.mxu0 %v2278
        %2283 = vmatprep.subr.bf16.mxu0 0
        %2284 = vmatpush1.bf16.xpose.msra.mxu0 0
        %2285 = vmatprep.subr.bf16.mxu0 0
        %2286 = vmatpush1.bf16.xpose.msra.mxu0 0
        %2287 = vmatprep.subr.bf16.mxu0 0
        %2288 = vmatpush1.bf16.xpose.msra.mxu0 0
        %2289 = vmatprep.subr.bf16.mxu0 0
        %2290 = vmatpush1.bf16.xpose.msra.mxu0 0
        %2291 = vmatprep.subr.bf16.mxu0 0
        %2292 = vmatpush1.bf16.xpose.msra.mxu0 0
        %2293 = vmatprep.subr.bf16.mxu0 0
        %2294 = vmatpush1.bf16.xpose.msra.mxu0 0
        %2295 = vmatprep.subr.bf16.mxu0 0
        %2296 = vmatpush1.bf16.xpose.msra.mxu0 0
        %2297 = vmatprep.subr.bf16.mxu0 0
        %2298 = vmatpush1.bf16.xpose.msra.mxu0 0
        %2299 = vmatprep.subr.bf16.mxu0 0
        %2300 = vmatpush1.bf16.xpose.msra.mxu0 0
        %2301 = vmatprep.subr.bf16.mxu0 0
        %2302 = vmatpush1.bf16.xpose.msra.mxu0 0
        %2303 = vmatprep.subr.bf16.mxu0 0
        %2304 = vmatpush1.bf16.xpose.msra.mxu0 0
        %2305 = vmatprep.subr.bf16.mxu0 0
        %2306 = vmatpush1.bf16.xpose.msra.mxu0 0
        %2307 = vmatprep.subr.bf16.mxu0 0
        %2308 = vmatpush1.bf16.xpose.msra.mxu0 0
        %2309 = vmatprep.subr.bf16.mxu0 0
        %2310 = vmatpush1.bf16.xpose.msra.mxu0 0
        %2311 = vmatprep.subr.bf16.mxu0 0
        %2312 = vmatpush1.bf16.xpose.msra.mxu0 0
        %2313 = vmatprep.mubr.bf16.mxu0 0
        %2314 = vmatmul.mubr.bf16.gmra.mrb[0].mxu0 %v2280
        %v2315 = vpop.f32.mrb[0].mxu0
        %v2316 = vadd.f32 0.0, %v2315
        %v2317 = vpop.f32.mrb[0].mxu0
        %v2318 = vpop.f32.mrb[0].mxu0
        %v2319 = vpop.f32.mrb[0].mxu0
        %2320 = vdwg.mxu0
        %v2321 = vmul.f32 %v2316, 0.35355338
        %v2322 = vsel %vm1236, %v2321, -inf
        %2323 = vmax.xlane.f32.xlu0 %v2322
        %v2324 = vpop.xlane.xlu0 %2323
        %v2325 = vsub.f32 %v2321, %v2324
        %v2326 = vmul.f32 %v2325, 1.442695
        %v2327 = vpow.pop %v2326
        %v2328 = vsel %vm1236, %v2327, 0.0
        %2329 = vadd.xlane.f32.xlu0 %v2328
        %v2330 = vpop.xlane.xlu0 %2329
        %v2331 = vrcp.pop %v2330
        %v2332 = vmul.f32 %v2327, %v2331
        %v2333 = vpack.c.bf16 %v2332, %v2332
        %v2334 = vmul.f32 %v2272, %v757
        %v2335 = vpack.c.bf16 %v2334, %v2334
        %v2336 = vmul.f32 %v2231, %v763
        %v2337 = vpack.c.bf16 %v2336, %v2336
        %2338 = vmatprep.subr.bf16.mxu0 0
        %2339 = vmatpush1.bf16.xpose.msra.mxu0 %v2278
        %2340 = vmatprep.subr.bf16.mxu0 0
        %2341 = vmatpush1.bf16.xpose.msra.mxu0 0
        %2342 = vmatprep.subr.bf16.mxu0 0
        %2343 = vmatpush1.bf16.xpose.msra.mxu0 0
        %2344 = vmatprep.subr.bf16.mxu0 0
        %2345 = vmatpush1.bf16.xpose.msra.mxu0 0
        %2346 = vmatprep.subr.bf16.mxu0 0
        %2347 = vmatpush1.bf16.xpose.msra.mxu0 0
        %2348 = vmatprep.subr.bf16.mxu0 0
        %2349 = vmatpush1.bf16.xpose.msra.mxu0 0
        %2350 = vmatprep.subr.bf16.mxu0 0
        %2351 = vmatpush1.bf16.xpose.msra.mxu0 0
        %2352 = vmatprep.subr.bf16.mxu0 0
        %2353 = vmatpush1.bf16.xpose.msra.mxu0 0
        %2354 = vmatprep.subr.bf16.mxu0 0
        %2355 = vmatpush1.bf16.xpose.msra.mxu0 0
        %2356 = vmatprep.subr.bf16.mxu0 0
        %2357 = vmatpush1.bf16.xpose.msra.mxu0 0
        %2358 = vmatprep.subr.bf16.mxu0 0
        %2359 = vmatpush1.bf16.xpose.msra.mxu0 0
        %2360 = vmatprep.subr.bf16.mxu0 0
        %2361 = vmatpush1.bf16.xpose.msra.mxu0 0
        %2362 = vmatprep.subr.bf16.mxu0 0
        %2363 = vmatpush1.bf16.xpose.msra.mxu0 0
        %2364 = vmatprep.subr.bf16.mxu0 0
        %2365 = vmatpush1.bf16.xpose.msra.mxu0 0
        %2366 = vmatprep.subr.bf16.mxu0 0
        %2367 = vmatpush1.bf16.xpose.msra.mxu0 0
        %2368 = vmatprep.subr.bf16.mxu0 0
        %2369 = vmatpush1.bf16.xpose.msra.mxu0 0
        %2370 = vmatprep.mubr.bf16.mxu0 0
        %2371 = vmatmul.mubr.bf16.gmra.mrb[0].mxu0 %v2337
        %v2372 = vpop.f32.mrb[0].mxu0
        %v2373 = vadd.f32 0.0, %v2372
        %v2374 = vpop.f32.mrb[0].mxu0
        %v2375 = vpop.f32.mrb[0].mxu0
        %v2376 = vpop.f32.mrb[0].mxu0
        %2377 = vdwg.mxu0
        %v2378 = vmul.f32 %v2373, 0.35355338
        %v2379 = vsel %vm1236, %v2378, -inf
        %2380 = vmax.xlane.f32.xlu0 %v2379
        %v2381 = vpop.xlane.xlu0 %2380
        %v2382 = vsub.f32 %v2378, %v2381
        %v2383 = vmul.f32 %v2382, 1.442695
        %v2384 = vpow.pop %v2383
        %v2385 = vsel %vm1236, %v2384, 0.0
        %2386 = vadd.xlane.f32.xlu0 %v2385
        %v2387 = vpop.xlane.xlu0 %2386
        %v2388 = vrcp.pop %v2387
        %v2389 = vmul.f32 %v2384, %v2388
        %v2390 = vpack.c.bf16 %v2389, %v2389
        %v2391 = vmul.f32 %v2272, %v765
        %v2392 = vpack.c.bf16 %v2391, %v2391
        %v2394 = vsel %vm1236, %v2390, 0
        %v2397 = vsel %vm1311, %v2392, 0
        %2399 = vmatprep.subr.bf16.mxu0 0
        %2400 = vmatpush1.bf16.msra.mxu0 %v2397
        %2401 = vmatprep.subr.bf16.mxu0 0
        %2402 = vmatpush1.bf16.msra.mxu0 0
        %2403 = vmatprep.subr.bf16.mxu0 0
        %2404 = vmatpush1.bf16.msra.mxu0 0
        %2405 = vmatprep.subr.bf16.mxu0 0
        %2406 = vmatpush1.bf16.msra.mxu0 0
        %2407 = vmatprep.subr.bf16.mxu0 0
        %2408 = vmatpush1.bf16.msra.mxu0 0
        %2409 = vmatprep.subr.bf16.mxu0 0
        %2410 = vmatpush1.bf16.msra.mxu0 0
        %2411 = vmatprep.subr.bf16.mxu0 0
        %2412 = vmatpush1.bf16.msra.mxu0 0
        %2413 = vmatprep.subr.bf16.mxu0 0
        %2414 = vmatpush1.bf16.msra.mxu0 0
        %2415 = vmatprep.subr.bf16.mxu0 0
        %2416 = vmatpush1.bf16.msra.mxu0 0
        %2417 = vmatprep.subr.bf16.mxu0 0
        %2418 = vmatpush1.bf16.msra.mxu0 0
        %2419 = vmatprep.subr.bf16.mxu0 0
        %2420 = vmatpush1.bf16.msra.mxu0 0
        %2421 = vmatprep.subr.bf16.mxu0 0
        %2422 = vmatpush1.bf16.msra.mxu0 0
        %2423 = vmatprep.subr.bf16.mxu0 0
        %2424 = vmatpush1.bf16.msra.mxu0 0
        %2425 = vmatprep.subr.bf16.mxu0 0
        %2426 = vmatpush1.bf16.msra.mxu0 0
        %2427 = vmatprep.subr.bf16.mxu0 0
        %2428 = vmatpush1.bf16.msra.mxu0 0
        %2429 = vmatprep.subr.bf16.mxu0 0
        %2430 = vmatpush1.bf16.msra.mxu0 0
        %2431 = vmatprep.mubr.bf16.mxu0 0
        %2432 = vmatmul.mubr.bf16.gmra.mrb[0].mxu0 %v2394
        %v2433 = vpop.f32.mrb[0].mxu0
        %v2434 = vadd.f32 0.0, %v2433
        %v2435 = vpop.f32.mrb[0].mxu0
        %v2436 = vpop.f32.mrb[0].mxu0
        %v2437 = vpop.f32.mrb[0].mxu0
        %2438 = vdwg.mxu0
        %v2440 = vsel %vm1236, %v2333, 0
        %v2443 = vsel %vm1311, %v2335, 0
        %2445 = vmatprep.subr.bf16.mxu0 0
        %2446 = vmatpush1.bf16.msra.mxu0 %v2443
        %2447 = vmatprep.subr.bf16.mxu0 0
        %2448 = vmatpush1.bf16.msra.mxu0 0
        %2449 = vmatprep.subr.bf16.mxu0 0
        %2450 = vmatpush1.bf16.msra.mxu0 0
        %2451 = vmatprep.subr.bf16.mxu0 0
        %2452 = vmatpush1.bf16.msra.mxu0 0
        %2453 = vmatprep.subr.bf16.mxu0 0
        %2454 = vmatpush1.bf16.msra.mxu0 0
        %2455 = vmatprep.subr.bf16.mxu0 0
        %2456 = vmatpush1.bf16.msra.mxu0 0
        %2457 = vmatprep.subr.bf16.mxu0 0
        %2458 = vmatpush1.bf16.msra.mxu0 0
        %2459 = vmatprep.subr.bf16.mxu0 0
        %2460 = vmatpush1.bf16.msra.mxu0 0
        %2461 = vmatprep.subr.bf16.mxu0 0
        %2462 = vmatpush1.bf16.msra.mxu0 0
        %2463 = vmatprep.subr.bf16.mxu0 0
        %2464 = vmatpush1.bf16.msra.mxu0 0
        %2465 = vmatprep.subr.bf16.mxu0 0
        %2466 = vmatpush1.bf16.msra.mxu0 0
        %2467 = vmatprep.subr.bf16.mxu0 0
        %2468 = vmatpush1.bf16.msra.mxu0 0
        %2469 = vmatprep.subr.bf16.mxu0 0
        %2470 = vmatpush1.bf16.msra.mxu0 0
        %2471 = vmatprep.subr.bf16.mxu0 0
        %2472 = vmatpush1.bf16.msra.mxu0 0
        %2473 = vmatprep.subr.bf16.mxu0 0
        %2474 = vmatpush1.bf16.msra.mxu0 0
        %2475 = vmatprep.subr.bf16.mxu0 0
        %2476 = vmatpush1.bf16.msra.mxu0 0
        %2477 = vmatprep.mubr.bf16.mxu0 0
        %2478 = vmatmul.mubr.bf16.gmra.mrb[0].mxu0 %v2440
        %v2479 = vpop.f32.mrb[0].mxu0
        %v2480 = vadd.f32 %v2434, %v2479
        %v2481 = vpop.f32.mrb[0].mxu0
        %v2482 = vpop.f32.mrb[0].mxu0
        %v2483 = vpop.f32.mrb[0].mxu0
        %2484 = vdwg.mxu0
        %v2485 = vmul.f32 %v2231, %v771
        %v2486 = vpack.c.bf16 %v2485, %v2485
        %2487 = vmatprep.subr.bf16.mxu0 0
        %2488 = vmatpush1.bf16.xpose.msra.mxu0 %v2278
        %2489 = vmatprep.subr.bf16.mxu0 0
        %2490 = vmatpush1.bf16.xpose.msra.mxu0 0
        %2491 = vmatprep.subr.bf16.mxu0 0
        %2492 = vmatpush1.bf16.xpose.msra.mxu0 0
        %2493 = vmatprep.subr.bf16.mxu0 0
        %2494 = vmatpush1.bf16.xpose.msra.mxu0 0
        %2495 = vmatprep.subr.bf16.mxu0 0
        %2496 = vmatpush1.bf16.xpose.msra.mxu0 0
        %2497 = vmatprep.subr.bf16.mxu0 0
        %2498 = vmatpush1.bf16.xpose.msra.mxu0 0
        %2499 = vmatprep.subr.bf16.mxu0 0
        %2500 = vmatpush1.bf16.xpose.msra.mxu0 0
        %2501 = vmatprep.subr.bf16.mxu0 0
        %2502 = vmatpush1.bf16.xpose.msra.mxu0 0
        %2503 = vmatprep.subr.bf16.mxu0 0
        %2504 = vmatpush1.bf16.xpose.msra.mxu0 0
        %2505 = vmatprep.subr.bf16.mxu0 0
        %2506 = vmatpush1.bf16.xpose.msra.mxu0 0
        %2507 = vmatprep.subr.bf16.mxu0 0
        %2508 = vmatpush1.bf16.xpose.msra.mxu0 0
        %2509 = vmatprep.subr.bf16.mxu0 0
        %2510 = vmatpush1.bf16.xpose.msra.mxu0 0
        %2511 = vmatprep.subr.bf16.mxu0 0
        %2512 = vmatpush1.bf16.xpose.msra.mxu0 0
        %2513 = vmatprep.subr.bf16.mxu0 0
        %2514 = vmatpush1.bf16.xpose.msra.mxu0 0
        %2515 = vmatprep.subr.bf16.mxu0 0
        %2516 = vmatpush1.bf16.xpose.msra.mxu0 0
        %2517 = vmatprep.subr.bf16.mxu0 0
        %2518 = vmatpush1.bf16.xpose.msra.mxu0 0
        %2519 = vmatprep.mubr.bf16.mxu0 0
        %2520 = vmatmul.mubr.bf16.gmra.mrb[0].mxu0 %v2486
        %v2521 = vpop.f32.mrb[0].mxu0
        %v2522 = vadd.f32 0.0, %v2521
        %v2523 = vpop.f32.mrb[0].mxu0
        %v2524 = vpop.f32.mrb[0].mxu0
        %v2525 = vpop.f32.mrb[0].mxu0
        %2526 = vdwg.mxu0
        %v2527 = vmul.f32 %v2522, 0.35355338
        %v2528 = vsel %vm1236, %v2527, -inf
        %2529 = vmax.xlane.f32.xlu0 %v2528
        %v2530 = vpop.xlane.xlu0 %2529
        %v2531 = vsub.f32 %v2527, %v2530
        %v2532 = vmul.f32 %v2531, 1.442695
        %v2533 = vpow.pop %v2532
        %v2534 = vsel %vm1236, %v2533, 0.0
        %2535 = vadd.xlane.f32.xlu0 %v2534
        %v2536 = vpop.xlane.xlu0 %2535
        %v2537 = vrcp.pop %v2536
        %v2538 = vmul.f32 %v2533, %v2537
        %v2539 = vpack.c.bf16 %v2538, %v2538
        %v2540 = vmul.f32 %v2272, %v773
        %v2541 = vpack.c.bf16 %v2540, %v2540
        %v2543 = vsel %vm1236, %v2539, 0
        %v2546 = vsel %vm1311, %v2541, 0
        %2548 = vmatprep.subr.bf16.mxu0 0
        %2549 = vmatpush1.bf16.msra.mxu0 %v2546
        %2550 = vmatprep.subr.bf16.mxu0 0
        %2551 = vmatpush1.bf16.msra.mxu0 0
        %2552 = vmatprep.subr.bf16.mxu0 0
        %2553 = vmatpush1.bf16.msra.mxu0 0
        %2554 = vmatprep.subr.bf16.mxu0 0
        %2555 = vmatpush1.bf16.msra.mxu0 0
        %2556 = vmatprep.subr.bf16.mxu0 0
        %2557 = vmatpush1.bf16.msra.mxu0 0
        %2558 = vmatprep.subr.bf16.mxu0 0
        %2559 = vmatpush1.bf16.msra.mxu0 0
        %2560 = vmatprep.subr.bf16.mxu0 0
        %2561 = vmatpush1.bf16.msra.mxu0 0
        %2562 = vmatprep.subr.bf16.mxu0 0
        %2563 = vmatpush1.bf16.msra.mxu0 0
        %2564 = vmatprep.subr.bf16.mxu0 0
        %2565 = vmatpush1.bf16.msra.mxu0 0
        %2566 = vmatprep.subr.bf16.mxu0 0
        %2567 = vmatpush1.bf16.msra.mxu0 0
        %2568 = vmatprep.subr.bf16.mxu0 0
        %2569 = vmatpush1.bf16.msra.mxu0 0
        %2570 = vmatprep.subr.bf16.mxu0 0
        %2571 = vmatpush1.bf16.msra.mxu0 0
        %2572 = vmatprep.subr.bf16.mxu0 0
        %2573 = vmatpush1.bf16.msra.mxu0 0
        %2574 = vmatprep.subr.bf16.mxu0 0
        %2575 = vmatpush1.bf16.msra.mxu0 0
        %2576 = vmatprep.subr.bf16.mxu0 0
        %2577 = vmatpush1.bf16.msra.mxu0 0
        %2578 = vmatprep.subr.bf16.mxu0 0
        %2579 = vmatpush1.bf16.msra.mxu0 0
        %2580 = vmatprep.mubr.bf16.mxu0 0
        %2581 = vmatmul.mubr.bf16.gmra.mrb[0].mxu0 %v2543
        %v2582 = vpop.f32.mrb[0].mxu0
        %v2583 = vadd.f32 0.0, %v2582
        %v2584 = vpop.f32.mrb[0].mxu0
        %v2585 = vpop.f32.mrb[0].mxu0
        %v2586 = vpop.f32.mrb[0].mxu0
        %2587 = vdwg.mxu0
        %v2588 = vadd.f32 %v2480, %v2583
        %v2589 = vmul.f32 %v2231, %v778
        %v2590 = vpack.c.bf16 %v2589, %v2589
        %2591 = vmatprep.subr.bf16.mxu0 0
        %2592 = vmatpush1.bf16.xpose.msra.mxu0 %v2278
        %2593 = vmatprep.subr.bf16.mxu0 0
        %2594 = vmatpush1.bf16.xpose.msra.mxu0 0
        %2595 = vmatprep.subr.bf16.mxu0 0
        %2596 = vmatpush1.bf16.xpose.msra.mxu0 0
        %2597 = vmatprep.subr.bf16.mxu0 0
        %2598 = vmatpush1.bf16.xpose.msra.mxu0 0
        %2599 = vmatprep.subr.bf16.mxu0 0
        %2600 = vmatpush1.bf16.xpose.msra.mxu0 0
        %2601 = vmatprep.subr.bf16.mxu0 0
        %2602 = vmatpush1.bf16.xpose.msra.mxu0 0
        %2603 = vmatprep.subr.bf16.mxu0 0
        %2604 = vmatpush1.bf16.xpose.msra.mxu0 0
        %2605 = vmatprep.subr.bf16.mxu0 0
        %2606 = vmatpush1.bf16.xpose.msra.mxu0 0
        %2607 = vmatprep.subr.bf16.mxu0 0
        %2608 = vmatpush1.bf16.xpose.msra.mxu0 0
        %2609 = vmatprep.subr.bf16.mxu0 0
        %2610 = vmatpush1.bf16.xpose.msra.mxu0 0
        %2611 = vmatprep.subr.bf16.mxu0 0
        %2612 = vmatpush1.bf16.xpose.msra.mxu0 0
        %2613 = vmatprep.subr.bf16.mxu0 0
        %2614 = vmatpush1.bf16.xpose.msra.mxu0 0
        %2615 = vmatprep.subr.bf16.mxu0 0
        %2616 = vmatpush1.bf16.xpose.msra.mxu0 0
        %2617 = vmatprep.subr.bf16.mxu0 0
        %2618 = vmatpush1.bf16.xpose.msra.mxu0 0
        %2619 = vmatprep.subr.bf16.mxu0 0
        %2620 = vmatpush1.bf16.xpose.msra.mxu0 0
        %2621 = vmatprep.subr.bf16.mxu0 0
        %2622 = vmatpush1.bf16.xpose.msra.mxu0 0
        %2623 = vmatprep.mubr.bf16.mxu0 0
        %2624 = vmatmul.mubr.bf16.gmra.mrb[0].mxu0 %v2590
        %v2625 = vpop.f32.mrb[0].mxu0
        %v2626 = vadd.f32 0.0, %v2625
        %v2627 = vpop.f32.mrb[0].mxu0
        %v2628 = vpop.f32.mrb[0].mxu0
        %v2629 = vpop.f32.mrb[0].mxu0
        %2630 = vdwg.mxu0
        %v2631 = vmul.f32 %v2626, 0.35355338
        %v2632 = vsel %vm1236, %v2631, -inf
        %2633 = vmax.xlane.f32.xlu0 %v2632
        %v2634 = vpop.xlane.xlu0 %2633
        %v2635 = vsub.f32 %v2631, %v2634
        %v2636 = vmul.f32 %v2635, 1.442695
        %v2637 = vpow.pop %v2636
        %v2638 = vsel %vm1236, %v2637, 0.0
        %2639 = vadd.xlane.f32.xlu0 %v2638
        %v2640 = vpop.xlane.xlu0 %2639
        %v2641 = vrcp.pop %v2640
        %v2642 = vmul.f32 %v2637, %v2641
        %v2643 = vpack.c.bf16 %v2642, %v2642
        %v2644 = vmul.f32 %v2272, %v780
        %v2645 = vpack.c.bf16 %v2644, %v2644
        %v2647 = vsel %vm1236, %v2643, 0
        %v2650 = vsel %vm1311, %v2645, 0
        %2652 = vmatprep.subr.bf16.mxu0 0
        %2653 = vmatpush1.bf16.msra.mxu0 %v2650
        %2654 = vmatprep.subr.bf16.mxu0 0
        %2655 = vmatpush1.bf16.msra.mxu0 0
        %2656 = vmatprep.subr.bf16.mxu0 0
        %2657 = vmatpush1.bf16.msra.mxu0 0
        %2658 = vmatprep.subr.bf16.mxu0 0
        %2659 = vmatpush1.bf16.msra.mxu0 0
        %2660 = vmatprep.subr.bf16.mxu0 0
        %2661 = vmatpush1.bf16.msra.mxu0 0
        %2662 = vmatprep.subr.bf16.mxu0 0
        %2663 = vmatpush1.bf16.msra.mxu0 0
        %2664 = vmatprep.subr.bf16.mxu0 0
        %2665 = vmatpush1.bf16.msra.mxu0 0
        %2666 = vmatprep.subr.bf16.mxu0 0
        %2667 = vmatpush1.bf16.msra.mxu0 0
        %2668 = vmatprep.subr.bf16.mxu0 0
        %2669 = vmatpush1.bf16.msra.mxu0 0
        %2670 = vmatprep.subr.bf16.mxu0 0
        %2671 = vmatpush1.bf16.msra.mxu0 0
        %2672 = vmatprep.subr.bf16.mxu0 0
        %2673 = vmatpush1.bf16.msra.mxu0 0
        %2674 = vmatprep.subr.bf16.mxu0 0
        %2675 = vmatpush1.bf16.msra.mxu0 0
        %2676 = vmatprep.subr.bf16.mxu0 0
        %2677 = vmatpush1.bf16.msra.mxu0 0
        %2678 = vmatprep.subr.bf16.mxu0 0
        %2679 = vmatpush1.bf16.msra.mxu0 0
        %2680 = vmatprep.subr.bf16.mxu0 0
        %2681 = vmatpush1.bf16.msra.mxu0 0
        %2682 = vmatprep.subr.bf16.mxu0 0
        %2683 = vmatpush1.bf16.msra.mxu0 0
        %2684 = vmatprep.mubr.bf16.mxu0 0
        %2685 = vmatmul.mubr.bf16.gmra.mrb[0].mxu0 %v2647
        %v2686 = vpop.f32.mrb[0].mxu0
        %v2687 = vadd.f32 0.0, %v2686
        %v2688 = vpop.f32.mrb[0].mxu0
        %v2689 = vpop.f32.mrb[0].mxu0
        %v2690 = vpop.f32.mrb[0].mxu0
        %2691 = vdwg.mxu0
        %v2692 = vadd.f32 %v2588, %v2687
        %v2693 = vpack.c.bf16 %v2692, %v2692
        %s2694 = scalar_lea.vmem [#allocation8], 64
        %v2695 = vld [vmem:[%s2694] sm:$0xf]
        %v2696 = vld [vmem:[%s2694 + $0x4] sm:$0xf]
        %v2697 = vld [vmem:[%s2694 + $0x8] sm:$0xf]
        %v2698 = vld [vmem:[%s2694 + $0xc] sm:$0xf]
        %v2699 = vld [vmem:[%s2694 + $0x10] sm:$0xf]
        %v2700 = vld [vmem:[%s2694 + $0x14] sm:$0xf]
        %v2701 = vld [vmem:[%s2694 + $0x18] sm:$0xf]
        %v2702 = vld [vmem:[%s2694 + $0x1c] sm:$0xf]
        %v2703 = vld [vmem:[%s2694 + $0x20] sm:$0xf]
        %v2704 = vld [vmem:[%s2694 + $0x24] sm:$0xf]
        %v2705 = vld [vmem:[%s2694 + $0x28] sm:$0xf]
        %v2706 = vld [vmem:[%s2694 + $0x2c] sm:$0xf]
        %v2707 = vld [vmem:[%s2694 + $0x30] sm:$0xf]
        %v2708 = vld [vmem:[%s2694 + $0x34] sm:$0xf]
        %v2709 = vld [vmem:[%s2694 + $0x38] sm:$0xf]
        %v2710 = vld [vmem:[%s2694 + $0x3c] sm:$0xf]
        %v2727 = vunpack.c.l.b16 %v2695
        %v2728 = vunpack.c.l.b16 %v2696
        %v2729 = vunpack.c.l.b16 %v2697
        %v2730 = vunpack.c.l.b16 %v2698
        %v2731 = vunpack.c.l.b16 %v2699
        %v2732 = vunpack.c.l.b16 %v2700
        %v2733 = vunpack.c.l.b16 %v2701
        %v2734 = vunpack.c.l.b16 %v2702
        %v2735 = vunpack.c.l.b16 %v2703
        %v2736 = vunpack.c.l.b16 %v2704
        %v2737 = vunpack.c.l.b16 %v2705
        %v2738 = vunpack.c.l.b16 %v2706
        %v2739 = vunpack.c.l.b16 %v2707
        %v2740 = vunpack.c.l.b16 %v2708
        %v2741 = vunpack.c.l.b16 %v2709
        %v2742 = vunpack.c.l.b16 %v2710
        %v2743 = vpack.c.b16 %v2728, %v2727
        %v2744 = vpack.c.b16 %v2730, %v2729
        %v2745 = vpack.c.b16 %v2732, %v2731
        %v2746 = vpack.c.b16 %v2734, %v2733
        %v2747 = vpack.c.b16 %v2736, %v2735
        %v2748 = vpack.c.b16 %v2738, %v2737
        %v2749 = vpack.c.b16 %v2740, %v2739
        %v2750 = vpack.c.b16 %v2742, %v2741
        %2759 = vmatprep.subr.bf16.mxu0 0
        %2760 = vmatpush1.bf16.msra.mxu0 %v2743
        %2761 = vmatprep.subr.bf16.mxu0 0
        %2762 = vmatpush1.bf16.msra.mxu0 %v2744
        %2763 = vmatprep.subr.bf16.mxu0 0
        %2764 = vmatpush1.bf16.msra.mxu0 %v2745
        %2765 = vmatprep.subr.bf16.mxu0 0
        %2766 = vmatpush1.bf16.msra.mxu0 %v2746
        %2767 = vmatprep.subr.bf16.mxu0 0
        %2768 = vmatpush1.bf16.msra.mxu0 %v2747
        %2769 = vmatprep.subr.bf16.mxu0 0
        %2770 = vmatpush1.bf16.msra.mxu0 %v2748
        %2771 = vmatprep.subr.bf16.mxu0 0
        %2772 = vmatpush1.bf16.msra.mxu0 %v2749
        %2773 = vmatprep.subr.bf16.mxu0 0
        %2774 = vmatpush1.bf16.msra.mxu0 %v2750
        %2775 = vmatprep.subr.bf16.mxu0 0
        %2776 = vmatpush1.bf16.msra.mxu0 0
        %2777 = vmatprep.subr.bf16.mxu0 0
        %2778 = vmatpush1.bf16.msra.mxu0 0
        %2779 = vmatprep.subr.bf16.mxu0 0
        %2780 = vmatpush1.bf16.msra.mxu0 0
        %2781 = vmatprep.subr.bf16.mxu0 0
        %2782 = vmatpush1.bf16.msra.mxu0 0
        %2783 = vmatprep.subr.bf16.mxu0 0
        %2784 = vmatpush1.bf16.msra.mxu0 0
        %2785 = vmatprep.subr.bf16.mxu0 0
        %2786 = vmatpush1.bf16.msra.mxu0 0
        %2787 = vmatprep.subr.bf16.mxu0 0
        %2788 = vmatpush1.bf16.msra.mxu0 0
        %2789 = vmatprep.subr.bf16.mxu0 0
        %2790 = vmatpush1.bf16.msra.mxu0 0
        %2791 = vmatprep.mubr.bf16.mxu0 0
        %2792 = vmatmul.mubr.bf16.gmra.mrb[0].mxu0 %v2693
        %v2793 = vpop.f32.mrb[0].mxu0
        %v2794 = vadd.f32 0.0, %v2793
        %v2795 = vpop.f32.mrb[0].mxu0
        %v2796 = vpop.f32.mrb[0].mxu0
        %v2797 = vpop.f32.mrb[0].mxu0
        %2798 = vdwg.mxu0
        %v2799 = vadd.f32 %v1985, %v2794
        %s2800 = scalar_lea.vmem %s12, 1
        %v2801 = vld [vmem:[%s2800] sm:$0x1]
        %v2803 = vlaneseq
        %v2804 = vshrl.u32 %v2803, 7
        %v2805 = vsub.s32 0, %v2804
        %v2806 = vrot.slane %v2801, %v2805
        %v2808 = vadd.f32 %v2799, %v2806
        %s2809 = scalar_lea.vmem %s13, 1
        %v2810 = vld [vmem:[%s2809] sm:$0x1]
        %s2811 = scalar_lea.vmem %s14, 1
        %v2812 = vld [vmem:[%s2811] sm:$0x1]
        %2813 = vadd.xlane.f32.xlu0 %v2808
        %v2814 = vpop.xlane.xlu0 %2813
        %v2815 = vmul.f32 %v2814, 0.03125
        %v2816 = vsub.f32 %v2808, %v2815
        %v2817 = vmul.f32 %v2816, %v746
        %v2818 = vmul.f32 %v2817, %v2817
        %2819 = vadd.xlane.f32.xlu0 %v2818
        %v2820 = vpop.xlane.xlu0 %2819
        %v2821 = vmul.f32 %v2820, 0.03125
        %v2822 = vadd.f32 %v2821, 1e-05
        %v2823 = vrsqrt.pop %v2822
        %v2824 = vmul.f32 %v2817, %v2823
        %v2826 = vlaneseq
        %v2827 = vshrl.u32 %v2826, 7
        %v2828 = vsub.s32 0, %v2827
        %v2829 = vrot.slane %v2810, %v2828
        %v2831 = vmul.f32 %v2824, %v2829
        %v2833 = vlaneseq
        %v2834 = vshrl.u32 %v2833, 7
        %v2835 = vsub.s32 0, %v2834
        %v2836 = vrot.slane %v2812, %v2835
        %v2838 = vadd.f32 %v2831, %v2836
        %v2839 = vpack.c.bf16 %v2838, %v2838
        %s2840 = scalar_lea.vmem [#allocation10], 64
        %v2841 = vld [vmem:[%s2840] sm:$0xf]
        %v2842 = vld [vmem:[%s2840 + $0x4] sm:$0xf]
        %v2843 = vld [vmem:[%s2840 + $0x8] sm:$0xf]
        %v2844 = vld [vmem:[%s2840 + $0xc] sm:$0xf]
        %v2845 = vld [vmem:[%s2840 + $0x10] sm:$0xf]
        %v2846 = vld [vmem:[%s2840 + $0x14] sm:$0xf]
        %v2847 = vld [vmem:[%s2840 + $0x18] sm:$0xf]
        %v2848 = vld [vmem:[%s2840 + $0x1c] sm:$0xf]
        %v2849 = vld [vmem:[%s2840 + $0x20] sm:$0xf]
        %v2850 = vld [vmem:[%s2840 + $0x24] sm:$0xf]
        %v2851 = vld [vmem:[%s2840 + $0x28] sm:$0xf]
        %v2852 = vld [vmem:[%s2840 + $0x2c] sm:$0xf]
        %v2853 = vld [vmem:[%s2840 + $0x30] sm:$0xf]
        %v2854 = vld [vmem:[%s2840 + $0x34] sm:$0xf]
        %v2855 = vld [vmem:[%s2840 + $0x38] sm:$0xf]
        %v2856 = vld [vmem:[%s2840 + $0x3c] sm:$0xf]
        %s2857 = scalar_lea.vmem %s16, 1
        %v2858 = vld [vmem:[%s2857] sm:$0x1]
        %v2860 = vlaneseq
        %v2861 = vshrl.u32 %v2860, 7
        %v2862 = vsub.s32 0, %v2861
        %v2863 = vrot.slane %v2858, %v2862
        %v2881 = vunpack.c.l.b16 %v2841
        %v2882 = vunpack.c.l.b16 %v2842
        %v2883 = vunpack.c.l.b16 %v2843
        %v2884 = vunpack.c.l.b16 %v2844
        %v2885 = vunpack.c.l.b16 %v2845
        %v2886 = vunpack.c.l.b16 %v2846
        %v2887 = vunpack.c.l.b16 %v2847
        %v2888 = vunpack.c.l.b16 %v2848
        %v2889 = vunpack.c.l.b16 %v2849
        %v2890 = vunpack.c.l.b16 %v2850
        %v2891 = vunpack.c.l.b16 %v2851
        %v2892 = vunpack.c.l.b16 %v2852
        %v2893 = vunpack.c.l.b16 %v2853
        %v2894 = vunpack.c.l.b16 %v2854
        %v2895 = vunpack.c.l.b16 %v2855
        %v2896 = vunpack.c.l.b16 %v2856
        %v2897 = vpack.c.b16 %v2882, %v2881
        %v2898 = vpack.c.b16 %v2884, %v2883
        %v2899 = vpack.c.b16 %v2886, %v2885
        %v2900 = vpack.c.b16 %v2888, %v2887
        %v2901 = vpack.c.b16 %v2890, %v2889
        %v2902 = vpack.c.b16 %v2892, %v2891
        %v2903 = vpack.c.b16 %v2894, %v2893
        %v2904 = vpack.c.b16 %v2896, %v2895
        %2913 = vmatprep.subr.bf16.mxu0 0
        %2914 = vmatpush1.bf16.msra.mxu0 %v2897
        %2915 = vmatprep.subr.bf16.mxu0 0
        %2916 = vmatpush1.bf16.msra.mxu0 %v2898
        %2917 = vmatprep.subr.bf16.mxu0 0
        %2918 = vmatpush1.bf16.msra.mxu0 %v2899
        %2919 = vmatprep.subr.bf16.mxu0 0
        %2920 = vmatpush1.bf16.msra.mxu0 %v2900
        %2921 = vmatprep.subr.bf16.mxu0 0
        %2922 = vmatpush1.bf16.msra.mxu0 %v2901
        %2923 = vmatprep.subr.bf16.mxu0 0
        %2924 = vmatpush1.bf16.msra.mxu0 %v2902
        %2925 = vmatprep.subr.bf16.mxu0 0
        %2926 = vmatpush1.bf16.msra.mxu0 %v2903
        %2927 = vmatprep.subr.bf16.mxu0 0
        %2928 = vmatpush1.bf16.msra.mxu0 %v2904
        %2929 = vmatprep.subr.bf16.mxu0 0
        %2930 = vmatpush1.bf16.msra.mxu0 0
        %2931 = vmatprep.subr.bf16.mxu0 0
        %2932 = vmatpush1.bf16.msra.mxu0 0
        %2933 = vmatprep.subr.bf16.mxu0 0
        %2934 = vmatpush1.bf16.msra.mxu0 0
        %2935 = vmatprep.subr.bf16.mxu0 0
        %2936 = vmatpush1.bf16.msra.mxu0 0
        %2937 = vmatprep.subr.bf16.mxu0 0
        %2938 = vmatpush1.bf16.msra.mxu0 0
        %2939 = vmatprep.subr.bf16.mxu0 0
        %2940 = vmatpush1.bf16.msra.mxu0 0
        %2941 = vmatprep.subr.bf16.mxu0 0
        %2942 = vmatpush1.bf16.msra.mxu0 0
        %2943 = vmatprep.subr.bf16.mxu0 0
        %2944 = vmatpush1.bf16.msra.mxu0 0
        %2945 = vmatprep.mubr.bf16.mxu0 0
        %2946 = vmatmul.mubr.bf16.gmra.mrb[0].mxu0 %v2839
        %v2947 = vpop.f32.mrb[0].mxu0
        %v2948 = vadd.f32 %v2863, %v2947
        %v2949 = vpop.f32.mrb[0].mxu0
        %v2950 = vpop.f32.mrb[0].mxu0
        %v2951 = vpop.f32.mrb[0].mxu0
        %2952 = vdwg.mxu0
        %v2953 = vmul.f32 %v2948, %v2948
        %v2954 = vmul.f32 %v2948, %v2953
        %v2955 = vmul.f32 %v2954, 0.044715
        %v2956 = vadd.f32 %v2948, %v2955
        %v2957 = vmul.f32 %v2956, 0.7978846
        %v2958 = vtanh.pop %v2957
        %v2959 = vadd.f32 %v2958, 1.0
        %v2960 = vmul.f32 %v2959, 0.5
        %v2961 = vmul.f32 %v2948, %v2960
        %v2962 = vpack.c.bf16 %v2961, %v2961
        %s2963 = scalar_lea.vmem [#allocation11], 64
        %v2964 = vld [vmem:[%s2963] sm:$0xf]
        %v2965 = vld [vmem:[%s2963 + $0x4] sm:$0xf]
        %v2966 = vld [vmem:[%s2963 + $0x8] sm:$0xf]
        %v2967 = vld [vmem:[%s2963 + $0xc] sm:$0xf]
        %v2968 = vld [vmem:[%s2963 + $0x10] sm:$0xf]
        %v2969 = vld [vmem:[%s2963 + $0x14] sm:$0xf]
        %v2970 = vld [vmem:[%s2963 + $0x18] sm:$0xf]
        %v2971 = vld [vmem:[%s2963 + $0x1c] sm:$0xf]
        %v2972 = vld [vmem:[%s2963 + $0x20] sm:$0xf]
        %v2973 = vld [vmem:[%s2963 + $0x24] sm:$0xf]
        %v2974 = vld [vmem:[%s2963 + $0x28] sm:$0xf]
        %v2975 = vld [vmem:[%s2963 + $0x2c] sm:$0xf]
        %v2976 = vld [vmem:[%s2963 + $0x30] sm:$0xf]
        %v2977 = vld [vmem:[%s2963 + $0x34] sm:$0xf]
        %v2978 = vld [vmem:[%s2963 + $0x38] sm:$0xf]
        %v2979 = vld [vmem:[%s2963 + $0x3c] sm:$0xf]
        %v2996 = vunpack.c.l.b16 %v2964
        %v2997 = vunpack.c.l.b16 %v2965
        %v2998 = vunpack.c.l.b16 %v2966
        %v2999 = vunpack.c.l.b16 %v2967
        %v3000 = vunpack.c.l.b16 %v2968
        %v3001 = vunpack.c.l.b16 %v2969
        %v3002 = vunpack.c.l.b16 %v2970
        %v3003 = vunpack.c.l.b16 %v2971
        %v3004 = vunpack.c.l.b16 %v2972
        %v3005 = vunpack.c.l.b16 %v2973
        %v3006 = vunpack.c.l.b16 %v2974
        %v3007 = vunpack.c.l.b16 %v2975
        %v3008 = vunpack.c.l.b16 %v2976
        %v3009 = vunpack.c.l.b16 %v2977
        %v3010 = vunpack.c.l.b16 %v2978
        %v3011 = vunpack.c.l.b16 %v2979
        %v3012 = vpack.c.b16 %v2997, %v2996
        %v3013 = vpack.c.b16 %v2999, %v2998
        %v3014 = vpack.c.b16 %v3001, %v3000
        %v3015 = vpack.c.b16 %v3003, %v3002
        %v3016 = vpack.c.b16 %v3005, %v3004
        %v3017 = vpack.c.b16 %v3007, %v3006
        %v3018 = vpack.c.b16 %v3009, %v3008
        %v3019 = vpack.c.b16 %v3011, %v3010
        %3028 = vmatprep.subr.bf16.mxu0 0
        %3029 = vmatpush1.bf16.msra.mxu0 %v3012
        %3030 = vmatprep.subr.bf16.mxu0 0
        %3031 = vmatpush1.bf16.msra.mxu0 %v3013
        %3032 = vmatprep.subr.bf16.mxu0 0
        %3033 = vmatpush1.bf16.msra.mxu0 %v3014
        %3034 = vmatprep.subr.bf16.mxu0 0
        %3035 = vmatpush1.bf16.msra.mxu0 %v3015
        %3036 = vmatprep.subr.bf16.mxu0 0
        %3037 = vmatpush1.bf16.msra.mxu0 %v3016
        %3038 = vmatprep.subr.bf16.mxu0 0
        %3039 = vmatpush1.bf16.msra.mxu0 %v3017
        %3040 = vmatprep.subr.bf16.mxu0 0
        %3041 = vmatpush1.bf16.msra.mxu0 %v3018
        %3042 = vmatprep.subr.bf16.mxu0 0
        %3043 = vmatpush1.bf16.msra.mxu0 %v3019
        %3044 = vmatprep.subr.bf16.mxu0 0
        %3045 = vmatpush1.bf16.msra.mxu0 0
        %3046 = vmatprep.subr.bf16.mxu0 0
        %3047 = vmatpush1.bf16.msra.mxu0 0
        %3048 = vmatprep.subr.bf16.mxu0 0
        %3049 = vmatpush1.bf16.msra.mxu0 0
        %3050 = vmatprep.subr.bf16.mxu0 0
        %3051 = vmatpush1.bf16.msra.mxu0 0
        %3052 = vmatprep.subr.bf16.mxu0 0
        %3053 = vmatpush1.bf16.msra.mxu0 0
        %3054 = vmatprep.subr.bf16.mxu0 0
        %3055 = vmatpush1.bf16.msra.mxu0 0
        %3056 = vmatprep.subr.bf16.mxu0 0
        %3057 = vmatpush1.bf16.msra.mxu0 0
        %3058 = vmatprep.subr.bf16.mxu0 0
        %3059 = vmatpush1.bf16.msra.mxu0 0
        %3060 = vmatprep.mubr.bf16.mxu0 0
        %3061 = vmatmul.mubr.bf16.gmra.mrb[0].mxu0 %v2962
        %v3062 = vpop.f32.mrb[0].mxu0
        %v3063 = vadd.f32 0.0, %v3062
        %v3064 = vpop.f32.mrb[0].mxu0
        %v3065 = vpop.f32.mrb[0].mxu0
        %v3066 = vpop.f32.mrb[0].mxu0
        %3067 = vdwg.mxu0
        %v3068 = vadd.f32 %v2808, %v3063
        %s3069 = scalar_lea.vmem %s18, 1
        %v3070 = vld [vmem:[%s3069] sm:$0x1]
        %v3072 = vlaneseq
        %v3073 = vshrl.u32 %v3072, 7
        %v3074 = vsub.s32 0, %v3073
        %v3075 = vrot.slane %v3070, %v3074
        %v3077 = vadd.f32 %v3068, %v3075
        %v3078 = vld [vmem:[%s4] sm:$0x1]
        %v3079 = vld [vmem:[%s5] sm:$0x1]
        %3080 = vadd.xlane.f32.xlu0 %v3077
        %v3081 = vpop.xlane.xlu0 %3080
        %v3082 = vmul.f32 %v3081, 0.03125
        %v3083 = vsub.f32 %v3077, %v3082
        %v3084 = vmul.f32 %v3083, %v746
        %v3085 = vmul.f32 %v3084, %v3084
        %3086 = vadd.xlane.f32.xlu0 %v3085
        %v3087 = vpop.xlane.xlu0 %3086
        %v3088 = vmul.f32 %v3087, 0.03125
        %v3089 = vadd.f32 %v3088, 1e-05
        %v3090 = vrsqrt.pop %v3089
        %v3091 = vmul.f32 %v3084, %v3090
        %v3093 = vlaneseq
        %v3094 = vshrl.u32 %v3093, 7
        %v3095 = vsub.s32 0, %v3094
        %v3096 = vrot.slane %v3078, %v3095
        %v3098 = vmul.f32 %v3091, %v3096
        %v3100 = vlaneseq
        %v3101 = vshrl.u32 %v3100, 7
        %v3102 = vsub.s32 0, %v3101
        %v3103 = vrot.slane %v3079, %v3102
        %v3105 = vadd.f32 %v3098, %v3103
        %v3106 = vpack.c.bf16 %v3105, %v3105
        %v3107 = vld [vmem:[#allocation5] sm:$0xf]
        %v3108 = vld [vmem:[#allocation5 + $0x4] sm:$0xf]
        %v3109 = vld [vmem:[#allocation5 + $0x8] sm:$0xf]
        %v3110 = vld [vmem:[#allocation5 + $0xc] sm:$0xf]
        %v3111 = vld [vmem:[#allocation5 + $0x10] sm:$0xf]
        %v3112 = vld [vmem:[#allocation5 + $0x14] sm:$0xf]
        %v3113 = vld [vmem:[#allocation5 + $0x18] sm:$0xf]
        %v3114 = vld [vmem:[#allocation5 + $0x1c] sm:$0xf]
        %v3115 = vld [vmem:[#allocation5 + $0x20] sm:$0xf]
        %v3116 = vld [vmem:[#allocation5 + $0x24] sm:$0xf]
        %v3117 = vld [vmem:[#allocation5 + $0x28] sm:$0xf]
        %v3118 = vld [vmem:[#allocation5 + $0x2c] sm:$0xf]
        %v3119 = vld [vmem:[#allocation5 + $0x30] sm:$0xf]
        %v3120 = vld [vmem:[#allocation5 + $0x34] sm:$0xf]
        %v3121 = vld [vmem:[#allocation5 + $0x38] sm:$0xf]
        %v3122 = vld [vmem:[#allocation5 + $0x3c] sm:$0xf]
        %v3139 = vunpack.c.l.b16 %v3107
        %v3140 = vunpack.c.l.b16 %v3108
        %v3141 = vunpack.c.l.b16 %v3109
        %v3142 = vunpack.c.l.b16 %v3110
        %v3143 = vunpack.c.l.b16 %v3111
        %v3144 = vunpack.c.l.b16 %v3112
        %v3145 = vunpack.c.l.b16 %v3113
        %v3146 = vunpack.c.l.b16 %v3114
        %v3147 = vunpack.c.l.b16 %v3115
        %v3148 = vunpack.c.l.b16 %v3116
        %v3149 = vunpack.c.l.b16 %v3117
        %v3150 = vunpack.c.l.b16 %v3118
        %v3151 = vunpack.c.l.b16 %v3119
        %v3152 = vunpack.c.l.b16 %v3120
        %v3153 = vunpack.c.l.b16 %v3121
        %v3154 = vunpack.c.l.b16 %v3122
        %v3155 = vpack.c.b16 %v3140, %v3139
        %v3156 = vpack.c.b16 %v3142, %v3141
        %v3157 = vpack.c.b16 %v3144, %v3143
        %v3158 = vpack.c.b16 %v3146, %v3145
        %v3159 = vpack.c.b16 %v3148, %v3147
        %v3160 = vpack.c.b16 %v3150, %v3149
        %v3161 = vpack.c.b16 %v3152, %v3151
        %v3162 = vpack.c.b16 %v3154, %v3153
        %3171 = vmatprep.subr.bf16.mxu0 0
        %3172 = vmatpush1.bf16.msra.mxu0 %v3155
        %3173 = vmatprep.subr.bf16.mxu0 0
        %3174 = vmatpush1.bf16.msra.mxu0 %v3156
        %3175 = vmatprep.subr.bf16.mxu0 0
        %3176 = vmatpush1.bf16.msra.mxu0 %v3157
        %3177 = vmatprep.subr.bf16.mxu0 0
        %3178 = vmatpush1.bf16.msra.mxu0 %v3158
        %3179 = vmatprep.subr.bf16.mxu0 0
        %3180 = vmatpush1.bf16.msra.mxu0 %v3159
        %3181 = vmatprep.subr.bf16.mxu0 0
        %3182 = vmatpush1.bf16.msra.mxu0 %v3160
        %3183 = vmatprep.subr.bf16.mxu0 0
        %3184 = vmatpush1.bf16.msra.mxu0 %v3161
        %3185 = vmatprep.subr.bf16.mxu0 0
        %3186 = vmatpush1.bf16.msra.mxu0 %v3162
        %3187 = vmatprep.subr.bf16.mxu0 0
        %3188 = vmatpush1.bf16.msra.mxu0 0
        %3189 = vmatprep.subr.bf16.mxu0 0
        %3190 = vmatpush1.bf16.msra.mxu0 0
        %3191 = vmatprep.subr.bf16.mxu0 0
        %3192 = vmatpush1.bf16.msra.mxu0 0
        %3193 = vmatprep.subr.bf16.mxu0 0
        %3194 = vmatpush1.bf16.msra.mxu0 0
        %3195 = vmatprep.subr.bf16.mxu0 0
        %3196 = vmatpush1.bf16.msra.mxu0 0
        %3197 = vmatprep.subr.bf16.mxu0 0
        %3198 = vmatpush1.bf16.msra.mxu0 0
        %3199 = vmatprep.subr.bf16.mxu0 0
        %3200 = vmatpush1.bf16.msra.mxu0 0
        %3201 = vmatprep.subr.bf16.mxu0 0
        %3202 = vmatpush1.bf16.msra.mxu0 0
        %3203 = vmatprep.mubr.bf16.mxu0 0
        %3204 = vmatmul.mubr.bf16.gmra.mrb[0].mxu0 %v3106
        %v3205 = vpop.f32.mrb[0].mxu0
        %v3206 = vadd.f32 0.0, %v3205
        %v3207 = vpop.f32.mrb[0].mxu0
        %v3208 = vpop.f32.mrb[0].mxu0
        %v3209 = vpop.f32.mrb[0].mxu0
        %3210 = vdwg.mxu0
        %3211 = vst [vmem:[%s725] sm:$0xff] %v3206
        %v3212 = vld [vmem:[%s740] sm:$0xff]
        %vm3213 = vcmp.lt.s32.totalorder %v743, 33
        %v3214 = vsel %vm3213, %v3206, -1e+30
        %3215 = vmax.xlane.f32.xlu0 %v3214
        %v3216 = vpop.xlane.xlu0 %3215
        %v3217 = vsub.f32 %v3214, %v3216
        %v3218 = vmul.f32 %v3217, 1.442695
        %v3219 = vpow.pop %v3218
        %3220 = vadd.xlane.f32.xlu0 %v3219
        %v3221 = vpop.xlane.xlu0 %3220
        %v3222 = vlog2.pop %v3221
        %v3223 = vmul.f32 %v3222, 0.6931472
        %v3224 = vadd.f32 %v3216, %v3223
        %3225 = vset.pattern.permute.xlu0 0
        %3226 = vperm.xlu0 %3225, %v3212
        %v3227 = vpop.permute.xlu0 %3226
        %vm3228 = vcmp.eq.s32.totalorder %v743, %v3227
        %v3229 = vsel %vm3228, 1, 0
        %v3230 = vcvt.s32.f32 %v3229
        %v3231 = vmul.f32 %v3206, %v3230
        %3232 = vadd.xlane.f32.xlu0 %v3231
        %v3233 = vpop.xlane.xlu0 %3232
        %vm3234 = vcmp.ne.s32.totalorder %v3212, 4294967196
        %v3235 = vsel %vm3234, 1, 0
        %v3236 = vcvt.s32.f32 %v3235
        %v3237 = vsub.f32 %v3224, %v3233
        %v3238 = vmul.f32 %v3237, %v3236
        %vm3239 = vcmask 7168
        %v3240 = vsel %vm3239, %v3238, 0.0
        %3241 = vadd.xlane.f32.xlu0 %v3240
        %v3242 = vpop.xlane.xlu0 %3241
        %v3243 = vrot.slane %v3242, 4
        %v3244 = vadd.f32 %v3242, %v3243
        %v3245 = vrot.slane %v3244, 2
        %v3246 = vadd.f32 %v3244, %v3245
        %v3247 = vrot.slane %v3246, 1
        %v3248 = vadd.f32 %v3246, %v3247
        %s3249 = vtos %v3248
        %v3250 = vsel %vm3239, %v3236, 0.0
        %3251 = vadd.xlane.f32.xlu0 %v3250
        %v3252 = vpop.xlane.xlu0 %3251
        %v3253 = vrot.slane %v3252, 4
        %v3254 = vadd.f32 %v3252, %v3253
        %v3255 = vrot.slane %v3254, 2
        %v3256 = vadd.f32 %v3254, %v3255
        %v3257 = vrot.slane %v3256, 1
        %v3258 = vadd.f32 %v3256, %v3257
        %s3259 = vtos %v3258
        %vm3260 = vcmp.eq.s32.totalorder %v743, 0
        %v3261 = vsel %vm3260, 1, 0
        %v3262 = vcvt.s32.f32 %v3261
        %v3263 = vstv %s3249
        %v3264 = vmul.f32 %v3263, %v3262
        %vm3265 = vcmp.eq.s32.totalorder %v743, 1
        %v3266 = vsel %vm3265, 1, 0
        %v3267 = vcvt.s32.f32 %v3266
        %v3268 = vstv %s3259
        %v3269 = vmul.f32 %v3268, %v3267
        %v3270 = vadd.f32 %v3264, %v3269
        %v3271 = vadd.f32 %v3270, 0.0
        %3272 = vst [vmem:[%s732] sm:$0xff] %v3271
        %s3273 = sand.u32 %s459, 1
        %s3274 = scalar_lea.sflag [#allocation4], %s3273
        %s3275 = sand.u32 %s459, 1
        %s3276 = smul.addr %s3275, 8
        %s3277 = scalar_lea.vmem [#allocation13], %s3276
        %s3278 = sand.u32 %s485, 1
        %s3279 = scalar_lea.sflag [#allocation15], %s3278
        %s3280 = sand.u32 %s485, 1
        %s3281 = smul.addr %s3280, 8
        %s3282 = scalar_lea.vmem [#allocation14], %s3281
        // Predicated region
        $region121: #{tpu_custom_call.1} parent=95 // pred_check
          %p3283 = pneg %p469
        $region122: #{tpu_custom_call.1} parent=95 // pred_check_branch
          %3285 = sbr.rel (%p3283) target = $region124
        $region123: #{tpu_custom_call.1} parent=95 // pred_region
          %s3287 = ssub.s32 128, 128
          %3288 = vsyncadd %s3274, %s3287
          %s3289 = smul.addr %s42, 128
          %s3290 = scalar_lea.hbm %s19, %s3289
          %s3292 = sshll.u32 %s3277, 4
          %s3293 = int_to_ptr.vmem [resolvable:$true] %s3292
          %3295 = dma.vmem_to_hbm [thread:$0]  %s3293, 128, %s3290, %s3274
        $region124: #{tpu_custom_call.1} parent=95 // pred_fallthru
          _
        // Predicated region
        $region125: #{tpu_custom_call.1} parent=95 // pred_check
          %p3296 = pneg %p495
        $region126: #{tpu_custom_call.1} parent=95 // pred_check_branch
          %3298 = sbr.rel (%p3296) target = $region128
        $region127: #{tpu_custom_call.1} parent=95 // pred_region
          %s3300 = ssub.s32 128, 128
          %3301 = vsyncadd %s3279, %s3300
          %s3302 = smul.addr %s42, 128
          %s3303 = scalar_lea.hbm %s20, %s3302
          %s3305 = sshll.u32 %s3282, 4
          %s3306 = int_to_ptr.vmem [resolvable:$true] %s3305
          %3308 = dma.vmem_to_hbm [thread:$0]  %s3306, 128, %s3303, %s3279
        $region128: #{tpu_custom_call.1} parent=95 // pred_fallthru
          _
      $region96: #{tpu_custom_call.1} parent=5 // pred_fallthru
        _
      %p3309 = scmp.le.s32.totalorder 2, %s37
      // Predicated region
      $region129: #{tpu_custom_call.1} parent=5 // pred_check
        %p3310 = pneg %p3309
      $region130: #{tpu_custom_call.1} parent=5 // pred_check_branch
        %3312 = sbr.rel (%p3310) target = $region132
      $region131: #{tpu_custom_call.1} parent=5 // pred_region
        %s3313 = ssub.s32 %s37, 2
        // Predicated region
        $region133: #{tpu_custom_call.1} parent=131 // pred_check
          %p3314 = pneg %p475
        $region134: #{tpu_custom_call.1} parent=131 // pred_check_branch
          %3316 = sbr.rel (%p3314) target = $region136
        $region135: #{tpu_custom_call.1} parent=131 // pred_region
          %s3317 = sand.u32 %s460, 1
          %s3318 = scalar_lea.sflag [#allocation4], %s3317
          %s3319 = sand.u32 %s460, 1
          %s3320 = smul.addr %s3319, 8
          %s3321 = scalar_lea.vmem [#allocation13], %s3320
          %3322 = dma.done %s3318, 128
        $region136: #{tpu_custom_call.1} parent=131 // pred_fallthru
          _
        // Predicated region
        $region137: #{tpu_custom_call.1} parent=131 // pred_check
          %p3323 = pneg %p501
        $region138: #{tpu_custom_call.1} parent=131 // pred_check_branch
          %3325 = sbr.rel (%p3323) target = $region140
        $region139: #{tpu_custom_call.1} parent=131 // pred_region
          %s3326 = sand.u32 %s486, 1
          %s3327 = scalar_lea.sflag [#allocation15], %s3326
          %s3328 = sand.u32 %s486, 1
          %s3329 = smul.addr %s3328, 8
          %s3330 = scalar_lea.vmem [#allocation14], %s3329
          %3331 = dma.done %s3327, 128
        $region140: #{tpu_custom_call.1} parent=131 // pred_fallthru
          _
      $region132: #{tpu_custom_call.1} parent=5 // pred_fallthru
        _
    $region6: #{tpu_custom_call.1} parent=1 // loop_footer
      %s41 = sadd.s32 1, %s37
    $region7: #{tpu_custom_call.1} parent=1 // loop_footer_branch
      %36 = sbr.rel target = $region3
    $region8: #{tpu_custom_call.1} parent=1 // loop_exit
      _
    %3332 = vsyncpa [#allocation3], 1
    %s3333 = scalar_lea.sflag [#allocation3], 1
    %3334 = vsyncpa %s3333, 1
    %3335 = vsyncpa [#allocation6], 1
    %3336 = vsyncpa [#allocation9], 1
    %3337 = vsyncpa [#allocation12], 1
    %3338 = vsyncpa [#allocation4], 1
    %s3339 = scalar_lea.sflag [#allocation4], 1
    %3340 = vsyncpa %s3339, 1
    %3341 = vsyncpa [#allocation15], 1
    %s3342 = scalar_lea.sflag [#allocation15], 1
    %3343 = vsyncpa %s3342, 1

</llo_original>
